<compile_context>
chip_gen: v7x
topology: tpu7x:2x2x1
jax: 0.10.0
libtpu: 0.0.40
codegen_flags: <defaults>
</compile_context>

<pallas_src>
import functools

import jax
import jax.numpy as jnp
from jax import lax
from jax.experimental import pallas as pl
from jax.experimental.pallas import tpu as pltpu


# -------------------- fused Conv3d + ReLU (+ MaxPool3d(2,2)) -----------------
def _conv_relu_pool_kernel(x_ref, w_ref, b_ref, *rest, cin, cout, kd, kh, kw,
                           w_out, h_iter, pool):
    """relu(conv3d(x)+b) [+ 2x2x2 maxpool] for one (sample, out-depth[-pair]) slice.

    x_ref : (D_in, H_in*Cin, W_in)   packed input, one sample
    w_ref : (KD, KW*Cout, KH*Cin)    weights with KW folded into the matmul M dim
    b_ref : (Cout, 1)
    sel_ref (pool only): (W_conv-1, W_f) 0/1 even-column selector
    o_ref : (H_f*Cout, W_f)          packed output slab for this grid step
    """
    if pool:
        sel_ref, o_ref = rest
    else:
        (o_ref,) = rest

    d_base = pl.program_id(1) * (2 if pool else 1)
    bias = b_ref[...]                                   # (Cout, 1), hoisted
    kcin = kh * cin

    def out_row_start(r):
        s = r * cout
        return pl.multiple_of(s, 8) if cout % 8 == 0 else s

    def conv_row(dc, ho):
        # Raw conv output row `ho` at conv-output depth `dc`: (Cout, W_conv).
        start = ho * cin
        if cin % 8 == 0:
            start = pl.multiple_of(start, 8)
        res = None
        for i_d in range(kd):
            slab = x_ref[dc + i_d, pl.ds(start, kcin), :]            # (KH*Cin, W_in)
            t = jnp.dot(w_ref[i_d], slab,
                        preferred_element_type=jnp.float32)          # (KW*Cout, W_in)
            res = t if res is None else res + t
        # KW shift-add applied once, on the matmul result row-blocks (XLU lane shifts).
        acc = res[0:cout, 0:w_out]
        for i_w in range(1, kw):
            acc = acc + res[i_w * cout:(i_w + 1) * cout, i_w:i_w + w_out]
        return acc

    if pool:
        sel = sel_ref[...]                              # (W_conv-1, W_f), hoisted

        @pl.loop(0, h_iter)                             # h_iter = pooled output rows
        def _(hp):
            m = conv_row(d_base, 2 * hp)
            m = jnp.maximum(m, conv_row(d_base, 2 * hp + 1))
            m = jnp.maximum(m, conv_row(d_base + 1, 2 * hp))
            m = jnp.maximum(m, conv_row(d_base + 1, 2 * hp + 1))
            r = jnp.maximum(m + bias, 0.0)                           # (Cout, W_conv)
            # width pool: pairwise max (VPU) + single even-column selection matmul
            m2 = jnp.maximum(r[:, 0:w_out - 1], r[:, 1:w_out])
            pooled = jnp.dot(m2, sel, preferred_element_type=jnp.float32)
            o_ref[pl.ds(out_row_start(hp), cout), :] = pooled
    else:
        @pl.loop(0, h_iter)                             # h_iter = conv output rows
        def _(ho):
            acc = conv_row(d_base, ho)
            o_ref[pl.ds(out_row_start(ho), cout), :] = jnp.maximum(acc + bias, 0.0)


def conv3d_relu(x, wpk, b_col, *, cin, pool):
    """x: packed (N, D_in, H_in*Cin, W_in); wpk: (KD, KW*Cout, KH*Cin); b: (Cout, 1)."""
    n, d_in, hc_in, w_in = x.shape
    h_in = hc_in // cin
    kd, kwcout, khcin = wpk.shape
    kh = khcin // cin
    cout = b_col.shape[0]
    kw = kwcout // cout
    d_o, h_o, w_o = d_in - kd + 1, h_in - kh + 1, w_in - kw + 1
    if pool:
        d_f, h_f, w_f = d_o // 2, h_o // 2, w_o // 2     # floor, matches MaxPool3d(2,2)
    else:
        d_f, h_f, w_f = d_o, h_o, w_o

    kernel = functools.partial(_conv_relu_pool_kernel, cin=cin, cout=cout, kd=kd,
                               kh=kh, kw=kw, w_out=w_o, h_iter=h_f, pool=pool)

    in_specs = [
        # TODO(synk): whole-sample-resident input block; at full 120x144x120 scale use a
        # depth-windowed manual DMA (v7x) or Buffered(1)/larger vmem_limit (v5e/v6e).
        pl.BlockSpec((None, d_in, hc_in, w_in), lambda i, j: (i, 0, 0, 0)),
        pl.BlockSpec((kd, kwcout, khcin), lambda i, j: (0, 0, 0)),
        pl.BlockSpec((cout, 1), lambda i, j: (0, 0)),
    ]
    args = [x, wpk, b_col]
    if pool:
        # constant even-column selector, hoisted out of the kernel
        sel = (jnp.arange(w_o - 1)[:, None] == 2 * jnp.arange(w_f)[None, :])
        args.append(sel.astype(jnp.float32))
        in_specs.append(pl.BlockSpec((w_o - 1, w_f), lambda i, j: (0, 0)))

    return pl.pallas_call(
        kernel,
        out_shape=jax.ShapeDtypeStruct((n, d_f, h_f * cout, w_f), jnp.float32),
        grid=(n, d_f),
        in_specs=in_specs,
        out_specs=pl.BlockSpec((None, None, h_f * cout, w_f),
                               lambda i, j: (i, j, 0, 0)),
        compiler_params=pltpu.CompilerParams(
            # both axes independent -> v7x can shard the depth axis across its 2 TCs
            dimension_semantics=("parallel", "parallel"),
            vmem_limit_bytes=48 * 1024 * 1024),
    )(*args)


# ------------------------------ full forward ---------------------------------
def local_brief_net_forward(x, params):
    """x: (N, 1, D, H, W) float32, PyTorch NCDHW convention."""
    n, _, d, h, w = x.shape
    x0 = x.reshape(n, d, h, w)

    # im2col-lite along depth for the Cin=1 first conv: the 5 depth taps become
    # sublane-contiguous pseudo-channels so the conv runs as one K=25 dot per row.
    kd5 = 5
    d5 = d - kd5 + 1
    x5 = jnp.stack([x0[:, i:i + d5] for i in range(kd5)], axis=3).reshape(n, d5, h * kd5, w)

    t = conv3d_relu(x5, params["w5"], params["b5"], cin=kd5, pool=True)   # conv5x5+relu+pool
    t = conv3d_relu(t, params["w3"], params["b3"], cin=32, pool=False)    # conv3x3+relu
    t = conv3d_relu(t, params["w3"], params["b3"], cin=32, pool=False)    # conv3x3+relu (shared weights, as in PyTorch)
    t = conv3d_relu(t, params["w3"], params["b3"], cin=32, pool=True)     # conv3x3+relu+pool

    # last_conv (Cout=2) + fc in plain XLA (per perf review: M=2 wastes the MXU and the
    # tensor is tiny here); unpack the packed (N, D, H*C, W) layout back to NCDHW first.
    nl, dl, hlc, wl_ = t.shape
    c_in_last = params["wl"].shape[1]
    hl = hlc // c_in_last
    t = t.reshape(nl, dl, hl, c_in_last, wl_).transpose(0, 3, 1, 2, 4)    # NCDHW
    t = jax.nn.relu(
        lax.conv_general_dilated(t, params["wl"], (1, 1, 1), "VALID",
                                 dimension_numbers=("NCDHW", "OIDHW", "NCDHW"),
                                 precision=lax.Precision.HIGHEST)
        + params["bl"].reshape(1, -1, 1, 1, 1))
    flat = t.reshape(nl, -1)                                              # (C,D,H,W) flatten order
    return jnp.dot(flat, params["wfc"].T,
                   precision=lax.Precision.HIGHEST) + params["bfc"]


# ----------------------- weights (PyTorch layouts) + glue ---------------------
def make_torch_weights(key, n_classes, fc_in):
    ks = jax.random.split(key, 8)
    return {
        "w5": 0.12 * jax.random.normal(ks[0], (32, 1, 5, 5, 5), jnp.float32),
        "b5": 0.05 * jax.random.normal(ks[1], (32,), jnp.float32),
        "w3": 0.05 * jax.random.normal(ks[2], (32, 32, 3, 3, 3), jnp.float32),
        "b3": 0.05 * jax.random.normal(ks[3], (32,), jnp.float32),
        "wl": 0.05 * jax.random.normal(ks[4], (2, 32, 3, 3, 3), jnp.float32),
        "bl": 0.05 * jax.random.normal(ks[5], (2,), jnp.float32),
        "wfc": 0.1 * jax.random.normal(ks[6], (n_classes, fc_in), jnp.float32),
        "bfc": 0.05 * jax.random.normal(ks[7], (n_classes,), jnp.float32),
    }


def prep_params(raw):
    def prep_w_general(w):
        # (Cout, Cin, KD, KH, KW) -> (KD, KW*Cout, KH*Cin); [i_d, i_w*Cout+co, i_h*Cin+ci]
        cout, cin, kd, kh, kw_ = w.shape
        return jnp.transpose(w, (2, 4, 0, 3, 1)).reshape(kd, kw_ * cout, kh * cin)

    def prep_w_cin1(w):
        # (Cout, 1, KD, KH, KW) -> (1, KW*Cout, KH*KD); depth taps become pseudo-channels
        cout, cin, kd, kh, kw_ = w.shape
        assert cin == 1
        w = w.reshape(cout, kd, kh, kw_)                       # [co, i_d, i_h, i_w]
        return jnp.transpose(w, (3, 0, 2, 1)).reshape(1, kw_ * cout, kh * kd)

    return {
        "w5": prep_w_cin1(raw["w5"]), "b5": raw["b5"].reshape(-1, 1),
        "w3": prep_w_general(raw["w3"]), "b3": raw["b3"].reshape(-1, 1),
        "wl": raw["wl"], "bl": raw["bl"],                      # last conv stays raw (XLA)
        "wfc": raw["wfc"], "bfc": raw["bfc"],
    }


# --------------------------- plain-XLA reference ------------------------------
def reference_forward(x, raw):
    conv = functools.partial(
        lax.conv_general_dilated, window_strides=(1, 1, 1), padding="VALID",
        dimension_numbers=("NCDHW", "OIDHW", "NCDHW"),
        precision=lax.Precision.HIGHEST)

    def crelu(v, w, b):
        return jax.nn.relu(conv(v, w) + b.reshape(1, -1, 1, 1, 1))

    def pool(v):
        return lax.reduce_window(v, -jnp.inf, lax.max,
                                 (1, 1, 2, 2, 2), (1, 1, 2, 2, 2), "VALID")

    t = pool(crelu(x, raw["w5"], raw["b5"]))
    t = crelu(t, raw["w3"], raw["b3"])
    t = crelu(t, raw["w3"], raw["b3"])
    t = pool(crelu(t, raw["w3"], raw["b3"]))
    t = crelu(t, raw["wl"], raw["bl"])
    flat = t.reshape(t.shape[0], -1)
    return jnp.dot(flat, raw["wfc"].T, precision=lax.Precision.HIGHEST) + raw["bfc"]


if __name__ == "__main__":
    # Small-scale stand-in for the 120x144x120 volumes the original module implies
    # (its fc hard-codes in_features = 2*24*30*24); fc_in follows the same arithmetic.
    N, D, H, W = 2, 32, 36, 32
    n_classes = 2

    def _spatial(s):
        s = s - 4          # conv5x5, valid
        s = s // 2         # MaxPool3d(2, 2)
        s = s - 6          # conv3x3 applied three times
        s = s // 2         # MaxPool3d(2, 2)
        s = s - 2          # last_conv
        return s

    fc_in = 2 * _spatial(D) * _spatial(H) * _spatial(W)

    key = jax.random.PRNGKey(0)
    kx, kp = jax.random.split(key)
    x = jax.random.normal(kx, (N, 1, D, H, W), jnp.float32)
    raw = make_torch_weights(kp, n_classes, fc_in)
    params = prep_params(raw)

    logits = jax.jit(local_brief_net_forward)(x, params)
    jax.block_until_ready(logits)
    assert logits.shape == (N, n_classes)

    # numerical self-check against the plain-XLA reference
    ref = jax.jit(reference_forward)(x, raw)
    jax.block_until_ready(ref)
    err = float(jnp.max(jnp.abs(logits - ref)))
    assert err < 1e-2, f"mismatch vs XLA reference: max abs err = {err}"

    print("KERNEL_OK")
</pallas_src>

<mosaic_0001>
module attributes {stable_mosaic.version = 11 : i64} {
  func.func @_conv_relu_pool_kernel(%arg0: i32, %arg1: i32, %arg2: memref<1x28x180x32xf32, #tpu.memory_space<vmem>>, %arg3: memref<1x160x25xf32, #tpu.memory_space<vmem>>, %arg4: memref<32x1xf32, #tpu.memory_space<vmem>>, %arg5: memref<27x14xf32, #tpu.memory_space<vmem>>, %arg6: memref<1x1x512x14xf32, #tpu.memory_space<vmem>>) attributes {dimension_semantics = [#tpu.dimension_semantics<parallel>, #tpu.dimension_semantics<parallel>], iteration_bounds = array<i64: 2, 14>, scalar_prefetch = 0 : i64, scratch_operands = 0 : i64, tpu.core_type = #tpu.core_type<tc>, window_params = [{transform_indices = @transform_0, window_bounds = array<i64: 1, 28, 180, 32>}, {pipeline_mode = #tpu.pipeline_mode<synchronous>, transform_indices = @transform_1, window_bounds = array<i64: 1, 160, 25>}, {pipeline_mode = #tpu.pipeline_mode<synchronous>, transform_indices = @transform_2, window_bounds = array<i64: 32, 1>}, {pipeline_mode = #tpu.pipeline_mode<synchronous>, transform_indices = @transform_3, window_bounds = array<i64: 27, 14>}, {transform_indices = @transform_4, window_bounds = array<i64: 1, 1, 512, 14>}]} {
    %c2_i32 = arith.constant 2 : i32
    %0 = arith.muli %arg1, %c2_i32 : i32
    %c0 = arith.constant 0 : index
    %c0_0 = arith.constant 0 : index
    %1 = vector.load %arg4[%c0, %c0_0] : memref<32x1xf32, #tpu.memory_space<vmem>>, vector<32x1xf32>
    %c0_1 = arith.constant 0 : index
    %c0_2 = arith.constant 0 : index
    %2 = vector.load %arg5[%c0_1, %c0_2] : memref<27x14xf32, #tpu.memory_space<vmem>>, vector<27x14xf32>
    %c0_i32 = arith.constant 0 : i32
    %c16_i32 = arith.constant 16 : i32
    %3 = arith.addi %c0_i32, %c16_i32 : i32
    %c1_i32 = arith.constant 1 : i32
    scf.for %arg7 = %c0_i32 to %3 step %c1_i32  : i32 {
      %c1_i32_4 = arith.constant 1 : i32
      %4 = arith.muli %arg7, %c1_i32_4 : i32
      %c0_i32_5 = arith.constant 0 : i32
      %5 = arith.addi %c0_i32_5, %4 : i32
      %c2_i32_6 = arith.constant 2 : i32
      %6 = arith.muli %c2_i32_6, %5 : i32
      %c5_i32 = arith.constant 5 : i32
      %7 = arith.muli %6, %c5_i32 : i32
      %c0_i32_7 = arith.constant 0 : i32
      %8 = arith.addi %0, %c0_i32_7 : i32
      %c0_8 = arith.constant 0 : index
      %9 = arith.index_cast %8 : i32 to index
      %10 = arith.index_cast %7 : i32 to index
      %c0_9 = arith.constant 0 : index
      %11 = vector.load %arg2[%c0_8, %9, %10, %c0_9] : memref<1x28x180x32xf32, #tpu.memory_space<vmem>>, vector<1x1x25x32xf32>
      %12 = vector.shape_cast %11 : vector<1x1x25x32xf32> to vector<25x32xf32>
      %c0_10 = arith.constant 0 : index
      %c0_11 = arith.constant 0 : index
      %c0_12 = arith.constant 0 : index
      %13 = vector.load %arg3[%c0_10, %c0_11, %c0_12] : memref<1x160x25xf32, #tpu.memory_space<vmem>>, vector<1x160x25xf32>
      %14 = vector.shape_cast %13 : vector<1x160x25xf32> to vector<160x25xf32>
      %cst = arith.constant dense<0.000000e+00> : vector<160x32xf32>
      %15 = tpu.matmul %14, %12, %cst {dimension_numbers = #tpu.dot_dimension_numbers<[1], [0], [0], [1], [0, 0, 1, 1], [], []>} : vector<160x25xf32>, vector<25x32xf32>, vector<160x32xf32> -> vector<160x32xf32>
      %16 = vector.extract_strided_slice %15 {offsets = [0, 0], sizes = [32, 28], strides = [1, 1]} : vector<160x32xf32> to vector<32x28xf32>
      %17 = vector.extract_strided_slice %15 {offsets = [32, 1], sizes = [32, 28], strides = [1, 1]} : vector<160x32xf32> to vector<32x28xf32>
      %18 = arith.addf %16, %17 : vector<32x28xf32>
      %19 = vector.extract_strided_slice %15 {offsets = [64, 2], sizes = [32, 28], strides = [1, 1]} : vector<160x32xf32> to vector<32x28xf32>
      %20 = arith.addf %18, %19 : vector<32x28xf32>
      %21 = vector.extract_strided_slice %15 {offsets = [96, 3], sizes = [32, 28], strides = [1, 1]} : vector<160x32xf32> to vector<32x28xf32>
      %22 = arith.addf %20, %21 : vector<32x28xf32>
      %23 = vector.extract_strided_slice %15 {offsets = [128, 4], sizes = [32, 28], strides = [1, 1]} : vector<160x32xf32> to vector<32x28xf32>
      %24 = arith.addf %22, %23 : vector<32x28xf32>
      %c2_i32_13 = arith.constant 2 : i32
      %25 = arith.muli %c2_i32_13, %5 : i32
      %c1_i32_14 = arith.constant 1 : i32
      %26 = arith.addi %25, %c1_i32_14 : i32
      %c5_i32_15 = arith.constant 5 : i32
      %27 = arith.muli %26, %c5_i32_15 : i32
      %c0_i32_16 = arith.constant 0 : i32
      %28 = arith.addi %0, %c0_i32_16 : i32
      %c0_17 = arith.constant 0 : index
      %29 = arith.index_cast %28 : i32 to index
      %30 = arith.index_cast %27 : i32 to index
      %c0_18 = arith.constant 0 : index
      %31 = vector.load %arg2[%c0_17, %29, %30, %c0_18] : memref<1x28x180x32xf32, #tpu.memory_space<vmem>>, vector<1x1x25x32xf32>
      %32 = vector.shape_cast %31 : vector<1x1x25x32xf32> to vector<25x32xf32>
      %c0_19 = arith.constant 0 : index
      %c0_20 = arith.constant 0 : index
      %c0_21 = arith.constant 0 : index
      %33 = vector.load %arg3[%c0_19, %c0_20, %c0_21] : memref<1x160x25xf32, #tpu.memory_space<vmem>>, vector<1x160x25xf32>
      %34 = vector.shape_cast %33 : vector<1x160x25xf32> to vector<160x25xf32>
      %cst_22 = arith.constant dense<0.000000e+00> : vector<160x32xf32>
      %35 = tpu.matmul %34, %32, %cst_22 {dimension_numbers = #tpu.dot_dimension_numbers<[1], [0], [0], [1], [0, 0, 1, 1], [], []>} : vector<160x25xf32>, vector<25x32xf32>, vector<160x32xf32> -> vector<160x32xf32>
      %36 = vector.extract_strided_slice %35 {offsets = [0, 0], sizes = [32, 28], strides = [1, 1]} : vector<160x32xf32> to vector<32x28xf32>
      %37 = vector.extract_strided_slice %35 {offsets = [32, 1], sizes = [32, 28], strides = [1, 1]} : vector<160x32xf32> to vector<32x28xf32>
      %38 = arith.addf %36, %37 : vector<32x28xf32>
      %39 = vector.extract_strided_slice %35 {offsets = [64, 2], sizes = [32, 28], strides = [1, 1]} : vector<160x32xf32> to vector<32x28xf32>
      %40 = arith.addf %38, %39 : vector<32x28xf32>
      %41 = vector.extract_strided_slice %35 {offsets = [96, 3], sizes = [32, 28], strides = [1, 1]} : vector<160x32xf32> to vector<32x28xf32>
      %42 = arith.addf %40, %41 : vector<32x28xf32>
      %43 = vector.extract_strided_slice %35 {offsets = [128, 4], sizes = [32, 28], strides = [1, 1]} : vector<160x32xf32> to vector<32x28xf32>
      %44 = arith.addf %42, %43 : vector<32x28xf32>
      %45 = arith.maximumf %24, %44 : vector<32x28xf32>
      %c1_i32_23 = arith.constant 1 : i32
      %46 = arith.addi %0, %c1_i32_23 : i32
      %c2_i32_24 = arith.constant 2 : i32
      %47 = arith.muli %c2_i32_24, %5 : i32
      %c5_i32_25 = arith.constant 5 : i32
      %48 = arith.muli %47, %c5_i32_25 : i32
      %c0_i32_26 = arith.constant 0 : i32
      %49 = arith.addi %46, %c0_i32_26 : i32
      %c0_27 = arith.constant 0 : index
      %50 = arith.index_cast %49 : i32 to index
      %51 = arith.index_cast %48 : i32 to index
      %c0_28 = arith.constant 0 : index
      %52 = vector.load %arg2[%c0_27, %50, %51, %c0_28] : memref<1x28x180x32xf32, #tpu.memory_space<vmem>>, vector<1x1x25x32xf32>
      %53 = vector.shape_cast %52 : vector<1x1x25x32xf32> to vector<25x32xf32>
      %c0_29 = arith.constant 0 : index
      %c0_30 = arith.constant 0 : index
      %c0_31 = arith.constant 0 : index
      %54 = vector.load %arg3[%c0_29, %c0_30, %c0_31] : memref<1x160x25xf32, #tpu.memory_space<vmem>>, vector<1x160x25xf32>
      %55 = vector.shape_cast %54 : vector<1x160x25xf32> to vector<160x25xf32>
      %cst_32 = arith.constant dense<0.000000e+00> : vector<160x32xf32>
      %56 = tpu.matmul %55, %53, %cst_32 {dimension_numbers = #tpu.dot_dimension_numbers<[1], [0], [0], [1], [0, 0, 1, 1], [], []>} : vector<160x25xf32>, vector<25x32xf32>, vector<160x32xf32> -> vector<160x32xf32>
      %57 = vector.extract_strided_slice %56 {offsets = [0, 0], sizes = [32, 28], strides = [1, 1]} : vector<160x32xf32> to vector<32x28xf32>
      %58 = vector.extract_strided_slice %56 {offsets = [32, 1], sizes = [32, 28], strides = [1, 1]} : vector<160x32xf32> to vector<32x28xf32>
      %59 = arith.addf %57, %58 : vector<32x28xf32>
      %60 = vector.extract_strided_slice %56 {offsets = [64, 2], sizes = [32, 28], strides = [1, 1]} : vector<160x32xf32> to vector<32x28xf32>
      %61 = arith.addf %59, %60 : vector<32x28xf32>
      %62 = vector.extract_strided_slice %56 {offsets = [96, 3], sizes = [32, 28], strides = [1, 1]} : vector<160x32xf32> to vector<32x28xf32>
      %63 = arith.addf %61, %62 : vector<32x28xf32>
      %64 = vector.extract_strided_slice %56 {offsets = [128, 4], sizes = [32, 28], strides = [1, 1]} : vector<160x32xf32> to vector<32x28xf32>
      %65 = arith.addf %63, %64 : vector<32x28xf32>
      %66 = arith.maximumf %45, %65 : vector<32x28xf32>
      %c1_i32_33 = arith.constant 1 : i32
      %67 = arith.addi %0, %c1_i32_33 : i32
      %c2_i32_34 = arith.constant 2 : i32
      %68 = arith.muli %c2_i32_34, %5 : i32
      %c1_i32_35 = arith.constant 1 : i32
      %69 = arith.addi %68, %c1_i32_35 : i32
      %c5_i32_36 = arith.constant 5 : i32
      %70 = arith.muli %69, %c5_i32_36 : i32
      %c0_i32_37 = arith.constant 0 : i32
      %71 = arith.addi %67, %c0_i32_37 : i32
      %c0_38 = arith.constant 0 : index
      %72 = arith.index_cast %71 : i32 to index
      %73 = arith.index_cast %70 : i32 to index
      %c0_39 = arith.constant 0 : index
      %74 = vector.load %arg2[%c0_38, %72, %73, %c0_39] : memref<1x28x180x32xf32, #tpu.memory_space<vmem>>, vector<1x1x25x32xf32>
      %75 = vector.shape_cast %74 : vector<1x1x25x32xf32> to vector<25x32xf32>
      %c0_40 = arith.constant 0 : index
      %c0_41 = arith.constant 0 : index
      %c0_42 = arith.constant 0 : index
      %76 = vector.load %arg3[%c0_40, %c0_41, %c0_42] : memref<1x160x25xf32, #tpu.memory_space<vmem>>, vector<1x160x25xf32>
      %77 = vector.shape_cast %76 : vector<1x160x25xf32> to vector<160x25xf32>
      %cst_43 = arith.constant dense<0.000000e+00> : vector<160x32xf32>
      %78 = tpu.matmul %77, %75, %cst_43 {dimension_numbers = #tpu.dot_dimension_numbers<[1], [0], [0], [1], [0, 0, 1, 1], [], []>} : vector<160x25xf32>, vector<25x32xf32>, vector<160x32xf32> -> vector<160x32xf32>
      %79 = vector.extract_strided_slice %78 {offsets = [0, 0], sizes = [32, 28], strides = [1, 1]} : vector<160x32xf32> to vector<32x28xf32>
      %80 = vector.extract_strided_slice %78 {offsets = [32, 1], sizes = [32, 28], strides = [1, 1]} : vector<160x32xf32> to vector<32x28xf32>
      %81 = arith.addf %79, %80 : vector<32x28xf32>
      %82 = vector.extract_strided_slice %78 {offsets = [64, 2], sizes = [32, 28], strides = [1, 1]} : vector<160x32xf32> to vector<32x28xf32>
      %83 = arith.addf %81, %82 : vector<32x28xf32>
      %84 = vector.extract_strided_slice %78 {offsets = [96, 3], sizes = [32, 28], strides = [1, 1]} : vector<160x32xf32> to vector<32x28xf32>
      %85 = arith.addf %83, %84 : vector<32x28xf32>
      %86 = vector.extract_strided_slice %78 {offsets = [128, 4], sizes = [32, 28], strides = [1, 1]} : vector<160x32xf32> to vector<32x28xf32>
      %87 = arith.addf %85, %86 : vector<32x28xf32>
      %88 = arith.maximumf %66, %87 : vector<32x28xf32>
      %89 = vector.broadcast %1 : vector<32x1xf32> to vector<32x28xf32>
      %90 = arith.addf %88, %89 : vector<32x28xf32>
      %cst_44 = arith.constant 0.000000e+00 : f32
      %91 = vector.broadcast %cst_44 : f32 to vector<32x28xf32>
      %92 = arith.maximumf %90, %91 : vector<32x28xf32>
      %93 = vector.extract_strided_slice %92 {offsets = [0, 0], sizes = [32, 27], strides = [1, 1]} : vector<32x28xf32> to vector<32x27xf32>
      %94 = vector.extract_strided_slice %92 {offsets = [0, 1], sizes = [32, 27], strides = [1, 1]} : vector<32x28xf32> to vector<32x27xf32>
      %95 = arith.maximumf %93, %94 : vector<32x27xf32>
      %cst_45 = arith.constant dense<0.000000e+00> : vector<32x14xf32>
      %96 = tpu.matmul %95, %2, %cst_45 {dimension_numbers = #tpu.dot_dimension_numbers<[1], [0], [0], [1], [0, 0, 1, 1], [], []>} : vector<32x27xf32>, vector<27x14xf32>, vector<32x14xf32> -> vector<32x14xf32>
      %c32_i32 = arith.constant 32 : i32
      %97 = arith.muli %5, %c32_i32 : i32
      %98 = tpu.assume_multiple %97, 8 : i32
      %c0_46 = arith.constant 0 : index
      %c0_47 = arith.constant 0 : index
      %99 = arith.index_cast %98 : i32 to index
      %c0_48 = arith.constant 0 : index
      %100 = vector.load %arg6[%c0_46, %c0_47, %99, %c0_48] : memref<1x1x512x14xf32, #tpu.memory_space<vmem>>, vector<1x1x32x14xf32>
      %101 = vector.shape_cast %100 : vector<1x1x32x14xf32> to vector<32x14xf32>
      %102 = vector.shape_cast %96 : vector<32x14xf32> to vector<1x1x32x14xf32>
      tpu.vector_store %arg6[%c0_46, %c0_47, %99, %c0_48], %102 {strides = array<i32>} : memref<1x1x512x14xf32, #tpu.memory_space<vmem>>, vector<1x1x32x14xf32>,
    }
    %c16_i32_3 = arith.constant 16 : i32
    return
  }
  func.func @transform_0(%arg0: i32, %arg1: i32) -> (i32, i32, i32, i32) {
    %c0_i32 = arith.constant 0 : i32
    %c0_i32_0 = arith.constant 0 : i32
    %c0_i32_1 = arith.constant 0 : i32
    %c0_i32_2 = arith.constant 0 : i32
    return %arg0, %c0_i32, %c0_i32_0, %c0_i32_1 : i32, i32, i32, i32
  }
  func.func @transform_1(%arg0: i32, %arg1: i32) -> (i32, i32, i32) {
    %c0_i32 = arith.constant 0 : i32
    %c0_i32_0 = arith.constant 0 : i32
    %c0_i32_1 = arith.constant 0 : i32
    %c0_i32_2 = arith.constant 0 : i32
    return %c0_i32, %c0_i32_0, %c0_i32_1 : i32, i32, i32
  }
  func.func @transform_2(%arg0: i32, %arg1: i32) -> (i32, i32) {
    %c0_i32 = arith.constant 0 : i32
    %c0_i32_0 = arith.constant 0 : i32
    %c0_i32_1 = arith.constant 0 : i32
    return %c0_i32, %c0_i32_0 : i32, i32
  }
  func.func @transform_3(%arg0: i32, %arg1: i32) -> (i32, i32) {
    %c0_i32 = arith.constant 0 : i32
    %c0_i32_0 = arith.constant 0 : i32
    %c0_i32_1 = arith.constant 0 : i32
    return %c0_i32, %c0_i32_0 : i32, i32
  }
  func.func @transform_4(%arg0: i32, %arg1: i32) -> (i32, i32, i32, i32) {
    %c0_i32 = arith.constant 0 : i32
    %c0_i32_0 = arith.constant 0 : i32
    %c0_i32_1 = arith.constant 0 : i32
    return %arg0, %arg1, %c0_i32, %c0_i32_0 : i32, i32, i32, i32
  }
}

module attributes {stable_mosaic.version = 11 : i64} {
  func.func @_conv_relu_pool_kernel(%arg0: i32, %arg1: i32, %arg2: memref<1x14x512x14xf32, #tpu.memory_space<vmem>>, %arg3: memref<3x96x96xf32, #tpu.memory_space<vmem>>, %arg4: memref<32x1xf32, #tpu.memory_space<vmem>>, %arg5: memref<1x1x448x12xf32, #tpu.memory_space<vmem>>) attributes {dimension_semantics = [#tpu.dimension_semantics<parallel>, #tpu.dimension_semantics<parallel>], iteration_bounds = array<i64: 2, 12>, scalar_prefetch = 0 : i64, scratch_operands = 0 : i64, tpu.core_type = #tpu.core_type<tc>, window_params = [{transform_indices = @transform_0, window_bounds = array<i64: 1, 14, 512, 14>}, {pipeline_mode = #tpu.pipeline_mode<synchronous>, transform_indices = @transform_1, window_bounds = array<i64: 3, 96, 96>}, {pipeline_mode = #tpu.pipeline_mode<synchronous>, transform_indices = @transform_2, window_bounds = array<i64: 32, 1>}, {transform_indices = @transform_3, window_bounds = array<i64: 1, 1, 448, 12>}]} {
    %c1_i32 = arith.constant 1 : i32
    %0 = arith.muli %arg1, %c1_i32 : i32
    %c0 = arith.constant 0 : index
    %c0_0 = arith.constant 0 : index
    %1 = vector.load %arg4[%c0, %c0_0] : memref<32x1xf32, #tpu.memory_space<vmem>>, vector<32x1xf32>
    %c0_i32 = arith.constant 0 : i32
    %c14_i32 = arith.constant 14 : i32
    %2 = arith.addi %c0_i32, %c14_i32 : i32
    %c1_i32_1 = arith.constant 1 : i32
    scf.for %arg6 = %c0_i32 to %2 step %c1_i32_1  : i32 {
      %c1_i32_3 = arith.constant 1 : i32
      %3 = arith.muli %arg6, %c1_i32_3 : i32
      %c0_i32_4 = arith.constant 0 : i32
      %4 = arith.addi %c0_i32_4, %3 : i32
      %c32_i32 = arith.constant 32 : i32
      %5 = arith.muli %4, %c32_i32 : i32
      %6 = tpu.assume_multiple %5, 8 : i32
      %c0_i32_5 = arith.constant 0 : i32
      %7 = arith.addi %0, %c0_i32_5 : i32
      %c0_6 = arith.constant 0 : index
      %8 = arith.index_cast %7 : i32 to index
      %9 = arith.index_cast %6 : i32 to index
      %c0_7 = arith.constant 0 : index
      %10 = vector.load %arg2[%c0_6, %8, %9, %c0_7] : memref<1x14x512x14xf32, #tpu.memory_space<vmem>>, vector<1x1x96x14xf32>
      %11 = vector.shape_cast %10 : vector<1x1x96x14xf32> to vector<96x14xf32>
      %c0_8 = arith.constant 0 : index
      %c0_9 = arith.constant 0 : index
      %c0_10 = arith.constant 0 : index
      %12 = vector.load %arg3[%c0_8, %c0_9, %c0_10] : memref<3x96x96xf32, #tpu.memory_space<vmem>>, vector<1x96x96xf32>
      %13 = vector.shape_cast %12 : vector<1x96x96xf32> to vector<96x96xf32>
      %cst = arith.constant dense<0.000000e+00> : vector<96x14xf32>
      %14 = tpu.matmul %13, %11, %cst {dimension_numbers = #tpu.dot_dimension_numbers<[1], [0], [0], [1], [0, 0, 1, 1], [], []>} : vector<96x96xf32>, vector<96x14xf32>, vector<96x14xf32> -> vector<96x14xf32>
      %c1_i32_11 = arith.constant 1 : i32
      %15 = arith.addi %0, %c1_i32_11 : i32
      %c0_12 = arith.constant 0 : index
      %16 = arith.index_cast %15 : i32 to index
      %17 = arith.index_cast %6 : i32 to index
      %c0_13 = arith.constant 0 : index
      %18 = vector.load %arg2[%c0_12, %16, %17, %c0_13] : memref<1x14x512x14xf32, #tpu.memory_space<vmem>>, vector<1x1x96x14xf32>
      %19 = vector.shape_cast %18 : vector<1x1x96x14xf32> to vector<96x14xf32>
      %c1 = arith.constant 1 : index
      %c0_14 = arith.constant 0 : index
      %c0_15 = arith.constant 0 : index
      %20 = vector.load %arg3[%c1, %c0_14, %c0_15] : memref<3x96x96xf32, #tpu.memory_space<vmem>>, vector<1x96x96xf32>
      %21 = vector.shape_cast %20 : vector<1x96x96xf32> to vector<96x96xf32>
      %cst_16 = arith.constant dense<0.000000e+00> : vector<96x14xf32>
      %22 = tpu.matmul %21, %19, %cst_16 {dimension_numbers = #tpu.dot_dimension_numbers<[1], [0], [0], [1], [0, 0, 1, 1], [], []>} : vector<96x96xf32>, vector<96x14xf32>, vector<96x14xf32> -> vector<96x14xf32>
      %23 = arith.addf %14, %22 : vector<96x14xf32>
      %c2_i32 = arith.constant 2 : i32
      %24 = arith.addi %0, %c2_i32 : i32
      %c0_17 = arith.constant 0 : index
      %25 = arith.index_cast %24 : i32 to index
      %26 = arith.index_cast %6 : i32 to index
      %c0_18 = arith.constant 0 : index
      %27 = vector.load %arg2[%c0_17, %25, %26, %c0_18] : memref<1x14x512x14xf32, #tpu.memory_space<vmem>>, vector<1x1x96x14xf32>
      %28 = vector.shape_cast %27 : vector<1x1x96x14xf32> to vector<96x14xf32>
      %c2 = arith.constant 2 : index
      %c0_19 = arith.constant 0 : index
      %c0_20 = arith.constant 0 : index
      %29 = vector.load %arg3[%c2, %c0_19, %c0_20] : memref<3x96x96xf32, #tpu.memory_space<vmem>>, vector<1x96x96xf32>
      %30 = vector.shape_cast %29 : vector<1x96x96xf32> to vector<96x96xf32>
      %cst_21 = arith.constant dense<0.000000e+00> : vector<96x14xf32>
      %31 = tpu.matmul %30, %28, %cst_21 {dimension_numbers = #tpu.dot_dimension_numbers<[1], [0], [0], [1], [0, 0, 1, 1], [], []>} : vector<96x96xf32>, vector<96x14xf32>, vector<96x14xf32> -> vector<96x14xf32>
      %32 = arith.addf %23, %31 : vector<96x14xf32>
      %33 = vector.extract_strided_slice %32 {offsets = [0, 0], sizes = [32, 12], strides = [1, 1]} : vector<96x14xf32> to vector<32x12xf32>
      %34 = vector.extract_strided_slice %32 {offsets = [32, 1], sizes = [32, 12], strides = [1, 1]} : vector<96x14xf32> to vector<32x12xf32>
      %35 = arith.addf %33, %34 : vector<32x12xf32>
      %36 = vector.extract_strided_slice %32 {offsets = [64, 2], sizes = [32, 12], strides = [1, 1]} : vector<96x14xf32> to vector<32x12xf32>
      %37 = arith.addf %35, %36 : vector<32x12xf32>
      %38 = vector.broadcast %1 : vector<32x1xf32> to vector<32x12xf32>
      %39 = arith.addf %37, %38 : vector<32x12xf32>
      %cst_22 = arith.constant 0.000000e+00 : f32
      %40 = vector.broadcast %cst_22 : f32 to vector<32x12xf32>
      %41 = arith.maximumf %39, %40 : vector<32x12xf32>
      %c32_i32_23 = arith.constant 32 : i32
      %42 = arith.muli %4, %c32_i32_23 : i32
      %43 = tpu.assume_multiple %42, 8 : i32
      %c0_24 = arith.constant 0 : index
      %c0_25 = arith.constant 0 : index
      %44 = arith.index_cast %43 : i32 to index
      %c0_26 = arith.constant 0 : index
      %45 = vector.load %arg5[%c0_24, %c0_25, %44, %c0_26] : memref<1x1x448x12xf32, #tpu.memory_space<vmem>>, vector<1x1x32x12xf32>
      %46 = vector.shape_cast %45 : vector<1x1x32x12xf32> to vector<32x12xf32>
      %47 = vector.shape_cast %41 : vector<32x12xf32> to vector<1x1x32x12xf32>
      tpu.vector_store %arg5[%c0_24, %c0_25, %44, %c0_26], %47 {strides = array<i32>} : memref<1x1x448x12xf32, #tpu.memory_space<vmem>>, vector<1x1x32x12xf32>,
    }
    %c14_i32_2 = arith.constant 14 : i32
    return
  }
  func.func @transform_0(%arg0: i32, %arg1: i32) -> (i32, i32, i32, i32) {
    %c0_i32 = arith.constant 0 : i32
    %c0_i32_0 = arith.constant 0 : i32
    %c0_i32_1 = arith.constant 0 : i32
    %c0_i32_2 = arith.constant 0 : i32
    return %arg0, %c0_i32, %c0_i32_0, %c0_i32_1 : i32, i32, i32, i32
  }
  func.func @transform_1(%arg0: i32, %arg1: i32) -> (i32, i32, i32) {
    %c0_i32 = arith.constant 0 : i32
    %c0_i32_0 = arith.constant 0 : i32
    %c0_i32_1 = arith.constant 0 : i32
    %c0_i32_2 = arith.constant 0 : i32
    return %c0_i32, %c0_i32_0, %c0_i32_1 : i32, i32, i32
  }
  func.func @transform_2(%arg0: i32, %arg1: i32) -> (i32, i32) {
    %c0_i32 = arith.constant 0 : i32
    %c0_i32_0 = arith.constant 0 : i32
    %c0_i32_1 = arith.constant 0 : i32
    return %c0_i32, %c0_i32_0 : i32, i32
  }
  func.func @transform_3(%arg0: i32, %arg1: i32) -> (i32, i32, i32, i32) {
    %c0_i32 = arith.constant 0 : i32
    %c0_i32_0 = arith.constant 0 : i32
    %c0_i32_1 = arith.constant 0 : i32
    return %arg0, %arg1, %c0_i32, %c0_i32_0 : i32, i32, i32, i32
  }
}

module attributes {stable_mosaic.version = 11 : i64} {
  func.func @_conv_relu_pool_kernel(%arg0: i32, %arg1: i32, %arg2: memref<1x12x448x12xf32, #tpu.memory_space<vmem>>, %arg3: memref<3x96x96xf32, #tpu.memory_space<vmem>>, %arg4: memref<32x1xf32, #tpu.memory_space<vmem>>, %arg5: memref<1x1x384x10xf32, #tpu.memory_space<vmem>>) attributes {dimension_semantics = [#tpu.dimension_semantics<parallel>, #tpu.dimension_semantics<parallel>], iteration_bounds = array<i64: 2, 10>, scalar_prefetch = 0 : i64, scratch_operands = 0 : i64, tpu.core_type = #tpu.core_type<tc>, window_params = [{transform_indices = @transform_0, window_bounds = array<i64: 1, 12, 448, 12>}, {pipeline_mode = #tpu.pipeline_mode<synchronous>, transform_indices = @transform_1, window_bounds = array<i64: 3, 96, 96>}, {pipeline_mode = #tpu.pipeline_mode<synchronous>, transform_indices = @transform_2, window_bounds = array<i64: 32, 1>}, {transform_indices = @transform_3, window_bounds = array<i64: 1, 1, 384, 10>}]} {
    %c1_i32 = arith.constant 1 : i32
    %0 = arith.muli %arg1, %c1_i32 : i32
    %c0 = arith.constant 0 : index
    %c0_0 = arith.constant 0 : index
    %1 = vector.load %arg4[%c0, %c0_0] : memref<32x1xf32, #tpu.memory_space<vmem>>, vector<32x1xf32>
    %c0_i32 = arith.constant 0 : i32
    %c12_i32 = arith.constant 12 : i32
    %2 = arith.addi %c0_i32, %c12_i32 : i32
    %c1_i32_1 = arith.constant 1 : i32
    scf.for %arg6 = %c0_i32 to %2 step %c1_i32_1  : i32 {
      %c1_i32_3 = arith.constant 1 : i32
      %3 = arith.muli %arg6, %c1_i32_3 : i32
      %c0_i32_4 = arith.constant 0 : i32
      %4 = arith.addi %c0_i32_4, %3 : i32
      %c32_i32 = arith.constant 32 : i32
      %5 = arith.muli %4, %c32_i32 : i32
      %6 = tpu.assume_multiple %5, 8 : i32
      %c0_i32_5 = arith.constant 0 : i32
      %7 = arith.addi %0, %c0_i32_5 : i32
      %c0_6 = arith.constant 0 : index
      %8 = arith.index_cast %7 : i32 to index
      %9 = arith.index_cast %6 : i32 to index
      %c0_7 = arith.constant 0 : index
      %10 = vector.load %arg2[%c0_6, %8, %9, %c0_7] : memref<1x12x448x12xf32, #tpu.memory_space<vmem>>, vector<1x1x96x12xf32>
      %11 = vector.shape_cast %10 : vector<1x1x96x12xf32> to vector<96x12xf32>
      %c0_8 = arith.constant 0 : index
      %c0_9 = arith.constant 0 : index
      %c0_10 = arith.constant 0 : index
      %12 = vector.load %arg3[%c0_8, %c0_9, %c0_10] : memref<3x96x96xf32, #tpu.memory_space<vmem>>, vector<1x96x96xf32>
      %13 = vector.shape_cast %12 : vector<1x96x96xf32> to vector<96x96xf32>
      %cst = arith.constant dense<0.000000e+00> : vector<96x12xf32>
      %14 = tpu.matmul %13, %11, %cst {dimension_numbers = #tpu.dot_dimension_numbers<[1], [0], [0], [1], [0, 0, 1, 1], [], []>} : vector<96x96xf32>, vector<96x12xf32>, vector<96x12xf32> -> vector<96x12xf32>
      %c1_i32_11 = arith.constant 1 : i32
      %15 = arith.addi %0, %c1_i32_11 : i32
      %c0_12 = arith.constant 0 : index
      %16 = arith.index_cast %15 : i32 to index
      %17 = arith.index_cast %6 : i32 to index
      %c0_13 = arith.constant 0 : index
      %18 = vector.load %arg2[%c0_12, %16, %17, %c0_13] : memref<1x12x448x12xf32, #tpu.memory_space<vmem>>, vector<1x1x96x12xf32>
      %19 = vector.shape_cast %18 : vector<1x1x96x12xf32> to vector<96x12xf32>
      %c1 = arith.constant 1 : index
      %c0_14 = arith.constant 0 : index
      %c0_15 = arith.constant 0 : index
      %20 = vector.load %arg3[%c1, %c0_14, %c0_15] : memref<3x96x96xf32, #tpu.memory_space<vmem>>, vector<1x96x96xf32>
      %21 = vector.shape_cast %20 : vector<1x96x96xf32> to vector<96x96xf32>
      %cst_16 = arith.constant dense<0.000000e+00> : vector<96x12xf32>
      %22 = tpu.matmul %21, %19, %cst_16 {dimension_numbers = #tpu.dot_dimension_numbers<[1], [0], [0], [1], [0, 0, 1, 1], [], []>} : vector<96x96xf32>, vector<96x12xf32>, vector<96x12xf32> -> vector<96x12xf32>
      %23 = arith.addf %14, %22 : vector<96x12xf32>
      %c2_i32 = arith.constant 2 : i32
      %24 = arith.addi %0, %c2_i32 : i32
      %c0_17 = arith.constant 0 : index
      %25 = arith.index_cast %24 : i32 to index
      %26 = arith.index_cast %6 : i32 to index
      %c0_18 = arith.constant 0 : index
      %27 = vector.load %arg2[%c0_17, %25, %26, %c0_18] : memref<1x12x448x12xf32, #tpu.memory_space<vmem>>, vector<1x1x96x12xf32>
      %28 = vector.shape_cast %27 : vector<1x1x96x12xf32> to vector<96x12xf32>
      %c2 = arith.constant 2 : index
      %c0_19 = arith.constant 0 : index
      %c0_20 = arith.constant 0 : index
      %29 = vector.load %arg3[%c2, %c0_19, %c0_20] : memref<3x96x96xf32, #tpu.memory_space<vmem>>, vector<1x96x96xf32>
      %30 = vector.shape_cast %29 : vector<1x96x96xf32> to vector<96x96xf32>
      %cst_21 = arith.constant dense<0.000000e+00> : vector<96x12xf32>
      %31 = tpu.matmul %30, %28, %cst_21 {dimension_numbers = #tpu.dot_dimension_numbers<[1], [0], [0], [1], [0, 0, 1, 1], [], []>} : vector<96x96xf32>, vector<96x12xf32>, vector<96x12xf32> -> vector<96x12xf32>
      %32 = arith.addf %23, %31 : vector<96x12xf32>
      %33 = vector.extract_strided_slice %32 {offsets = [0, 0], sizes = [32, 10], strides = [1, 1]} : vector<96x12xf32> to vector<32x10xf32>
      %34 = vector.extract_strided_slice %32 {offsets = [32, 1], sizes = [32, 10], strides = [1, 1]} : vector<96x12xf32> to vector<32x10xf32>
      %35 = arith.addf %33, %34 : vector<32x10xf32>
      %36 = vector.extract_strided_slice %32 {offsets = [64, 2], sizes = [32, 10], strides = [1, 1]} : vector<96x12xf32> to vector<32x10xf32>
      %37 = arith.addf %35, %36 : vector<32x10xf32>
      %38 = vector.broadcast %1 : vector<32x1xf32> to vector<32x10xf32>
      %39 = arith.addf %37, %38 : vector<32x10xf32>
      %cst_22 = arith.constant 0.000000e+00 : f32
      %40 = vector.broadcast %cst_22 : f32 to vector<32x10xf32>
      %41 = arith.maximumf %39, %40 : vector<32x10xf32>
      %c32_i32_23 = arith.constant 32 : i32
      %42 = arith.muli %4, %c32_i32_23 : i32
      %43 = tpu.assume_multiple %42, 8 : i32
      %c0_24 = arith.constant 0 : index
      %c0_25 = arith.constant 0 : index
      %44 = arith.index_cast %43 : i32 to index
      %c0_26 = arith.constant 0 : index
      %45 = vector.load %arg5[%c0_24, %c0_25, %44, %c0_26] : memref<1x1x384x10xf32, #tpu.memory_space<vmem>>, vector<1x1x32x10xf32>
      %46 = vector.shape_cast %45 : vector<1x1x32x10xf32> to vector<32x10xf32>
      %47 = vector.shape_cast %41 : vector<32x10xf32> to vector<1x1x32x10xf32>
      tpu.vector_store %arg5[%c0_24, %c0_25, %44, %c0_26], %47 {strides = array<i32>} : memref<1x1x384x10xf32, #tpu.memory_space<vmem>>, vector<1x1x32x10xf32>,
    }
    %c12_i32_2 = arith.constant 12 : i32
    return
  }
  func.func @transform_0(%arg0: i32, %arg1: i32) -> (i32, i32, i32, i32) {
    %c0_i32 = arith.constant 0 : i32
    %c0_i32_0 = arith.constant 0 : i32
    %c0_i32_1 = arith.constant 0 : i32
    %c0_i32_2 = arith.constant 0 : i32
    return %arg0, %c0_i32, %c0_i32_0, %c0_i32_1 : i32, i32, i32, i32
  }
  func.func @transform_1(%arg0: i32, %arg1: i32) -> (i32, i32, i32) {
    %c0_i32 = arith.constant 0 : i32
    %c0_i32_0 = arith.constant 0 : i32
    %c0_i32_1 = arith.constant 0 : i32
    %c0_i32_2 = arith.constant 0 : i32
    return %c0_i32, %c0_i32_0, %c0_i32_1 : i32, i32, i32
  }
  func.func @transform_2(%arg0: i32, %arg1: i32) -> (i32, i32) {
    %c0_i32 = arith.constant 0 : i32
    %c0_i32_0 = arith.constant 0 : i32
    %c0_i32_1 = arith.constant 0 : i32
    return %c0_i32, %c0_i32_0 : i32, i32
  }
  func.func @transform_3(%arg0: i32, %arg1: i32) -> (i32, i32, i32, i32) {
    %c0_i32 = arith.constant 0 : i32
    %c0_i32_0 = arith.constant 0 : i32
    %c0_i32_1 = arith.constant 0 : i32
    return %arg0, %arg1, %c0_i32, %c0_i32_0 : i32, i32, i32, i32
  }
}

module attributes {stable_mosaic.version = 11 : i64} {
  func.func @_conv_relu_pool_kernel(%arg0: i32, %arg1: i32, %arg2: memref<1x10x384x10xf32, #tpu.memory_space<vmem>>, %arg3: memref<3x96x96xf32, #tpu.memory_space<vmem>>, %arg4: memref<32x1xf32, #tpu.memory_space<vmem>>, %arg5: memref<7x4xf32, #tpu.memory_space<vmem>>, %arg6: memref<1x1x160x4xf32, #tpu.memory_space<vmem>>) attributes {dimension_semantics = [#tpu.dimension_semantics<parallel>, #tpu.dimension_semantics<parallel>], iteration_bounds = array<i64: 2, 4>, scalar_prefetch = 0 : i64, scratch_operands = 0 : i64, tpu.core_type = #tpu.core_type<tc>, window_params = [{transform_indices = @transform_0, window_bounds = array<i64: 1, 10, 384, 10>}, {pipeline_mode = #tpu.pipeline_mode<synchronous>, transform_indices = @transform_1, window_bounds = array<i64: 3, 96, 96>}, {pipeline_mode = #tpu.pipeline_mode<synchronous>, transform_indices = @transform_2, window_bounds = array<i64: 32, 1>}, {pipeline_mode = #tpu.pipeline_mode<synchronous>, transform_indices = @transform_3, window_bounds = array<i64: 7, 4>}, {transform_indices = @transform_4, window_bounds = array<i64: 1, 1, 160, 4>}]} {
    %c2_i32 = arith.constant 2 : i32
    %0 = arith.muli %arg1, %c2_i32 : i32
    %c0 = arith.constant 0 : index
    %c0_0 = arith.constant 0 : index
    %1 = vector.load %arg4[%c0, %c0_0] : memref<32x1xf32, #tpu.memory_space<vmem>>, vector<32x1xf32>
    %c0_1 = arith.constant 0 : index
    %c0_2 = arith.constant 0 : index
    %2 = vector.load %arg5[%c0_1, %c0_2] : memref<7x4xf32, #tpu.memory_space<vmem>>, vector<7x4xf32>
    %c0_i32 = arith.constant 0 : i32
    %c5_i32 = arith.constant 5 : i32
    %3 = arith.addi %c0_i32, %c5_i32 : i32
    %c1_i32 = arith.constant 1 : i32
    scf.for %arg7 = %c0_i32 to %3 step %c1_i32  : i32 {
      %c1_i32_4 = arith.constant 1 : i32
      %4 = arith.muli %arg7, %c1_i32_4 : i32
      %c0_i32_5 = arith.constant 0 : i32
      %5 = arith.addi %c0_i32_5, %4 : i32
      %c2_i32_6 = arith.constant 2 : i32
      %6 = arith.muli %c2_i32_6, %5 : i32
      %c32_i32 = arith.constant 32 : i32
      %7 = arith.muli %6, %c32_i32 : i32
      %8 = tpu.assume_multiple %7, 8 : i32
      %c0_i32_7 = arith.constant 0 : i32
      %9 = arith.addi %0, %c0_i32_7 : i32
      %c0_8 = arith.constant 0 : index
      %10 = arith.index_cast %9 : i32 to index
      %11 = arith.index_cast %8 : i32 to index
      %c0_9 = arith.constant 0 : index
      %12 = vector.load %arg2[%c0_8, %10, %11, %c0_9] : memref<1x10x384x10xf32, #tpu.memory_space<vmem>>, vector<1x1x96x10xf32>
      %13 = vector.shape_cast %12 : vector<1x1x96x10xf32> to vector<96x10xf32>
      %c0_10 = arith.constant 0 : index
      %c0_11 = arith.constant 0 : index
      %c0_12 = arith.constant 0 : index
      %14 = vector.load %arg3[%c0_10, %c0_11, %c0_12] : memref<3x96x96xf32, #tpu.memory_space<vmem>>, vector<1x96x96xf32>
      %15 = vector.shape_cast %14 : vector<1x96x96xf32> to vector<96x96xf32>
      %cst = arith.constant dense<0.000000e+00> : vector<96x10xf32>
      %16 = tpu.matmul %15, %13, %cst {dimension_numbers = #tpu.dot_dimension_numbers<[1], [0], [0], [1], [0, 0, 1, 1], [], []>} : vector<96x96xf32>, vector<96x10xf32>, vector<96x10xf32> -> vector<96x10xf32>
      %c1_i32_13 = arith.constant 1 : i32
      %17 = arith.addi %0, %c1_i32_13 : i32
      %c0_14 = arith.constant 0 : index
      %18 = arith.index_cast %17 : i32 to index
      %19 = arith.index_cast %8 : i32 to index
      %c0_15 = arith.constant 0 : index
      %20 = vector.load %arg2[%c0_14, %18, %19, %c0_15] : memref<1x10x384x10xf32, #tpu.memory_space<vmem>>, vector<1x1x96x10xf32>
      %21 = vector.shape_cast %20 : vector<1x1x96x10xf32> to vector<96x10xf32>
      %c1 = arith.constant 1 : index
      %c0_16 = arith.constant 0 : index
      %c0_17 = arith.constant 0 : index
      %22 = vector.load %arg3[%c1, %c0_16, %c0_17] : memref<3x96x96xf32, #tpu.memory_space<vmem>>, vector<1x96x96xf32>
      %23 = vector.shape_cast %22 : vector<1x96x96xf32> to vector<96x96xf32>
      %cst_18 = arith.constant dense<0.000000e+00> : vector<96x10xf32>
      %24 = tpu.matmul %23, %21, %cst_18 {dimension_numbers = #tpu.dot_dimension_numbers<[1], [0], [0], [1], [0, 0, 1, 1], [], []>} : vector<96x96xf32>, vector<96x10xf32>, vector<96x10xf32> -> vector<96x10xf32>
      %25 = arith.addf %16, %24 : vector<96x10xf32>
      %c2_i32_19 = arith.constant 2 : i32
      %26 = arith.addi %0, %c2_i32_19 : i32
      %c0_20 = arith.constant 0 : index
      %27 = arith.index_cast %26 : i32 to index
      %28 = arith.index_cast %8 : i32 to index
      %c0_21 = arith.constant 0 : index
      %29 = vector.load %arg2[%c0_20, %27, %28, %c0_21] : memref<1x10x384x10xf32, #tpu.memory_space<vmem>>, vector<1x1x96x10xf32>
      %30 = vector.shape_cast %29 : vector<1x1x96x10xf32> to vector<96x10xf32>
      %c2 = arith.constant 2 : index
      %c0_22 = arith.constant 0 : index
      %c0_23 = arith.constant 0 : index
      %31 = vector.load %arg3[%c2, %c0_22, %c0_23] : memref<3x96x96xf32, #tpu.memory_space<vmem>>, vector<1x96x96xf32>
      %32 = vector.shape_cast %31 : vector<1x96x96xf32> to vector<96x96xf32>
      %cst_24 = arith.constant dense<0.000000e+00> : vector<96x10xf32>
      %33 = tpu.matmul %32, %30, %cst_24 {dimension_numbers = #tpu.dot_dimension_numbers<[1], [0], [0], [1], [0, 0, 1, 1], [], []>} : vector<96x96xf32>, vector<96x10xf32>, vector<96x10xf32> -> vector<96x10xf32>
      %34 = arith.addf %25, %33 : vector<96x10xf32>
      %35 = vector.extract_strided_slice %34 {offsets = [0, 0], sizes = [32, 8], strides = [1, 1]} : vector<96x10xf32> to vector<32x8xf32>
      %36 = vector.extract_strided_slice %34 {offsets = [32, 1], sizes = [32, 8], strides = [1, 1]} : vector<96x10xf32> to vector<32x8xf32>
      %37 = arith.addf %35, %36 : vector<32x8xf32>
      %38 = vector.extract_strided_slice %34 {offsets = [64, 2], sizes = [32, 8], strides = [1, 1]} : vector<96x10xf32> to vector<32x8xf32>
      %39 = arith.addf %37, %38 : vector<32x8xf32>
      %c2_i32_25 = arith.constant 2 : i32
      %40 = arith.muli %c2_i32_25, %5 : i32
      %c1_i32_26 = arith.constant 1 : i32
      %41 = arith.addi %40, %c1_i32_26 : i32
      %c32_i32_27 = arith.constant 32 : i32
      %42 = arith.muli %41, %c32_i32_27 : i32
      %43 = tpu.assume_multiple %42, 8 : i32
      %c0_i32_28 = arith.constant 0 : i32
      %44 = arith.addi %0, %c0_i32_28 : i32
      %c0_29 = arith.constant 0 : index
      %45 = arith.index_cast %44 : i32 to index
      %46 = arith.index_cast %43 : i32 to index
      %c0_30 = arith.constant 0 : index
      %47 = vector.load %arg2[%c0_29, %45, %46, %c0_30] : memref<1x10x384x10xf32, #tpu.memory_space<vmem>>, vector<1x1x96x10xf32>
      %48 = vector.shape_cast %47 : vector<1x1x96x10xf32> to vector<96x10xf32>
      %c0_31 = arith.constant 0 : index
      %c0_32 = arith.constant 0 : index
      %c0_33 = arith.constant 0 : index
      %49 = vector.load %arg3[%c0_31, %c0_32, %c0_33] : memref<3x96x96xf32, #tpu.memory_space<vmem>>, vector<1x96x96xf32>
      %50 = vector.shape_cast %49 : vector<1x96x96xf32> to vector<96x96xf32>
      %cst_34 = arith.constant dense<0.000000e+00> : vector<96x10xf32>
      %51 = tpu.matmul %50, %48, %cst_34 {dimension_numbers = #tpu.dot_dimension_numbers<[1], [0], [0], [1], [0, 0, 1, 1], [], []>} : vector<96x96xf32>, vector<96x10xf32>, vector<96x10xf32> -> vector<96x10xf32>
      %c1_i32_35 = arith.constant 1 : i32
      %52 = arith.addi %0, %c1_i32_35 : i32
      %c0_36 = arith.constant 0 : index
      %53 = arith.index_cast %52 : i32 to index
      %54 = arith.index_cast %43 : i32 to index
      %c0_37 = arith.constant 0 : index
      %55 = vector.load %arg2[%c0_36, %53, %54, %c0_37] : memref<1x10x384x10xf32, #tpu.memory_space<vmem>>, vector<1x1x96x10xf32>
      %56 = vector.shape_cast %55 : vector<1x1x96x10xf32> to vector<96x10xf32>
      %c1_38 = arith.constant 1 : index
      %c0_39 = arith.constant 0 : index
      %c0_40 = arith.constant 0 : index
      %57 = vector.load %arg3[%c1_38, %c0_39, %c0_40] : memref<3x96x96xf32, #tpu.memory_space<vmem>>, vector<1x96x96xf32>
      %58 = vector.shape_cast %57 : vector<1x96x96xf32> to vector<96x96xf32>
      %cst_41 = arith.constant dense<0.000000e+00> : vector<96x10xf32>
      %59 = tpu.matmul %58, %56, %cst_41 {dimension_numbers = #tpu.dot_dimension_numbers<[1], [0], [0], [1], [0, 0, 1, 1], [], []>} : vector<96x96xf32>, vector<96x10xf32>, vector<96x10xf32> -> vector<96x10xf32>
      %60 = arith.addf %51, %59 : vector<96x10xf32>
      %c2_i32_42 = arith.constant 2 : i32
      %61 = arith.addi %0, %c2_i32_42 : i32
      %c0_43 = arith.constant 0 : index
      %62 = arith.index_cast %61 : i32 to index
      %63 = arith.index_cast %43 : i32 to index
      %c0_44 = arith.constant 0 : index
      %64 = vector.load %arg2[%c0_43, %62, %63, %c0_44] : memref<1x10x384x10xf32, #tpu.memory_space<vmem>>, vector<1x1x96x10xf32>
      %65 = vector.shape_cast %64 : vector<1x1x96x10xf32> to vector<96x10xf32>
      %c2_45 = arith.constant 2 : index
      %c0_46 = arith.constant 0 : index
      %c0_47 = arith.constant 0 : index
      %66 = vector.load %arg3[%c2_45, %c0_46, %c0_47] : memref<3x96x96xf32, #tpu.memory_space<vmem>>, vector<1x96x96xf32>
      %67 = vector.shape_cast %66 : vector<1x96x96xf32> to vector<96x96xf32>
      %cst_48 = arith.constant dense<0.000000e+00> : vector<96x10xf32>
      %68 = tpu.matmul %67, %65, %cst_48 {dimension_numbers = #tpu.dot_dimension_numbers<[1], [0], [0], [1], [0, 0, 1, 1], [], []>} : vector<96x96xf32>, vector<96x10xf32>, vector<96x10xf32> -> vector<96x10xf32>
      %69 = arith.addf %60, %68 : vector<96x10xf32>
      %70 = vector.extract_strided_slice %69 {offsets = [0, 0], sizes = [32, 8], strides = [1, 1]} : vector<96x10xf32> to vector<32x8xf32>
      %71 = vector.extract_strided_slice %69 {offsets = [32, 1], sizes = [32, 8], strides = [1, 1]} : vector<96x10xf32> to vector<32x8xf32>
      %72 = arith.addf %70, %71 : vector<32x8xf32>
      %73 = vector.extract_strided_slice %69 {offsets = [64, 2], sizes = [32, 8], strides = [1, 1]} : vector<96x10xf32> to vector<32x8xf32>
      %74 = arith.addf %72, %73 : vector<32x8xf32>
      %75 = arith.maximumf %39, %74 : vector<32x8xf32>
      %c1_i32_49 = arith.constant 1 : i32
      %76 = arith.addi %0, %c1_i32_49 : i32
      %c2_i32_50 = arith.constant 2 : i32
      %77 = arith.muli %c2_i32_50, %5 : i32
      %c32_i32_51 = arith.constant 32 : i32
      %78 = arith.muli %77, %c32_i32_51 : i32
      %79 = tpu.assume_multiple %78, 8 : i32
      %c0_i32_52 = arith.constant 0 : i32
      %80 = arith.addi %76, %c0_i32_52 : i32
      %c0_53 = arith.constant 0 : index
      %81 = arith.index_cast %80 : i32 to index
      %82 = arith.index_cast %79 : i32 to index
      %c0_54 = arith.constant 0 : index
      %83 = vector.load %arg2[%c0_53, %81, %82, %c0_54] : memref<1x10x384x10xf32, #tpu.memory_space<vmem>>, vector<1x1x96x10xf32>
      %84 = vector.shape_cast %83 : vector<1x1x96x10xf32> to vector<96x10xf32>
      %c0_55 = arith.constant 0 : index
      %c0_56 = arith.constant 0 : index
      %c0_57 = arith.constant 0 : index
      %85 = vector.load %arg3[%c0_55, %c0_56, %c0_57] : memref<3x96x96xf32, #tpu.memory_space<vmem>>, vector<1x96x96xf32>
      %86 = vector.shape_cast %85 : vector<1x96x96xf32> to vector<96x96xf32>
      %cst_58 = arith.constant dense<0.000000e+00> : vector<96x10xf32>
      %87 = tpu.matmul %86, %84, %cst_58 {dimension_numbers = #tpu.dot_dimension_numbers<[1], [0], [0], [1], [0, 0, 1, 1], [], []>} : vector<96x96xf32>, vector<96x10xf32>, vector<96x10xf32> -> vector<96x10xf32>
      %c1_i32_59 = arith.constant 1 : i32
      %88 = arith.addi %76, %c1_i32_59 : i32
      %c0_60 = arith.constant 0 : index
      %89 = arith.index_cast %88 : i32 to index
      %90 = arith.index_cast %79 : i32 to index
      %c0_61 = arith.constant 0 : index
      %91 = vector.load %arg2[%c0_60, %89, %90, %c0_61] : memref<1x10x384x10xf32, #tpu.memory_space<vmem>>, vector<1x1x96x10xf32>
      %92 = vector.shape_cast %91 : vector<1x1x96x10xf32> to vector<96x10xf32>
      %c1_62 = arith.constant 1 : index
      %c0_63 = arith.constant 0 : index
      %c0_64 = arith.constant 0 : index
      %93 = vector.load %arg3[%c1_62, %c0_63, %c0_64] : memref<3x96x96xf32, #tpu.memory_space<vmem>>, vector<1x96x96xf32>
      %94 = vector.shape_cast %93 : vector<1x96x96xf32> to vector<96x96xf32>
      %cst_65 = arith.constant dense<0.000000e+00> : vector<96x10xf32>
      %95 = tpu.matmul %94, %92, %cst_65 {dimension_numbers = #tpu.dot_dimension_numbers<[1], [0], [0], [1], [0, 0, 1, 1], [], []>} : vector<96x96xf32>, vector<96x10xf32>, vector<96x10xf32> -> vector<96x10xf32>
      %96 = arith.addf %87, %95 : vector<96x10xf32>
      %c2_i32_66 = arith.constant 2 : i32
      %97 = arith.addi %76, %c2_i32_66 : i32
      %c0_67 = arith.constant 0 : index
      %98 = arith.index_cast %97 : i32 to index
      %99 = arith.index_cast %79 : i32 to index
      %c0_68 = arith.constant 0 : index
      %100 = vector.load %arg2[%c0_67, %98, %99, %c0_68] : memref<1x10x384x10xf32, #tpu.memory_space<vmem>>, vector<1x1x96x10xf32>
      %101 = vector.shape_cast %100 : vector<1x1x96x10xf32> to vector<96x10xf32>
      %c2_69 = arith.constant 2 : index
      %c0_70 = arith.constant 0 : index
      %c0_71 = arith.constant 0 : index
      %102 = vector.load %arg3[%c2_69, %c0_70, %c0_71] : memref<3x96x96xf32, #tpu.memory_space<vmem>>, vector<1x96x96xf32>
      %103 = vector.shape_cast %102 : vector<1x96x96xf32> to vector<96x96xf32>
      %cst_72 = arith.constant dense<0.000000e+00> : vector<96x10xf32>
      %104 = tpu.matmul %103, %101, %cst_72 {dimension_numbers = #tpu.dot_dimension_numbers<[1], [0], [0], [1], [0, 0, 1, 1], [], []>} : vector<96x96xf32>, vector<96x10xf32>, vector<96x10xf32> -> vector<96x10xf32>
      %105 = arith.addf %96, %104 : vector<96x10xf32>
      %106 = vector.extract_strided_slice %105 {offsets = [0, 0], sizes = [32, 8], strides = [1, 1]} : vector<96x10xf32> to vector<32x8xf32>
      %107 = vector.extract_strided_slice %105 {offsets = [32, 1], sizes = [32, 8], strides = [1, 1]} : vector<96x10xf32> to vector<32x8xf32>
      %108 = arith.addf %106, %107 : vector<32x8xf32>
      %109 = vector.extract_strided_slice %105 {offsets = [64, 2], sizes = [32, 8], strides = [1, 1]} : vector<96x10xf32> to vector<32x8xf32>
      %110 = arith.addf %108, %109 : vector<32x8xf32>
      %111 = arith.maximumf %75, %110 : vector<32x8xf32>
      %c1_i32_73 = arith.constant 1 : i32
      %112 = arith.addi %0, %c1_i32_73 : i32
      %c2_i32_74 = arith.constant 2 : i32
      %113 = arith.muli %c2_i32_74, %5 : i32
      %c1_i32_75 = arith.constant 1 : i32
      %114 = arith.addi %113, %c1_i32_75 : i32
      %c32_i32_76 = arith.constant 32 : i32
      %115 = arith.muli %114, %c32_i32_76 : i32
      %116 = tpu.assume_multiple %115, 8 : i32
      %c0_i32_77 = arith.constant 0 : i32
      %117 = arith.addi %112, %c0_i32_77 : i32
      %c0_78 = arith.constant 0 : index
      %118 = arith.index_cast %117 : i32 to index
      %119 = arith.index_cast %116 : i32 to index
      %c0_79 = arith.constant 0 : index
      %120 = vector.load %arg2[%c0_78, %118, %119, %c0_79] : memref<1x10x384x10xf32, #tpu.memory_space<vmem>>, vector<1x1x96x10xf32>
      %121 = vector.shape_cast %120 : vector<1x1x96x10xf32> to vector<96x10xf32>
      %c0_80 = arith.constant 0 : index
      %c0_81 = arith.constant 0 : index
      %c0_82 = arith.constant 0 : index
      %122 = vector.load %arg3[%c0_80, %c0_81, %c0_82] : memref<3x96x96xf32, #tpu.memory_space<vmem>>, vector<1x96x96xf32>
      %123 = vector.shape_cast %122 : vector<1x96x96xf32> to vector<96x96xf32>
      %cst_83 = arith.constant dense<0.000000e+00> : vector<96x10xf32>
      %124 = tpu.matmul %123, %121, %cst_83 {dimension_numbers = #tpu.dot_dimension_numbers<[1], [0], [0], [1], [0, 0, 1, 1], [], []>} : vector<96x96xf32>, vector<96x10xf32>, vector<96x10xf32> -> vector<96x10xf32>
      %c1_i32_84 = arith.constant 1 : i32
      %125 = arith.addi %112, %c1_i32_84 : i32
      %c0_85 = arith.constant 0 : index
      %126 = arith.index_cast %125 : i32 to index
      %127 = arith.index_cast %116 : i32 to index
      %c0_86 = arith.constant 0 : index
      %128 = vector.load %arg2[%c0_85, %126, %127, %c0_86] : memref<1x10x384x10xf32, #tpu.memory_space<vmem>>, vector<1x1x96x10xf32>
      %129 = vector.shape_cast %128 : vector<1x1x96x10xf32> to vector<96x10xf32>
      %c1_87 = arith.constant 1 : index
      %c0_88 = arith.constant 0 : index
      %c0_89 = arith.constant 0 : index
      %130 = vector.load %arg3[%c1_87, %c0_88, %c0_89] : memref<3x96x96xf32, #tpu.memory_space<vmem>>, vector<1x96x96xf32>
      %131 = vector.shape_cast %130 : vector<1x96x96xf32> to vector<96x96xf32>
      %cst_90 = arith.constant dense<0.000000e+00> : vector<96x10xf32>
      %132 = tpu.matmul %131, %129, %cst_90 {dimension_numbers = #tpu.dot_dimension_numbers<[1], [0], [0], [1], [0, 0, 1, 1], [], []>} : vector<96x96xf32>, vector<96x10xf32>, vector<96x10xf32> -> vector<96x10xf32>
      %133 = arith.addf %124, %132 : vector<96x10xf32>
      %c2_i32_91 = arith.constant 2 : i32
      %134 = arith.addi %112, %c2_i32_91 : i32
      %c0_92 = arith.constant 0 : index
      %135 = arith.index_cast %134 : i32 to index
      %136 = arith.index_cast %116 : i32 to index
      %c0_93 = arith.constant 0 : index
      %137 = vector.load %arg2[%c0_92, %135, %136, %c0_93] : memref<1x10x384x10xf32, #tpu.memory_space<vmem>>, vector<1x1x96x10xf32>
      %138 = vector.shape_cast %137 : vector<1x1x96x10xf32> to vector<96x10xf32>
      %c2_94 = arith.constant 2 : index
      %c0_95 = arith.constant 0 : index
      %c0_96 = arith.constant 0 : index
      %139 = vector.load %arg3[%c2_94, %c0_95, %c0_96] : memref<3x96x96xf32, #tpu.memory_space<vmem>>, vector<1x96x96xf32>
      %140 = vector.shape_cast %139 : vector<1x96x96xf32> to vector<96x96xf32>
      %cst_97 = arith.constant dense<0.000000e+00> : vector<96x10xf32>
      %141 = tpu.matmul %140, %138, %cst_97 {dimension_numbers = #tpu.dot_dimension_numbers<[1], [0], [0], [1], [0, 0, 1, 1], [], []>} : vector<96x96xf32>, vector<96x10xf32>, vector<96x10xf32> -> vector<96x10xf32>
      %142 = arith.addf %133, %141 : vector<96x10xf32>
      %143 = vector.extract_strided_slice %142 {offsets = [0, 0], sizes = [32, 8], strides = [1, 1]} : vector<96x10xf32> to vector<32x8xf32>
      %144 = vector.extract_strided_slice %142 {offsets = [32, 1], sizes = [32, 8], strides = [1, 1]} : vector<96x10xf32> to vector<32x8xf32>
      %145 = arith.addf %143, %144 : vector<32x8xf32>
      %146 = vector.extract_strided_slice %142 {offsets = [64, 2], sizes = [32, 8], strides = [1, 1]} : vector<96x10xf32> to vector<32x8xf32>
      %147 = arith.addf %145, %146 : vector<32x8xf32>
      %148 = arith.maximumf %111, %147 : vector<32x8xf32>
      %149 = vector.broadcast %1 : vector<32x1xf32> to vector<32x8xf32>
      %150 = arith.addf %148, %149 : vector<32x8xf32>
      %cst_98 = arith.constant 0.000000e+00 : f32
      %151 = vector.broadcast %cst_98 : f32 to vector<32x8xf32>
      %152 = arith.maximumf %150, %151 : vector<32x8xf32>
      %153 = vector.extract_strided_slice %152 {offsets = [0, 0], sizes = [32, 7], strides = [1, 1]} : vector<32x8xf32> to vector<32x7xf32>
      %154 = vector.extract_strided_slice %152 {offsets = [0, 1], sizes = [32, 7], strides = [1, 1]} : vector<32x8xf32> to vector<32x7xf32>
      %155 = arith.maximumf %153, %154 : vector<32x7xf32>
      %cst_99 = arith.constant dense<0.000000e+00> : vector<32x4xf32>
      %156 = tpu.matmul %155, %2, %cst_99 {dimension_numbers = #tpu.dot_dimension_numbers<[1], [0], [0], [1], [0, 0, 1, 1], [], []>} : vector<32x7xf32>, vector<7x4xf32>, vector<32x4xf32> -> vector<32x4xf32>
      %c32_i32_100 = arith.constant 32 : i32
      %157 = arith.muli %5, %c32_i32_100 : i32
      %158 = tpu.assume_multiple %157, 8 : i32
      %c0_101 = arith.constant 0 : index
      %c0_102 = arith.constant 0 : index
      %159 = arith.index_cast %158 : i32 to index
      %c0_103 = arith.constant 0 : index
      %160 = vector.load %arg6[%c0_101, %c0_102, %159, %c0_103] : memref<1x1x160x4xf32, #tpu.memory_space<vmem>>, vector<1x1x32x4xf32>
      %161 = vector.shape_cast %160 : vector<1x1x32x4xf32> to vector<32x4xf32>
      %162 = vector.shape_cast %156 : vector<32x4xf32> to vector<1x1x32x4xf32>
      tpu.vector_store %arg6[%c0_101, %c0_102, %159, %c0_103], %162 {strides = array<i32>} : memref<1x1x160x4xf32, #tpu.memory_space<vmem>>, vector<1x1x32x4xf32>,
    }
    %c5_i32_3 = arith.constant 5 : i32
    return
  }
  func.func @transform_0(%arg0: i32, %arg1: i32) -> (i32, i32, i32, i32) {
    %c0_i32 = arith.constant 0 : i32
    %c0_i32_0 = arith.constant 0 : i32
    %c0_i32_1 = arith.constant 0 : i32
    %c0_i32_2 = arith.constant 0 : i32
    return %arg0, %c0_i32, %c0_i32_0, %c0_i32_1 : i32, i32, i32, i32
  }
  func.func @transform_1(%arg0: i32, %arg1: i32) -> (i32, i32, i32) {
    %c0_i32 = arith.constant 0 : i32
    %c0_i32_0 = arith.constant 0 : i32
    %c0_i32_1 = arith.constant 0 : i32
    %c0_i32_2 = arith.constant 0 : i32
    return %c0_i32, %c0_i32_0, %c0_i32_1 : i32, i32, i32
  }
  func.func @transform_2(%arg0: i32, %arg1: i32) -> (i32, i32) {
    %c0_i32 = arith.constant 0 : i32
    %c0_i32_0 = arith.constant 0 : i32
    %c0_i32_1 = arith.constant 0 : i32
    return %c0_i32, %c0_i32_0 : i32, i32
  }
  func.func @transform_3(%arg0: i32, %arg1: i32) -> (i32, i32) {
    %c0_i32 = arith.constant 0 : i32
    %c0_i32_0 = arith.constant 0 : i32
    %c0_i32_1 = arith.constant 0 : i32
    return %c0_i32, %c0_i32_0 : i32, i32
  }
  func.func @transform_4(%arg0: i32, %arg1: i32) -> (i32, i32, i32, i32) {
    %c0_i32 = arith.constant 0 : i32
    %c0_i32_0 = arith.constant 0 : i32
    %c0_i32_1 = arith.constant 0 : i32
    return %arg0, %arg1, %c0_i32, %c0_i32_0 : i32, i32, i32, i32
  }
}

</mosaic_0001>

<llo_original>
// kernel: local_brief_net_forward.5
$region0: #{local_brief_net_forward.5}
  #allocation0 [shape = 'u32[]', space=smem, size = 0x4, offset = 0x4, fixed_abs, tag = 'smem constant byte address 0x4 - core index']
  #allocation1 [shape = 'u32[144,128]{1,0:T(1,128)}', space=vmem, size = 0x12000, scoped, tag = 'internal scratch']
  %s0 = inlined_call_operand.vmem [shape: f32[2,14,512,14], index: 0, kind: input, shape index: {}]
  %s1 = inlined_call_operand.vmem [shape: f32[3,96,96], index: 1, kind: input, shape index: {}]
  %s2 = inlined_call_operand.vmem [shape: f32[32,1], index: 2, kind: input, shape index: {}]
  %s3 = inlined_call_operand.vmem [shape: f32[2,12,448,12], index: 3, kind: output, shape index: {}]
  %s4 = sld [smem:[#allocation0]]
  $region52: #{local_brief_net_forward.5} parent=0
    _
  %s6 = ssub.s32 1, %s4
  %s7 = scalar_select 0, %s6, %s4
  loop: start=0, step=1, limit=26
  $region2: #{local_brief_net_forward.5} parent=0 // loop_pre_header
    _
  $region3: #{local_brief_net_forward.5} parent=0 // loop_header
    %s9 = sphi 0, %s13
    %p10 = scmp.ge.s32.totalorder %s9, 26
    %s16 = sphi 0, %s28
    %s17 = sphi 0, %s24
    %s18 = sphi 0, %s16
    %s19 = sphi 0, %s17
    %s20 = sphi 0, %s18
    %s21 = sphi 0, %s19
    %s31 = sphi 0, %s33
    %s34 = sphi 0, %s31
    %s35 = sphi 0, %s34
    %s51 = sphi 0, %s35
    %s55 = sphi 0, %s55
    %s57 = sphi 0, %s55
    %s58 = sphi 0, %s57
    %s72 = sphi 0, %s58
    %s76 = sphi 0, %s76
    %s78 = sphi 0, %s76
    %s79 = sphi 0, %s78
    %s93 = sphi 0, %s79
    %s101 = sphi 0, %s103
    %s104 = sphi 0, %s101
    %s105 = sphi 0, %s104
    %s121 = sphi 0, %s105
  $region4: #{local_brief_net_forward.5} parent=0 // loop_header_branch
    %12 = sbr.rel (%p10) target = $region8
  $region5: #{local_brief_net_forward.5} parent=0 // loop_body
    %s14 = ssub.s32 %s9, 1
    %s15 = ssub.s32 %s9, 2
    %s22 = sadd.s32 1, %s17
    %p23 = scmp.ge.s32.totalorder %s22, 12
    %s24 = scalar_select %p23, 0, %s22
    %s25 = sadd.s32 1, %s16
    %s26 = scalar_select %p23, %s25, %s16
    %p27 = scmp.ge.s32.totalorder %s26, 2
    %s28 = scalar_select %p27, 0, %s26
    %s29 = ssub.s32 %s16, %s28
    %p30 = scmp.eq.s32.totalorder %s29, 0
    %s32 = sadd.s32 %s31, 1
    %s33 = scalar_select %p30, %s31, %s32
    %p36 = pneg %p30
    %p37 = scmp.eq.s32.totalorder %s9, 23
    %p38 = por %p36, %p37
    %p39 = scmp.ne.s32.totalorder %s31, %s34
    %p40 = scmp.eq.s32.totalorder %s9, 0
    %p41 = por %p39, %p40
    %p42 = scmp.ne.s32.totalorder %s31, %s34
    %p43 = scmp.eq.s32.totalorder %s14, 23
    %p44 = por %p42, %p43
    %p45 = scmp.ne.s32.totalorder %s34, %s35
    %p46 = scmp.eq.s32.totalorder %s14, 0
    %p47 = por %p45, %p46
    %p48 = scmp.ne.s32.totalorder %s34, %s35
    %p49 = scmp.eq.s32.totalorder %s15, 23
    %p50 = por %p48, %p49
    %p52 = scmp.ne.s32.totalorder %s35, %s51
    %p53 = scmp.eq.s32.totalorder %s15, 0
    %p54 = por %p52, %p53
    %s56 = sadd.s32 %s55, 1
    %p59 = scmp.eq.s32.totalorder %s9, 23
    %p60 = scmp.ne.s32.totalorder %s55, %s57
    %p61 = scmp.eq.s32.totalorder %s9, 0
    %p62 = por %p60, %p61
    %p63 = scmp.ne.s32.totalorder %s55, %s57
    %p64 = scmp.eq.s32.totalorder %s14, 23
    %p65 = por %p63, %p64
    %p66 = scmp.ne.s32.totalorder %s57, %s58
    %p67 = scmp.eq.s32.totalorder %s14, 0
    %p68 = por %p66, %p67
    %p69 = scmp.ne.s32.totalorder %s57, %s58
    %p70 = scmp.eq.s32.totalorder %s15, 23
    %p71 = por %p69, %p70
    %p73 = scmp.ne.s32.totalorder %s58, %s72
    %p74 = scmp.eq.s32.totalorder %s15, 0
    %p75 = por %p73, %p74
    %s77 = sadd.s32 %s76, 1
    %p80 = scmp.eq.s32.totalorder %s9, 23
    %p81 = scmp.ne.s32.totalorder %s76, %s78
    %p82 = scmp.eq.s32.totalorder %s9, 0
    %p83 = por %p81, %p82
    %p84 = scmp.ne.s32.totalorder %s76, %s78
    %p85 = scmp.eq.s32.totalorder %s14, 23
    %p86 = por %p84, %p85
    %p87 = scmp.ne.s32.totalorder %s78, %s79
    %p88 = scmp.eq.s32.totalorder %s14, 0
    %p89 = por %p87, %p88
    %p90 = scmp.ne.s32.totalorder %s78, %s79
    %p91 = scmp.eq.s32.totalorder %s15, 23
    %p92 = por %p90, %p91
    %p94 = scmp.ne.s32.totalorder %s79, %s93
    %p95 = scmp.eq.s32.totalorder %s15, 0
    %p96 = por %p94, %p95
    %s97 = ssub.s32 %s16, %s28
    %s98 = ssub.s32 %s17, %s24
    %s99 = sor.u32 %s97, %s98
    %p100 = scmp.eq.s32.totalorder %s99, 0
    %s102 = sadd.s32 %s101, 1
    %s103 = scalar_select %p100, %s101, %s102
    %p106 = pneg %p100
    %p107 = scmp.eq.s32.totalorder %s9, 23
    %p108 = por %p106, %p107
    %p109 = scmp.ne.s32.totalorder %s101, %s104
    %p110 = scmp.eq.s32.totalorder %s9, 0
    %p111 = por %p109, %p110
    %p112 = scmp.ne.s32.totalorder %s101, %s104
    %p113 = scmp.eq.s32.totalorder %s14, 23
    %p114 = por %p112, %p113
    %p115 = scmp.ne.s32.totalorder %s104, %s105
    %p116 = scmp.eq.s32.totalorder %s14, 0
    %p117 = por %p115, %p116
    %p118 = scmp.ne.s32.totalorder %s104, %s105
    %p119 = scmp.eq.s32.totalorder %s15, 23
    %p120 = por %p118, %p119
    %p122 = scmp.ne.s32.totalorder %s105, %s121
    %p123 = scmp.eq.s32.totalorder %s15, 0
    %p124 = por %p122, %p123
    %p125 = scmp.le.s32.totalorder 1, %s9
    %p126 = scmp.lt.s32.totalorder %s9, 25
    %p127 = pnand %p125, %p126
    %p128 = pneg %p127
    // Predicated region
    $region9: #{local_brief_net_forward.5} parent=5 // pred_check
      _
    $region10: #{local_brief_net_forward.5} parent=5 // pred_check_branch
      %130 = sbr.rel (%p127) target = $region12
    $region11: #{local_brief_net_forward.5} parent=5 // pred_region
      %s131 = ssub.s32 %s9, 1
      // Predicated region
      $region13: #{local_brief_net_forward.5} parent=11 // pred_check
        %p132 = pneg %p68
      $region14: #{local_brief_net_forward.5} parent=11 // pred_check_branch
        %134 = sbr.rel (%p132) target = $region16
      $region15: #{local_brief_net_forward.5} parent=11 // pred_region
        _
      $region16: #{local_brief_net_forward.5} parent=11 // pred_fallthru
        _
      // Predicated region
      $region17: #{local_brief_net_forward.5} parent=11 // pred_check
        %p135 = pneg %p89
      $region18: #{local_brief_net_forward.5} parent=11 // pred_check_branch
        %137 = sbr.rel (%p135) target = $region20
      $region19: #{local_brief_net_forward.5} parent=11 // pred_region
        _
      $region20: #{local_brief_net_forward.5} parent=11 // pred_fallthru
        _
    $region12: #{local_brief_net_forward.5} parent=5 // pred_fallthru
      _
    %p138 = scmp.lt.s32.totalorder %s9, 24
    // Predicated region
    $region21: #{local_brief_net_forward.5} parent=5 // pred_check
      %p139 = pneg %p138
    $region22: #{local_brief_net_forward.5} parent=5 // pred_check_branch
      %141 = sbr.rel (%p139) target = $region24
    $region23: #{local_brief_net_forward.5} parent=5 // pred_region
      // Predicated region
      $region25: #{local_brief_net_forward.5} parent=23 // pred_check
        %p142 = pneg %p41
      $region26: #{local_brief_net_forward.5} parent=23 // pred_check_branch
        %144 = sbr.rel (%p142) target = $region28
      $region27: #{local_brief_net_forward.5} parent=23 // pred_region
        %p145 = scmp.lt.s32.totalorder %s16, 1
        %s146 = scalar_select %p145, %s16, 1
        %s147 = smul.addr %s146, 896
        %s148 = smul.addr %s147, 8
        %s149 = scalar_lea.vmem %s0, %s148
      $region28: #{local_brief_net_forward.5} parent=23 // pred_fallthru
        _
    $region24: #{local_brief_net_forward.5} parent=5 // pred_fallthru
      _
    %p150 = scmp.le.s32.totalorder 1, %s9
    %p151 = scmp.lt.s32.totalorder %s9, 25
    %p152 = pnand %p150, %p151
    %p153 = pneg %p152
    // Predicated region
    $region29: #{local_brief_net_forward.5} parent=5 // pred_check
      _
    $region30: #{local_brief_net_forward.5} parent=5 // pred_check_branch
      %155 = sbr.rel (%p152) target = $region32
    $region31: #{local_brief_net_forward.5} parent=5 // pred_region
      %s156 = ssub.s32 %s9, 1
      %p157 = scmp.lt.s32.totalorder %s18, 1
      %s158 = scalar_select %p157, %s18, 1
      %s159 = smul.addr %s158, 896
      %s160 = smul.addr %s159, 8
      %s161 = scalar_lea.vmem %s0, %s160
      %p162 = pneg %p47
      %p163 = pneg %p44
      %p164 = pneg %p68
      %p165 = pneg %p65
      %p166 = pneg %p89
      %p167 = pneg %p86
      %p168 = pneg %p117
      %p169 = pneg %p114
      %p170 = scmp.lt.s32.totalorder %s18, 1
      %s171 = scalar_select %p170, %s18, 1
      %p172 = scmp.lt.s32.totalorder %s19, 11
      %s173 = scalar_select %p172, %s19, 11
      %s174 = smul.addr %s173, 56
      %s175 = smul.addr %s171, 672
      %s176 = sadd.s32 %s174, %s175
      %s177 = smul.addr %s176, 8
      %s178 = scalar_lea.vmem %s3, %s177
      %p179 = scmp.lt.s32.totalorder %s18, 1
      %s180 = scalar_select %p179, %s18, 1
      %s181 = smul.addr %s180, 896
      %s182 = smul.addr %s181, 8
      %s183 = scalar_lea.vmem %s0, %s182
      %p184 = scmp.lt.s32.totalorder %s18, 1
      %s185 = scalar_select %p184, %s18, 1
      %p186 = scmp.lt.s32.totalorder %s19, 11
      %s187 = scalar_select %p186, %s19, 11
      %s188 = smul.addr %s187, 56
      %s189 = smul.addr %s185, 672
      %s190 = sadd.s32 %s188, %s189
      %s191 = smul.addr %s190, 8
      %s192 = scalar_lea.vmem %s3, %s191
      %v193 = vld [vmem:[%s2] sm:$0xff]
      %v194 = vld [vmem:[%s2 + $0x8] sm:$0xff]
      %v195 = vld [vmem:[%s2 + $0x10] sm:$0xff]
      %v196 = vld [vmem:[%s2 + $0x18] sm:$0xff]
      loop: start=0, step=1, limit=14
      $region33: #{local_brief_net_forward.5} parent=31 // loop_pre_header
        _
      $region34: #{local_brief_net_forward.5} parent=31 // loop_header
        %s198 = sphi 0, %s202
        %p199 = scmp.ge.s32.totalorder %s198, 14
      $region35: #{local_brief_net_forward.5} parent=31 // loop_header_branch
        %201 = sbr.rel (%p199) target = $region39
      $region36: #{local_brief_net_forward.5} parent=31 // loop_body
        %s203 = smul.u32 %s198, 32
        %s204 = smul.u32 %s19, 512
        %s205 = sadd.s32 %s203, %s204
        %s206 = scalar_lea.vmem %s183, %s205
        %v207 = vld [vmem:[%s206] sm:$0xff]
        %v208 = vld [vmem:[%s206 + $0x8] sm:$0xff]
        %v209 = vld [vmem:[%s206 + $0x10] sm:$0xff]
        %v210 = vld [vmem:[%s206 + $0x18] sm:$0xff]
        %v211 = vld [vmem:[%s206 + $0x20] sm:$0xff]
        %v212 = vld [vmem:[%s206 + $0x28] sm:$0xff]
        %v213 = vld [vmem:[%s206 + $0x30] sm:$0xff]
        %v214 = vld [vmem:[%s206 + $0x38] sm:$0xff]
        %v215 = vld [vmem:[%s206 + $0x40] sm:$0xff]
        %v216 = vld [vmem:[%s206 + $0x48] sm:$0xff]
        %v217 = vld [vmem:[%s206 + $0x50] sm:$0xff]
        %v218 = vld [vmem:[%s206 + $0x58] sm:$0xff]
        %v219 = vld [vmem:[%s1] sm:$0xff]
        %v220 = vld [vmem:[%s1 + $0x8] sm:$0xff]
        %v221 = vld [vmem:[%s1 + $0x10] sm:$0xff]
        %v222 = vld [vmem:[%s1 + $0x18] sm:$0xff]
        %v223 = vld [vmem:[%s1 + $0x20] sm:$0xff]
        %v224 = vld [vmem:[%s1 + $0x28] sm:$0xff]
        %v225 = vld [vmem:[%s1 + $0x30] sm:$0xff]
        %v226 = vld [vmem:[%s1 + $0x38] sm:$0xff]
        %v227 = vld [vmem:[%s1 + $0x40] sm:$0xff]
        %v228 = vld [vmem:[%s1 + $0x48] sm:$0xff]
        %v229 = vld [vmem:[%s1 + $0x50] sm:$0xff]
        %v230 = vld [vmem:[%s1 + $0x58] sm:$0xff]
        %s231 = sadd.s32 %s19, 1
        %s232 = smul.u32 %s231, 512
        %s233 = sadd.s32 %s203, %s232
        %s234 = scalar_lea.vmem %s183, %s233
        %v235 = vld [vmem:[%s234] sm:$0xff]
        %v236 = vld [vmem:[%s234 + $0x8] sm:$0xff]
        %v237 = vld [vmem:[%s234 + $0x10] sm:$0xff]
        %v238 = vld [vmem:[%s234 + $0x18] sm:$0xff]
        %v239 = vld [vmem:[%s234 + $0x20] sm:$0xff]
        %v240 = vld [vmem:[%s234 + $0x28] sm:$0xff]
        %v241 = vld [vmem:[%s234 + $0x30] sm:$0xff]
        %v242 = vld [vmem:[%s234 + $0x38] sm:$0xff]
        %v243 = vld [vmem:[%s234 + $0x40] sm:$0xff]
        %v244 = vld [vmem:[%s234 + $0x48] sm:$0xff]
        %v245 = vld [vmem:[%s234 + $0x50] sm:$0xff]
        %v246 = vld [vmem:[%s234 + $0x58] sm:$0xff]
        %s247 = scalar_lea.vmem %s1, 96
        %v248 = vld [vmem:[%s247] sm:$0xff]
        %v249 = vld [vmem:[%s247 + $0x8] sm:$0xff]
        %v250 = vld [vmem:[%s247 + $0x10] sm:$0xff]
        %v251 = vld [vmem:[%s247 + $0x18] sm:$0xff]
        %v252 = vld [vmem:[%s247 + $0x20] sm:$0xff]
        %v253 = vld [vmem:[%s247 + $0x28] sm:$0xff]
        %v254 = vld [vmem:[%s247 + $0x30] sm:$0xff]
        %v255 = vld [vmem:[%s247 + $0x38] sm:$0xff]
        %v256 = vld [vmem:[%s247 + $0x40] sm:$0xff]
        %v257 = vld [vmem:[%s247 + $0x48] sm:$0xff]
        %v258 = vld [vmem:[%s247 + $0x50] sm:$0xff]
        %v259 = vld [vmem:[%s247 + $0x58] sm:$0xff]
        %vm260 = vcmask 785408
        %v262 = vsel %vm260, %v248, 0
        %v265 = vsel %vm260, %v249, 0
        %v268 = vsel %vm260, %v250, 0
        %v271 = vsel %vm260, %v251, 0
        %v274 = vsel %vm260, %v252, 0
        %v277 = vsel %vm260, %v253, 0
        %v280 = vsel %vm260, %v254, 0
        %v283 = vsel %vm260, %v255, 0
        %v286 = vsel %vm260, %v256, 0
        %v289 = vsel %vm260, %v257, 0
        %v292 = vsel %vm260, %v258, 0
        %v295 = vsel %vm260, %v259, 0
        %297 = vmatprep.subr.mxu0 0.0
        %298 = vmatpush1.msra.mxu0 %v235
        %299 = vmatprep.subr.mxu0 0.0
        %300 = vmatpush1.msra.mxu0 %v236
        %301 = vmatprep.subr.mxu0 0.0
        %302 = vmatpush1.msra.mxu0 %v237
        %303 = vmatprep.subr.mxu0 0.0
        %304 = vmatpush1.msra.mxu0 %v238
        %305 = vmatprep.subr.mxu0 0.0
        %306 = vmatpush1.msra.mxu0 %v239
        %307 = vmatprep.subr.mxu0 0.0
        %308 = vmatpush1.msra.mxu0 %v240
        %309 = vmatprep.subr.mxu0 0.0
        %310 = vmatpush1.msra.mxu0 %v241
        %311 = vmatprep.subr.mxu0 0.0
        %312 = vmatpush1.msra.mxu0 %v242
        %313 = vmatprep.subr.mxu0 0.0
        %314 = vmatpush1.msra.mxu0 %v243
        %315 = vmatprep.subr.mxu0 0.0
        %316 = vmatpush1.msra.mxu0 %v244
        %317 = vmatprep.subr.mxu0 0.0
        %318 = vmatpush1.msra.mxu0 %v245
        %319 = vmatprep.subr.mxu0 0.0
        %320 = vmatpush1.msra.mxu0 %v246
        %321 = vmatprep.subr.mxu0 0.0
        %322 = vmatpush1.msra.mxu0 0.0
        %323 = vmatprep.subr.mxu0 0.0
        %324 = vmatpush1.msra.mxu0 0.0
        %325 = vmatprep.subr.mxu0 0.0
        %326 = vmatpush1.msra.mxu0 0.0
        %327 = vmatprep.subr.mxu0 0.0
        %328 = vmatpush1.msra.mxu0 0.0
        %329 = vmatprep.subr.mxu0 0.0
        %330 = vmatpush1.msra.mxu0 0.0
        %331 = vmatprep.subr.mxu0 0.0
        %332 = vmatpush1.msra.mxu0 0.0
        %333 = vmatprep.subr.mxu0 0.0
        %334 = vmatpush1.msra.mxu0 0.0
        %335 = vmatprep.subr.mxu0 0.0
        %336 = vmatpush1.msra.mxu0 0.0
        %337 = vmatprep.subr.mxu0 0.0
        %338 = vmatpush1.msra.mxu0 0.0
        %339 = vmatprep.subr.mxu0 0.0
        %340 = vmatpush1.msra.mxu0 0.0
        %341 = vmatprep.subr.mxu0 0.0
        %342 = vmatpush1.msra.mxu0 0.0
        %343 = vmatprep.subr.mxu0 0.0
        %344 = vmatpush1.msra.mxu0 0.0
        %345 = vmatprep.subr.mxu0 0.0
        %346 = vmatpush1.msra.mxu0 0.0
        %347 = vmatprep.subr.mxu0 0.0
        %348 = vmatpush1.msra.mxu0 0.0
        %349 = vmatprep.subr.mxu0 0.0
        %350 = vmatpush1.msra.mxu0 0.0
        %351 = vmatprep.subr.mxu0 0.0
        %352 = vmatpush1.msra.mxu0 0.0
        %353 = vmatprep.subr.mxu0 0.0
        %354 = vmatpush1.msra.mxu0 0.0
        %355 = vmatprep.subr.mxu0 0.0
        %356 = vmatpush1.msra.mxu0 0.0
        %357 = vmatprep.subr.mxu0 0.0
        %358 = vmatpush1.msra.mxu0 0.0
        %359 = vmatprep.subr.mxu0 0.0
        %360 = vmatpush1.msra.mxu0 0.0
        %361 = vmatprep.mubr.f32.mxu0 0.0
        %362 = vmatmul.mubr.f32.gmra.mrb[0].mxu0 %v262
        %v363 = vpop.f32.mrb[0].mxu0
        %v364 = vadd.f32 0.0, %v363
        %v365 = vpop.f32.mrb[0].mxu0
        %366 = vmatprep.mubr.f32.mxu0 0.0
        %367 = vmatmul.mubr.f32.gmra.mrb[0].mxu0 %v265
        %v368 = vpop.f32.mrb[0].mxu0
        %v369 = vadd.f32 0.0, %v368
        %v370 = vpop.f32.mrb[0].mxu0
        %371 = vmatprep.mubr.f32.mxu0 0.0
        %372 = vmatmul.mubr.f32.gmra.mrb[0].mxu0 %v268
        %v373 = vpop.f32.mrb[0].mxu0
        %v374 = vadd.f32 0.0, %v373
        %v375 = vpop.f32.mrb[0].mxu0
        %376 = vmatprep.mubr.f32.mxu0 0.0
        %377 = vmatmul.mubr.f32.gmra.mrb[0].mxu0 %v271
        %v378 = vpop.f32.mrb[0].mxu0
        %v379 = vadd.f32 0.0, %v378
        %v380 = vpop.f32.mrb[0].mxu0
        %381 = vmatprep.mubr.f32.mxu0 0.0
        %382 = vmatmul.mubr.f32.gmra.mrb[0].mxu0 %v274
        %v383 = vpop.f32.mrb[0].mxu0
        %v384 = vadd.f32 0.0, %v383
        %v385 = vpop.f32.mrb[0].mxu0
        %386 = vmatprep.mubr.f32.mxu0 0.0
        %387 = vmatmul.mubr.f32.gmra.mrb[0].mxu0 %v277
        %v388 = vpop.f32.mrb[0].mxu0
        %v389 = vadd.f32 0.0, %v388
        %v390 = vpop.f32.mrb[0].mxu0
        %391 = vmatprep.mubr.f32.mxu0 0.0
        %392 = vmatmul.mubr.f32.gmra.mrb[0].mxu0 %v280
        %v393 = vpop.f32.mrb[0].mxu0
        %v394 = vadd.f32 0.0, %v393
        %v395 = vpop.f32.mrb[0].mxu0
        %396 = vmatprep.mubr.f32.mxu0 0.0
        %397 = vmatmul.mubr.f32.gmra.mrb[0].mxu0 %v283
        %v398 = vpop.f32.mrb[0].mxu0
        %v399 = vadd.f32 0.0, %v398
        %v400 = vpop.f32.mrb[0].mxu0
        %401 = vmatprep.mubr.f32.mxu0 0.0
        %402 = vmatmul.mubr.f32.gmra.mrb[0].mxu0 %v286
        %v403 = vpop.f32.mrb[0].mxu0
        %v404 = vadd.f32 0.0, %v403
        %v405 = vpop.f32.mrb[0].mxu0
        %406 = vmatprep.mubr.f32.mxu0 0.0
        %407 = vmatmul.mubr.f32.gmra.mrb[0].mxu0 %v289
        %v408 = vpop.f32.mrb[0].mxu0
        %v409 = vadd.f32 0.0, %v408
        %v410 = vpop.f32.mrb[0].mxu0
        %411 = vmatprep.mubr.f32.mxu0 0.0
        %412 = vmatmul.mubr.f32.gmra.mrb[0].mxu0 %v292
        %v413 = vpop.f32.mrb[0].mxu0
        %v414 = vadd.f32 0.0, %v413
        %v415 = vpop.f32.mrb[0].mxu0
        %416 = vmatprep.mubr.f32.mxu0 0.0
        %417 = vmatmul.mubr.f32.gmra.mrb[0].mxu0 %v295
        %v418 = vpop.f32.mrb[0].mxu0
        %v419 = vadd.f32 0.0, %v418
        %v420 = vpop.f32.mrb[0].mxu0
        %421 = vdwg.mxu0
        %v423 = vsel %vm260, %v219, 0
        %v426 = vsel %vm260, %v220, 0
        %v429 = vsel %vm260, %v221, 0
        %v432 = vsel %vm260, %v222, 0
        %v435 = vsel %vm260, %v223, 0
        %v438 = vsel %vm260, %v224, 0
        %v441 = vsel %vm260, %v225, 0
        %v444 = vsel %vm260, %v226, 0
        %v447 = vsel %vm260, %v227, 0
        %v450 = vsel %vm260, %v228, 0
        %v453 = vsel %vm260, %v229, 0
        %v456 = vsel %vm260, %v230, 0
        %458 = vmatprep.subr.mxu0 0.0
        %459 = vmatpush1.msra.mxu0 %v207
        %460 = vmatprep.subr.mxu0 0.0
        %461 = vmatpush1.msra.mxu0 %v208
        %462 = vmatprep.subr.mxu0 0.0
        %463 = vmatpush1.msra.mxu0 %v209
        %464 = vmatprep.subr.mxu0 0.0
        %465 = vmatpush1.msra.mxu0 %v210
        %466 = vmatprep.subr.mxu0 0.0
        %467 = vmatpush1.msra.mxu0 %v211
        %468 = vmatprep.subr.mxu0 0.0
        %469 = vmatpush1.msra.mxu0 %v212
        %470 = vmatprep.subr.mxu0 0.0
        %471 = vmatpush1.msra.mxu0 %v213
        %472 = vmatprep.subr.mxu0 0.0
        %473 = vmatpush1.msra.mxu0 %v214
        %474 = vmatprep.subr.mxu0 0.0
        %475 = vmatpush1.msra.mxu0 %v215
        %476 = vmatprep.subr.mxu0 0.0
        %477 = vmatpush1.msra.mxu0 %v216
        %478 = vmatprep.subr.mxu0 0.0
        %479 = vmatpush1.msra.mxu0 %v217
        %480 = vmatprep.subr.mxu0 0.0
        %481 = vmatpush1.msra.mxu0 %v218
        %482 = vmatprep.subr.mxu0 0.0
        %483 = vmatpush1.msra.mxu0 0.0
        %484 = vmatprep.subr.mxu0 0.0
        %485 = vmatpush1.msra.mxu0 0.0
        %486 = vmatprep.subr.mxu0 0.0
        %487 = vmatpush1.msra.mxu0 0.0
        %488 = vmatprep.subr.mxu0 0.0
        %489 = vmatpush1.msra.mxu0 0.0
        %490 = vmatprep.subr.mxu0 0.0
        %491 = vmatpush1.msra.mxu0 0.0
        %492 = vmatprep.subr.mxu0 0.0
        %493 = vmatpush1.msra.mxu0 0.0
        %494 = vmatprep.subr.mxu0 0.0
        %495 = vmatpush1.msra.mxu0 0.0
        %496 = vmatprep.subr.mxu0 0.0
        %497 = vmatpush1.msra.mxu0 0.0
        %498 = vmatprep.subr.mxu0 0.0
        %499 = vmatpush1.msra.mxu0 0.0
        %500 = vmatprep.subr.mxu0 0.0
        %501 = vmatpush1.msra.mxu0 0.0
        %502 = vmatprep.subr.mxu0 0.0
        %503 = vmatpush1.msra.mxu0 0.0
        %504 = vmatprep.subr.mxu0 0.0
        %505 = vmatpush1.msra.mxu0 0.0
        %506 = vmatprep.subr.mxu0 0.0
        %507 = vmatpush1.msra.mxu0 0.0
        %508 = vmatprep.subr.mxu0 0.0
        %509 = vmatpush1.msra.mxu0 0.0
        %510 = vmatprep.subr.mxu0 0.0
        %511 = vmatpush1.msra.mxu0 0.0
        %512 = vmatprep.subr.mxu0 0.0
        %513 = vmatpush1.msra.mxu0 0.0
        %514 = vmatprep.subr.mxu0 0.0
        %515 = vmatpush1.msra.mxu0 0.0
        %516 = vmatprep.subr.mxu0 0.0
        %517 = vmatpush1.msra.mxu0 0.0
        %518 = vmatprep.subr.mxu0 0.0
        %519 = vmatpush1.msra.mxu0 0.0
        %520 = vmatprep.subr.mxu0 0.0
        %521 = vmatpush1.msra.mxu0 0.0
        %522 = vmatprep.mubr.f32.mxu0 0.0
        %523 = vmatmul.mubr.f32.gmra.mrb[0].mxu0 %v423
        %v524 = vpop.f32.mrb[0].mxu0
        %v525 = vadd.f32 %v364, %v524
        %v526 = vpop.f32.mrb[0].mxu0
        %527 = vmatprep.mubr.f32.mxu0 0.0
        %528 = vmatmul.mubr.f32.gmra.mrb[0].mxu0 %v426
        %v529 = vpop.f32.mrb[0].mxu0
        %v530 = vadd.f32 %v369, %v529
        %v531 = vpop.f32.mrb[0].mxu0
        %532 = vmatprep.mubr.f32.mxu0 0.0
        %533 = vmatmul.mubr.f32.gmra.mrb[0].mxu0 %v429
        %v534 = vpop.f32.mrb[0].mxu0
        %v535 = vadd.f32 %v374, %v534
        %v536 = vpop.f32.mrb[0].mxu0
        %537 = vmatprep.mubr.f32.mxu0 0.0
        %538 = vmatmul.mubr.f32.gmra.mrb[0].mxu0 %v432
        %v539 = vpop.f32.mrb[0].mxu0
        %v540 = vadd.f32 %v379, %v539
        %v541 = vpop.f32.mrb[0].mxu0
        %542 = vmatprep.mubr.f32.mxu0 0.0
        %543 = vmatmul.mubr.f32.gmra.mrb[0].mxu0 %v435
        %v544 = vpop.f32.mrb[0].mxu0
        %v545 = vadd.f32 %v384, %v544
        %v546 = vpop.f32.mrb[0].mxu0
        %547 = vmatprep.mubr.f32.mxu0 0.0
        %548 = vmatmul.mubr.f32.gmra.mrb[0].mxu0 %v438
        %v549 = vpop.f32.mrb[0].mxu0
        %v550 = vadd.f32 %v389, %v549
        %v551 = vpop.f32.mrb[0].mxu0
        %552 = vmatprep.mubr.f32.mxu0 0.0
        %553 = vmatmul.mubr.f32.gmra.mrb[0].mxu0 %v441
        %v554 = vpop.f32.mrb[0].mxu0
        %v555 = vadd.f32 %v394, %v554
        %v556 = vpop.f32.mrb[0].mxu0
        %557 = vmatprep.mubr.f32.mxu0 0.0
        %558 = vmatmul.mubr.f32.gmra.mrb[0].mxu0 %v444
        %v559 = vpop.f32.mrb[0].mxu0
        %v560 = vadd.f32 %v399, %v559
        %v561 = vpop.f32.mrb[0].mxu0
        %562 = vmatprep.mubr.f32.mxu0 0.0
        %563 = vmatmul.mubr.f32.gmra.mrb[0].mxu0 %v447
        %v564 = vpop.f32.mrb[0].mxu0
        %v565 = vadd.f32 %v404, %v564
        %v566 = vpop.f32.mrb[0].mxu0
        %567 = vmatprep.mubr.f32.mxu0 0.0
        %568 = vmatmul.mubr.f32.gmra.mrb[0].mxu0 %v450
        %v569 = vpop.f32.mrb[0].mxu0
        %v570 = vadd.f32 %v409, %v569
        %v571 = vpop.f32.mrb[0].mxu0
        %572 = vmatprep.mubr.f32.mxu0 0.0
        %573 = vmatmul.mubr.f32.gmra.mrb[0].mxu0 %v453
        %v574 = vpop.f32.mrb[0].mxu0
        %v575 = vadd.f32 %v414, %v574
        %v576 = vpop.f32.mrb[0].mxu0
        %577 = vmatprep.mubr.f32.mxu0 0.0
        %578 = vmatmul.mubr.f32.gmra.mrb[0].mxu0 %v456
        %v579 = vpop.f32.mrb[0].mxu0
        %v580 = vadd.f32 %v419, %v579
        %v581 = vpop.f32.mrb[0].mxu0
        %582 = vdwg.mxu0
        %s583 = sadd.s32 %s19, 2
        %s584 = smul.u32 %s583, 512
        %s585 = sadd.s32 %s203, %s584
        %s586 = scalar_lea.vmem %s183, %s585
        %v587 = vld [vmem:[%s586] sm:$0xff]
        %v588 = vld [vmem:[%s586 + $0x8] sm:$0xff]
        %v589 = vld [vmem:[%s586 + $0x10] sm:$0xff]
        %v590 = vld [vmem:[%s586 + $0x18] sm:$0xff]
        %v591 = vld [vmem:[%s586 + $0x20] sm:$0xff]
        %v592 = vld [vmem:[%s586 + $0x28] sm:$0xff]
        %v593 = vld [vmem:[%s586 + $0x30] sm:$0xff]
        %v594 = vld [vmem:[%s586 + $0x38] sm:$0xff]
        %v595 = vld [vmem:[%s586 + $0x40] sm:$0xff]
        %v596 = vld [vmem:[%s586 + $0x48] sm:$0xff]
        %v597 = vld [vmem:[%s586 + $0x50] sm:$0xff]
        %v598 = vld [vmem:[%s586 + $0x58] sm:$0xff]
        %s599 = scalar_lea.vmem %s1, 192
        %v600 = vld [vmem:[%s599] sm:$0xff]
        %v601 = vld [vmem:[%s599 + $0x8] sm:$0xff]
        %v602 = vld [vmem:[%s599 + $0x10] sm:$0xff]
        %v603 = vld [vmem:[%s599 + $0x18] sm:$0xff]
        %v604 = vld [vmem:[%s599 + $0x20] sm:$0xff]
        %v605 = vld [vmem:[%s599 + $0x28] sm:$0xff]
        %v606 = vld [vmem:[%s599 + $0x30] sm:$0xff]
        %v607 = vld [vmem:[%s599 + $0x38] sm:$0xff]
        %v608 = vld [vmem:[%s599 + $0x40] sm:$0xff]
        %v609 = vld [vmem:[%s599 + $0x48] sm:$0xff]
        %v610 = vld [vmem:[%s599 + $0x50] sm:$0xff]
        %v611 = vld [vmem:[%s599 + $0x58] sm:$0xff]
        %v613 = vsel %vm260, %v600, 0
        %v616 = vsel %vm260, %v601, 0
        %v619 = vsel %vm260, %v602, 0
        %v622 = vsel %vm260, %v603, 0
        %v625 = vsel %vm260, %v604, 0
        %v628 = vsel %vm260, %v605, 0
        %v631 = vsel %vm260, %v606, 0
        %v634 = vsel %vm260, %v607, 0
        %v637 = vsel %vm260, %v608, 0
        %v640 = vsel %vm260, %v609, 0
        %v643 = vsel %vm260, %v610, 0
        %v646 = vsel %vm260, %v611, 0
        %648 = vmatprep.subr.mxu0 0.0
        %649 = vmatpush1.msra.mxu0 %v587
        %650 = vmatprep.subr.mxu0 0.0
        %651 = vmatpush1.msra.mxu0 %v588
        %652 = vmatprep.subr.mxu0 0.0
        %653 = vmatpush1.msra.mxu0 %v589
        %654 = vmatprep.subr.mxu0 0.0
        %655 = vmatpush1.msra.mxu0 %v590
        %656 = vmatprep.subr.mxu0 0.0
        %657 = vmatpush1.msra.mxu0 %v591
        %658 = vmatprep.subr.mxu0 0.0
        %659 = vmatpush1.msra.mxu0 %v592
        %660 = vmatprep.subr.mxu0 0.0
        %661 = vmatpush1.msra.mxu0 %v593
        %662 = vmatprep.subr.mxu0 0.0
        %663 = vmatpush1.msra.mxu0 %v594
        %664 = vmatprep.subr.mxu0 0.0
        %665 = vmatpush1.msra.mxu0 %v595
        %666 = vmatprep.subr.mxu0 0.0
        %667 = vmatpush1.msra.mxu0 %v596
        %668 = vmatprep.subr.mxu0 0.0
        %669 = vmatpush1.msra.mxu0 %v597
        %670 = vmatprep.subr.mxu0 0.0
        %671 = vmatpush1.msra.mxu0 %v598
        %672 = vmatprep.subr.mxu0 0.0
        %673 = vmatpush1.msra.mxu0 0.0
        %674 = vmatprep.subr.mxu0 0.0
        %675 = vmatpush1.msra.mxu0 0.0
        %676 = vmatprep.subr.mxu0 0.0
        %677 = vmatpush1.msra.mxu0 0.0
        %678 = vmatprep.subr.mxu0 0.0
        %679 = vmatpush1.msra.mxu0 0.0
        %680 = vmatprep.subr.mxu0 0.0
        %681 = vmatpush1.msra.mxu0 0.0
        %682 = vmatprep.subr.mxu0 0.0
        %683 = vmatpush1.msra.mxu0 0.0
        %684 = vmatprep.subr.mxu0 0.0
        %685 = vmatpush1.msra.mxu0 0.0
        %686 = vmatprep.subr.mxu0 0.0
        %687 = vmatpush1.msra.mxu0 0.0
        %688 = vmatprep.subr.mxu0 0.0
        %689 = vmatpush1.msra.mxu0 0.0
        %690 = vmatprep.subr.mxu0 0.0
        %691 = vmatpush1.msra.mxu0 0.0
        %692 = vmatprep.subr.mxu0 0.0
        %693 = vmatpush1.msra.mxu0 0.0
        %694 = vmatprep.subr.mxu0 0.0
        %695 = vmatpush1.msra.mxu0 0.0
        %696 = vmatprep.subr.mxu0 0.0
        %697 = vmatpush1.msra.mxu0 0.0
        %698 = vmatprep.subr.mxu0 0.0
        %699 = vmatpush1.msra.mxu0 0.0
        %700 = vmatprep.subr.mxu0 0.0
        %701 = vmatpush1.msra.mxu0 0.0
        %702 = vmatprep.subr.mxu0 0.0
        %703 = vmatpush1.msra.mxu0 0.0
        %704 = vmatprep.subr.mxu0 0.0
        %705 = vmatpush1.msra.mxu0 0.0
        %706 = vmatprep.subr.mxu0 0.0
        %707 = vmatpush1.msra.mxu0 0.0
        %708 = vmatprep.subr.mxu0 0.0
        %709 = vmatpush1.msra.mxu0 0.0
        %710 = vmatprep.subr.mxu0 0.0
        %711 = vmatpush1.msra.mxu0 0.0
        %712 = vmatprep.mubr.f32.mxu0 0.0
        %713 = vmatmul.mubr.f32.gmra.mrb[0].mxu0 %v613
        %v714 = vpop.f32.mrb[0].mxu0
        %v715 = vadd.f32 0.0, %v714
        %v716 = vpop.f32.mrb[0].mxu0
        %717 = vmatprep.mubr.f32.mxu0 0.0
        %718 = vmatmul.mubr.f32.gmra.mrb[0].mxu0 %v616
        %v719 = vpop.f32.mrb[0].mxu0
        %v720 = vadd.f32 0.0, %v719
        %v721 = vpop.f32.mrb[0].mxu0
        %722 = vmatprep.mubr.f32.mxu0 0.0
        %723 = vmatmul.mubr.f32.gmra.mrb[0].mxu0 %v619
        %v724 = vpop.f32.mrb[0].mxu0
        %v725 = vadd.f32 0.0, %v724
        %v726 = vpop.f32.mrb[0].mxu0
        %727 = vmatprep.mubr.f32.mxu0 0.0
        %728 = vmatmul.mubr.f32.gmra.mrb[0].mxu0 %v622
        %v729 = vpop.f32.mrb[0].mxu0
        %v730 = vadd.f32 0.0, %v729
        %v731 = vpop.f32.mrb[0].mxu0
        %732 = vmatprep.mubr.f32.mxu0 0.0
        %733 = vmatmul.mubr.f32.gmra.mrb[0].mxu0 %v625
        %v734 = vpop.f32.mrb[0].mxu0
        %v735 = vadd.f32 0.0, %v734
        %v736 = vpop.f32.mrb[0].mxu0
        %737 = vmatprep.mubr.f32.mxu0 0.0
        %738 = vmatmul.mubr.f32.gmra.mrb[0].mxu0 %v628
        %v739 = vpop.f32.mrb[0].mxu0
        %v740 = vadd.f32 0.0, %v739
        %v741 = vpop.f32.mrb[0].mxu0
        %742 = vmatprep.mubr.f32.mxu0 0.0
        %743 = vmatmul.mubr.f32.gmra.mrb[0].mxu0 %v631
        %v744 = vpop.f32.mrb[0].mxu0
        %v745 = vadd.f32 0.0, %v744
        %v746 = vpop.f32.mrb[0].mxu0
        %747 = vmatprep.mubr.f32.mxu0 0.0
        %748 = vmatmul.mubr.f32.gmra.mrb[0].mxu0 %v634
        %v749 = vpop.f32.mrb[0].mxu0
        %v750 = vadd.f32 0.0, %v749
        %v751 = vpop.f32.mrb[0].mxu0
        %752 = vmatprep.mubr.f32.mxu0 0.0
        %753 = vmatmul.mubr.f32.gmra.mrb[0].mxu0 %v637
        %v754 = vpop.f32.mrb[0].mxu0
        %v755 = vadd.f32 0.0, %v754
        %v756 = vpop.f32.mrb[0].mxu0
        %757 = vmatprep.mubr.f32.mxu0 0.0
        %758 = vmatmul.mubr.f32.gmra.mrb[0].mxu0 %v640
        %v759 = vpop.f32.mrb[0].mxu0
        %v760 = vadd.f32 0.0, %v759
        %v761 = vpop.f32.mrb[0].mxu0
        %762 = vmatprep.mubr.f32.mxu0 0.0
        %763 = vmatmul.mubr.f32.gmra.mrb[0].mxu0 %v643
        %v764 = vpop.f32.mrb[0].mxu0
        %v765 = vadd.f32 0.0, %v764
        %v766 = vpop.f32.mrb[0].mxu0
        %767 = vmatprep.mubr.f32.mxu0 0.0
        %768 = vmatmul.mubr.f32.gmra.mrb[0].mxu0 %v646
        %v769 = vpop.f32.mrb[0].mxu0
        %v770 = vadd.f32 0.0, %v769
        %v771 = vpop.f32.mrb[0].mxu0
        %772 = vdwg.mxu0
        %v773 = vadd.f32 %v525, %v715
        %v774 = vadd.f32 %v530, %v720
        %v775 = vadd.f32 %v535, %v725
        %v776 = vadd.f32 %v540, %v730
        %v777 = vadd.f32 %v545, %v735
        %v778 = vadd.f32 %v550, %v740
        %v779 = vadd.f32 %v555, %v745
        %v780 = vadd.f32 %v560, %v750
        %v781 = vadd.f32 %v565, %v755
        %v782 = vadd.f32 %v570, %v760
        %v783 = vadd.f32 %v575, %v765
        %v784 = vadd.f32 %v580, %v770
        %789 = vrot.lane.b32.xlu0 %v777, 127
        %v790 = vpop.permute.xlu0 %789
        %791 = vrot.lane.b32.xlu0 %v778, 127
        %v792 = vpop.permute.xlu0 %791
        %793 = vrot.lane.b32.xlu0 %v779, 127
        %v794 = vpop.permute.xlu0 %793
        %795 = vrot.lane.b32.xlu0 %v780, 127
        %v796 = vpop.permute.xlu0 %795
        %v801 = vadd.f32 %v773, %v790
        %v802 = vadd.f32 %v774, %v792
        %v803 = vadd.f32 %v775, %v794
        %v804 = vadd.f32 %v776, %v796
        %809 = vrot.lane.b32.xlu0 %v781, 126
        %v810 = vpop.permute.xlu0 %809
        %811 = vrot.lane.b32.xlu0 %v782, 126
        %v812 = vpop.permute.xlu0 %811
        %813 = vrot.lane.b32.xlu0 %v783, 126
        %v814 = vpop.permute.xlu0 %813
        %815 = vrot.lane.b32.xlu0 %v784, 126
        %v816 = vpop.permute.xlu0 %815
        %v821 = vadd.f32 %v801, %v810
        %v822 = vadd.f32 %v802, %v812
        %v823 = vadd.f32 %v803, %v814
        %v824 = vadd.f32 %v804, %v816
        %826 = vset.pattern.permute.xlu0 0
        %827 = vperm.xlu0 %826, %v193
        %v828 = vpop.permute.xlu0 %827
        %831 = vset.pattern.permute.xlu0 0
        %832 = vperm.xlu0 %831, %v194
        %v833 = vpop.permute.xlu0 %832
        %836 = vset.pattern.permute.xlu0 0
        %837 = vperm.xlu0 %836, %v195
        %v838 = vpop.permute.xlu0 %837
        %841 = vset.pattern.permute.xlu0 0
        %842 = vperm.xlu0 %841, %v196
        %v843 = vpop.permute.xlu0 %842
        %v845 = vadd.f32 %v821, %v828
        %v846 = vadd.f32 %v822, %v833
        %v847 = vadd.f32 %v823, %v838
        %v848 = vadd.f32 %v824, %v843
        %v849 = vmax.f32 %v845, 0.0
        %v850 = vmax.f32 %v846, 0.0
        %v851 = vmax.f32 %v847, 0.0
        %v852 = vmax.f32 %v848, 0.0
        %s853 = scalar_lea.vmem %s192, %s203
        %vm854 = vcmask 97280
        %855 = vst.msk [vmem:[%s853] sm:$0xff] %vm854, %v849
        %856 = vst.msk [vmem:[%s853 + $0x8] sm:$0xff] %vm854, %v850
        %857 = vst.msk [vmem:[%s853 + $0x10] sm:$0xff] %vm854, %v851
        %858 = vst.msk [vmem:[%s853 + $0x18] sm:$0xff] %vm854, %v852
      $region37: #{local_brief_net_forward.5} parent=31 // loop_footer
        %s202 = sadd.s32 1, %s198
      $region38: #{local_brief_net_forward.5} parent=31 // loop_footer_branch
        %197 = sbr.rel target = $region34
      $region39: #{local_brief_net_forward.5} parent=31 // loop_exit
        _
      %p859 = scmp.lt.s32.totalorder %s18, 1
      %s860 = scalar_select %p859, %s18, 1
      %p861 = scmp.lt.s32.totalorder %s19, 11
      %s862 = scalar_select %p861, %s19, 11
      %s863 = smul.addr %s862, 56
      %s864 = smul.addr %s860, 672
      %s865 = sadd.s32 %s863, %s864
      %s866 = smul.addr %s865, 8
      %s867 = scalar_lea.vmem %s3, %s866
      // Predicated region
      $region40: #{local_brief_net_forward.5} parent=31 // pred_check
        %p868 = pneg %p114
      $region41: #{local_brief_net_forward.5} parent=31 // pred_check_branch
        %870 = sbr.rel (%p868) target = $region43
      $region42: #{local_brief_net_forward.5} parent=31 // pred_region
        _
      $region43: #{local_brief_net_forward.5} parent=31 // pred_fallthru
        _
    $region32: #{local_brief_net_forward.5} parent=5 // pred_fallthru
      _
    %p871 = scmp.le.s32.totalorder 2, %s9
    // Predicated region
    $region44: #{local_brief_net_forward.5} parent=5 // pred_check
      %p872 = pneg %p871
    $region45: #{local_brief_net_forward.5} parent=5 // pred_check_branch
      %874 = sbr.rel (%p872) target = $region47
    $region46: #{local_brief_net_forward.5} parent=5 // pred_region
      %s875 = ssub.s32 %s9, 2
      // Predicated region
      $region48: #{local_brief_net_forward.5} parent=46 // pred_check
        %p876 = pneg %p120
      $region49: #{local_brief_net_forward.5} parent=46 // pred_check_branch
        %878 = sbr.rel (%p876) target = $region51
      $region50: #{local_brief_net_forward.5} parent=46 // pred_region
        %p879 = scmp.lt.s32.totalorder %s20, 1
        %s880 = scalar_select %p879, %s20, 1
        %p881 = scmp.lt.s32.totalorder %s21, 11
        %s882 = scalar_select %p881, %s21, 11
        %s883 = smul.addr %s882, 56
        %s884 = smul.addr %s880, 672
        %s885 = sadd.s32 %s883, %s884
        %s886 = smul.addr %s885, 8
        %s887 = scalar_lea.vmem %s3, %s886
      $region51: #{local_brief_net_forward.5} parent=46 // pred_fallthru
        _
    $region47: #{local_brief_net_forward.5} parent=5 // pred_fallthru
      _
  $region6: #{local_brief_net_forward.5} parent=0 // loop_footer
    %s13 = sadd.s32 1, %s9
  $region7: #{local_brief_net_forward.5} parent=0 // loop_footer_branch
    %8 = sbr.rel target = $region3
  $region8: #{local_brief_net_forward.5} parent=0 // loop_exit
    _

// kernel: local_brief_net_forward.4
$region0: #{local_brief_net_forward.4}
  #allocation0 [shape = 'u32[]', space=smem, size = 0x4, offset = 0x4, fixed_abs, tag = 'smem constant byte address 0x4 - core index']
  #allocation1 [shape = 'u32[144,128]{1,0:T(1,128)}', space=vmem, size = 0x12000, scoped, tag = 'internal scratch']
  %s0 = inlined_call_operand.vmem [shape: f32[2,28,180,32], index: 0, kind: input, shape index: {}]
  %s1 = inlined_call_operand.vmem [shape: f32[1,160,25], index: 1, kind: input, shape index: {}]
  %s2 = inlined_call_operand.vmem [shape: f32[32,1], index: 2, kind: input, shape index: {}]
  %s3 = inlined_call_operand.vmem [shape: f32[27,14], index: 3, kind: input, shape index: {}]
  %s4 = inlined_call_operand.vmem [shape: f32[2,14,512,14], index: 4, kind: output, shape index: {}]
  %s5 = sld [smem:[#allocation0]]
  $region56: #{local_brief_net_forward.4} parent=0
    _
  %s7 = ssub.s32 1, %s5
  %s8 = scalar_select 0, %s7, %s5
  loop: start=0, step=1, limit=30
  $region2: #{local_brief_net_forward.4} parent=0 // loop_pre_header
    _
  $region3: #{local_brief_net_forward.4} parent=0 // loop_header
    %s10 = sphi 0, %s14
    %p11 = scmp.ge.s32.totalorder %s10, 30
    %s17 = sphi 0, %s29
    %s18 = sphi 0, %s25
    %s19 = sphi 0, %s17
    %s20 = sphi 0, %s18
    %s21 = sphi 0, %s19
    %s22 = sphi 0, %s20
    %s32 = sphi 0, %s34
    %s35 = sphi 0, %s32
    %s36 = sphi 0, %s35
    %s52 = sphi 0, %s36
    %s56 = sphi 0, %s56
    %s58 = sphi 0, %s56
    %s59 = sphi 0, %s58
    %s73 = sphi 0, %s59
    %s77 = sphi 0, %s77
    %s79 = sphi 0, %s77
    %s80 = sphi 0, %s79
    %s94 = sphi 0, %s80
    %s98 = sphi 0, %s98
    %s100 = sphi 0, %s98
    %s101 = sphi 0, %s100
    %s115 = sphi 0, %s101
    %s123 = sphi 0, %s125
    %s126 = sphi 0, %s123
    %s127 = sphi 0, %s126
    %s143 = sphi 0, %s127
  $region4: #{local_brief_net_forward.4} parent=0 // loop_header_branch
    %13 = sbr.rel (%p11) target = $region8
  $region5: #{local_brief_net_forward.4} parent=0 // loop_body
    %s15 = ssub.s32 %s10, 1
    %s16 = ssub.s32 %s10, 2
    %s23 = sadd.s32 1, %s18
    %p24 = scmp.ge.s32.totalorder %s23, 14
    %s25 = scalar_select %p24, 0, %s23
    %s26 = sadd.s32 1, %s17
    %s27 = scalar_select %p24, %s26, %s17
    %p28 = scmp.ge.s32.totalorder %s27, 2
    %s29 = scalar_select %p28, 0, %s27
    %s30 = ssub.s32 %s17, %s29
    %p31 = scmp.eq.s32.totalorder %s30, 0
    %s33 = sadd.s32 %s32, 1
    %s34 = scalar_select %p31, %s32, %s33
    %p37 = pneg %p31
    %p38 = scmp.eq.s32.totalorder %s10, 27
    %p39 = por %p37, %p38
    %p40 = scmp.ne.s32.totalorder %s32, %s35
    %p41 = scmp.eq.s32.totalorder %s10, 0
    %p42 = por %p40, %p41
    %p43 = scmp.ne.s32.totalorder %s32, %s35
    %p44 = scmp.eq.s32.totalorder %s15, 27
    %p45 = por %p43, %p44
    %p46 = scmp.ne.s32.totalorder %s35, %s36
    %p47 = scmp.eq.s32.totalorder %s15, 0
    %p48 = por %p46, %p47
    %p49 = scmp.ne.s32.totalorder %s35, %s36
    %p50 = scmp.eq.s32.totalorder %s16, 27
    %p51 = por %p49, %p50
    %p53 = scmp.ne.s32.totalorder %s36, %s52
    %p54 = scmp.eq.s32.totalorder %s16, 0
    %p55 = por %p53, %p54
    %s57 = sadd.s32 %s56, 1
    %p60 = scmp.eq.s32.totalorder %s10, 27
    %p61 = scmp.ne.s32.totalorder %s56, %s58
    %p62 = scmp.eq.s32.totalorder %s10, 0
    %p63 = por %p61, %p62
    %p64 = scmp.ne.s32.totalorder %s56, %s58
    %p65 = scmp.eq.s32.totalorder %s15, 27
    %p66 = por %p64, %p65
    %p67 = scmp.ne.s32.totalorder %s58, %s59
    %p68 = scmp.eq.s32.totalorder %s15, 0
    %p69 = por %p67, %p68
    %p70 = scmp.ne.s32.totalorder %s58, %s59
    %p71 = scmp.eq.s32.totalorder %s16, 27
    %p72 = por %p70, %p71
    %p74 = scmp.ne.s32.totalorder %s59, %s73
    %p75 = scmp.eq.s32.totalorder %s16, 0
    %p76 = por %p74, %p75
    %s78 = sadd.s32 %s77, 1
    %p81 = scmp.eq.s32.totalorder %s10, 27
    %p82 = scmp.ne.s32.totalorder %s77, %s79
    %p83 = scmp.eq.s32.totalorder %s10, 0
    %p84 = por %p82, %p83
    %p85 = scmp.ne.s32.totalorder %s77, %s79
    %p86 = scmp.eq.s32.totalorder %s15, 27
    %p87 = por %p85, %p86
    %p88 = scmp.ne.s32.totalorder %s79, %s80
    %p89 = scmp.eq.s32.totalorder %s15, 0
    %p90 = por %p88, %p89
    %p91 = scmp.ne.s32.totalorder %s79, %s80
    %p92 = scmp.eq.s32.totalorder %s16, 27
    %p93 = por %p91, %p92
    %p95 = scmp.ne.s32.totalorder %s80, %s94
    %p96 = scmp.eq.s32.totalorder %s16, 0
    %p97 = por %p95, %p96
    %s99 = sadd.s32 %s98, 1
    %p102 = scmp.eq.s32.totalorder %s10, 27
    %p103 = scmp.ne.s32.totalorder %s98, %s100
    %p104 = scmp.eq.s32.totalorder %s10, 0
    %p105 = por %p103, %p104
    %p106 = scmp.ne.s32.totalorder %s98, %s100
    %p107 = scmp.eq.s32.totalorder %s15, 27
    %p108 = por %p106, %p107
    %p109 = scmp.ne.s32.totalorder %s100, %s101
    %p110 = scmp.eq.s32.totalorder %s15, 0
    %p111 = por %p109, %p110
    %p112 = scmp.ne.s32.totalorder %s100, %s101
    %p113 = scmp.eq.s32.totalorder %s16, 27
    %p114 = por %p112, %p113
    %p116 = scmp.ne.s32.totalorder %s101, %s115
    %p117 = scmp.eq.s32.totalorder %s16, 0
    %p118 = por %p116, %p117
    %s119 = ssub.s32 %s17, %s29
    %s120 = ssub.s32 %s18, %s25
    %s121 = sor.u32 %s119, %s120
    %p122 = scmp.eq.s32.totalorder %s121, 0
    %s124 = sadd.s32 %s123, 1
    %s125 = scalar_select %p122, %s123, %s124
    %p128 = pneg %p122
    %p129 = scmp.eq.s32.totalorder %s10, 27
    %p130 = por %p128, %p129
    %p131 = scmp.ne.s32.totalorder %s123, %s126
    %p132 = scmp.eq.s32.totalorder %s10, 0
    %p133 = por %p131, %p132
    %p134 = scmp.ne.s32.totalorder %s123, %s126
    %p135 = scmp.eq.s32.totalorder %s15, 27
    %p136 = por %p134, %p135
    %p137 = scmp.ne.s32.totalorder %s126, %s127
    %p138 = scmp.eq.s32.totalorder %s15, 0
    %p139 = por %p137, %p138
    %p140 = scmp.ne.s32.totalorder %s126, %s127
    %p141 = scmp.eq.s32.totalorder %s16, 27
    %p142 = por %p140, %p141
    %p144 = scmp.ne.s32.totalorder %s127, %s143
    %p145 = scmp.eq.s32.totalorder %s16, 0
    %p146 = por %p144, %p145
    %p147 = scmp.le.s32.totalorder 1, %s10
    %p148 = scmp.lt.s32.totalorder %s10, 29
    %p149 = pnand %p147, %p148
    %p150 = pneg %p149
    // Predicated region
    $region9: #{local_brief_net_forward.4} parent=5 // pred_check
      _
    $region10: #{local_brief_net_forward.4} parent=5 // pred_check_branch
      %152 = sbr.rel (%p149) target = $region12
    $region11: #{local_brief_net_forward.4} parent=5 // pred_region
      %s153 = ssub.s32 %s10, 1
      // Predicated region
      $region13: #{local_brief_net_forward.4} parent=11 // pred_check
        %p154 = pneg %p69
      $region14: #{local_brief_net_forward.4} parent=11 // pred_check_branch
        %156 = sbr.rel (%p154) target = $region16
      $region15: #{local_brief_net_forward.4} parent=11 // pred_region
        _
      $region16: #{local_brief_net_forward.4} parent=11 // pred_fallthru
        _
      // Predicated region
      $region17: #{local_brief_net_forward.4} parent=11 // pred_check
        %p157 = pneg %p90
      $region18: #{local_brief_net_forward.4} parent=11 // pred_check_branch
        %159 = sbr.rel (%p157) target = $region20
      $region19: #{local_brief_net_forward.4} parent=11 // pred_region
        _
      $region20: #{local_brief_net_forward.4} parent=11 // pred_fallthru
        _
      // Predicated region
      $region21: #{local_brief_net_forward.4} parent=11 // pred_check
        %p160 = pneg %p111
      $region22: #{local_brief_net_forward.4} parent=11 // pred_check_branch
        %162 = sbr.rel (%p160) target = $region24
      $region23: #{local_brief_net_forward.4} parent=11 // pred_region
        _
      $region24: #{local_brief_net_forward.4} parent=11 // pred_fallthru
        _
    $region12: #{local_brief_net_forward.4} parent=5 // pred_fallthru
      _
    %p163 = scmp.lt.s32.totalorder %s10, 28
    // Predicated region
    $region25: #{local_brief_net_forward.4} parent=5 // pred_check
      %p164 = pneg %p163
    $region26: #{local_brief_net_forward.4} parent=5 // pred_check_branch
      %166 = sbr.rel (%p164) target = $region28
    $region27: #{local_brief_net_forward.4} parent=5 // pred_region
      // Predicated region
      $region29: #{local_brief_net_forward.4} parent=27 // pred_check
        %p167 = pneg %p42
      $region30: #{local_brief_net_forward.4} parent=27 // pred_check_branch
        %169 = sbr.rel (%p167) target = $region32
      $region31: #{local_brief_net_forward.4} parent=27 // pred_region
        %p170 = scmp.lt.s32.totalorder %s17, 1
        %s171 = scalar_select %p170, %s17, 1
        %s172 = smul.addr %s171, 644
        %s173 = smul.addr %s172, 8
        %s174 = scalar_lea.vmem %s0, %s173
      $region32: #{local_brief_net_forward.4} parent=27 // pred_fallthru
        _
    $region28: #{local_brief_net_forward.4} parent=5 // pred_fallthru
      _
    %p175 = scmp.le.s32.totalorder 1, %s10
    %p176 = scmp.lt.s32.totalorder %s10, 29
    %p177 = pnand %p175, %p176
    %p178 = pneg %p177
    // Predicated region
    $region33: #{local_brief_net_forward.4} parent=5 // pred_check
      _
    $region34: #{local_brief_net_forward.4} parent=5 // pred_check_branch
      %180 = sbr.rel (%p177) target = $region36
    $region35: #{local_brief_net_forward.4} parent=5 // pred_region
      %s181 = ssub.s32 %s10, 1
      %p182 = scmp.lt.s32.totalorder %s19, 1
      %s183 = scalar_select %p182, %s19, 1
      %s184 = smul.addr %s183, 644
      %s185 = smul.addr %s184, 8
      %s186 = scalar_lea.vmem %s0, %s185
      %p187 = pneg %p48
      %p188 = pneg %p45
      %p189 = pneg %p69
      %p190 = pneg %p66
      %p191 = pneg %p90
      %p192 = pneg %p87
      %p193 = pneg %p111
      %p194 = pneg %p108
      %p195 = pneg %p139
      %p196 = pneg %p136
      %p197 = scmp.lt.s32.totalorder %s19, 1
      %s198 = scalar_select %p197, %s19, 1
      %p199 = scmp.lt.s32.totalorder %s20, 13
      %s200 = scalar_select %p199, %s20, 13
      %s201 = smul.addr %s200, 64
      %s202 = smul.addr %s198, 896
      %s203 = sadd.s32 %s201, %s202
      %s204 = smul.addr %s203, 8
      %s205 = scalar_lea.vmem %s4, %s204
      %p206 = scmp.lt.s32.totalorder %s19, 1
      %s207 = scalar_select %p206, %s19, 1
      %s208 = smul.addr %s207, 644
      %s209 = smul.addr %s208, 8
      %s210 = scalar_lea.vmem %s0, %s209
      %p211 = scmp.lt.s32.totalorder %s19, 1
      %s212 = scalar_select %p211, %s19, 1
      %p213 = scmp.lt.s32.totalorder %s20, 13
      %s214 = scalar_select %p213, %s20, 13
      %s215 = smul.addr %s214, 64
      %s216 = smul.addr %s212, 896
      %s217 = sadd.s32 %s215, %s216
      %s218 = smul.addr %s217, 8
      %s219 = scalar_lea.vmem %s4, %s218
      %s220 = smul.u32 %s20, 2
      %v221 = vld [vmem:[%s2] sm:$0xff]
      %v222 = vld [vmem:[%s2 + $0x8] sm:$0xff]
      %v223 = vld [vmem:[%s2 + $0x10] sm:$0xff]
      %v224 = vld [vmem:[%s2 + $0x18] sm:$0xff]
      %v225 = vld [vmem:[%s3] sm:$0xff]
      %v226 = vld [vmem:[%s3 + $0x8] sm:$0xff]
      %v227 = vld [vmem:[%s3 + $0x10] sm:$0xff]
      %v228 = vld [vmem:[%s3 + $0x18] sm:$0x7]
      loop: start=0, step=1, limit=16
      $region37: #{local_brief_net_forward.4} parent=35 // loop_pre_header
        _
      $region38: #{local_brief_net_forward.4} parent=35 // loop_header
        %s230 = sphi 0, %s234
        %p231 = scmp.ge.s32.totalorder %s230, 16
      $region39: #{local_brief_net_forward.4} parent=35 // loop_header_branch
        %233 = sbr.rel (%p231) target = $region43
      $region40: #{local_brief_net_forward.4} parent=35 // loop_body
        %s235 = smul.u32 %s230, 10
        %s236 = smul.u32 %s220, 184
        %s237 = sadd.s32 %s235, %s236
        %s238 = scalar_lea.vmem %s210, %s237
        %v239 = vld [vmem:[%s238] sm:$0xff]
        %v240 = vld [vmem:[%s238 + $0x8] sm:$0xff]
        %v241 = vld [vmem:[%s238 + $0x10] sm:$0xff]
        %v242 = vld [vmem:[%s238 + $0x18] sm:$0x1]
        %v243 = vld [vmem:[%s1] sm:$0xff]
        %v244 = vld [vmem:[%s1 + $0x8] sm:$0xff]
        %v245 = vld [vmem:[%s1 + $0x10] sm:$0xff]
        %v246 = vld [vmem:[%s1 + $0x18] sm:$0xff]
        %v247 = vld [vmem:[%s1 + $0x20] sm:$0xff]
        %v248 = vld [vmem:[%s1 + $0x28] sm:$0xff]
        %v249 = vld [vmem:[%s1 + $0x30] sm:$0xff]
        %v250 = vld [vmem:[%s1 + $0x38] sm:$0xff]
        %v251 = vld [vmem:[%s1 + $0x40] sm:$0xff]
        %v252 = vld [vmem:[%s1 + $0x48] sm:$0xff]
        %v253 = vld [vmem:[%s1 + $0x50] sm:$0xff]
        %v254 = vld [vmem:[%s1 + $0x58] sm:$0xff]
        %v255 = vld [vmem:[%s1 + $0x60] sm:$0xff]
        %v256 = vld [vmem:[%s1 + $0x68] sm:$0xff]
        %v257 = vld [vmem:[%s1 + $0x70] sm:$0xff]
        %v258 = vld [vmem:[%s1 + $0x78] sm:$0xff]
        %v259 = vld [vmem:[%s1 + $0x80] sm:$0xff]
        %v260 = vld [vmem:[%s1 + $0x88] sm:$0xff]
        %v261 = vld [vmem:[%s1 + $0x90] sm:$0xff]
        %v262 = vld [vmem:[%s1 + $0x98] sm:$0xff]
        %vm263 = vcmask 203776
        %v265 = vsel %vm263, %v243, 0
        %v268 = vsel %vm263, %v244, 0
        %v271 = vsel %vm263, %v245, 0
        %v274 = vsel %vm263, %v246, 0
        %v277 = vsel %vm263, %v247, 0
        %v280 = vsel %vm263, %v248, 0
        %v283 = vsel %vm263, %v249, 0
        %v286 = vsel %vm263, %v250, 0
        %v289 = vsel %vm263, %v251, 0
        %v292 = vsel %vm263, %v252, 0
        %v295 = vsel %vm263, %v253, 0
        %v298 = vsel %vm263, %v254, 0
        %v301 = vsel %vm263, %v255, 0
        %v304 = vsel %vm263, %v256, 0
        %v307 = vsel %vm263, %v257, 0
        %v310 = vsel %vm263, %v258, 0
        %v313 = vsel %vm263, %v259, 0
        %v316 = vsel %vm263, %v260, 0
        %v319 = vsel %vm263, %v261, 0
        %v322 = vsel %vm263, %v262, 0
        %vm324 = vcmask 1040384
        %v326 = vsel %vm324, %v242, 0
        %328 = vmatprep.subr.mxu0 0.0
        %329 = vmatpush1.msra.mxu0 %v239
        %330 = vmatprep.subr.mxu0 0.0
        %331 = vmatpush1.msra.mxu0 %v240
        %332 = vmatprep.subr.mxu0 0.0
        %333 = vmatpush1.msra.mxu0 %v241
        %334 = vmatprep.subr.mxu0 0.0
        %335 = vmatpush1.msra.mxu0 %v326
        %336 = vmatprep.subr.mxu0 0.0
        %337 = vmatpush1.msra.mxu0 0.0
        %338 = vmatprep.subr.mxu0 0.0
        %339 = vmatpush1.msra.mxu0 0.0
        %340 = vmatprep.subr.mxu0 0.0
        %341 = vmatpush1.msra.mxu0 0.0
        %342 = vmatprep.subr.mxu0 0.0
        %343 = vmatpush1.msra.mxu0 0.0
        %344 = vmatprep.subr.mxu0 0.0
        %345 = vmatpush1.msra.mxu0 0.0
        %346 = vmatprep.subr.mxu0 0.0
        %347 = vmatpush1.msra.mxu0 0.0
        %348 = vmatprep.subr.mxu0 0.0
        %349 = vmatpush1.msra.mxu0 0.0
        %350 = vmatprep.subr.mxu0 0.0
        %351 = vmatpush1.msra.mxu0 0.0
        %352 = vmatprep.subr.mxu0 0.0
        %353 = vmatpush1.msra.mxu0 0.0
        %354 = vmatprep.subr.mxu0 0.0
        %355 = vmatpush1.msra.mxu0 0.0
        %356 = vmatprep.subr.mxu0 0.0
        %357 = vmatpush1.msra.mxu0 0.0
        %358 = vmatprep.subr.mxu0 0.0
        %359 = vmatpush1.msra.mxu0 0.0
        %360 = vmatprep.subr.mxu0 0.0
        %361 = vmatpush1.msra.mxu0 0.0
        %362 = vmatprep.subr.mxu0 0.0
        %363 = vmatpush1.msra.mxu0 0.0
        %364 = vmatprep.subr.mxu0 0.0
        %365 = vmatpush1.msra.mxu0 0.0
        %366 = vmatprep.subr.mxu0 0.0
        %367 = vmatpush1.msra.mxu0 0.0
        %368 = vmatprep.subr.mxu0 0.0
        %369 = vmatpush1.msra.mxu0 0.0
        %370 = vmatprep.subr.mxu0 0.0
        %371 = vmatpush1.msra.mxu0 0.0
        %372 = vmatprep.subr.mxu0 0.0
        %373 = vmatpush1.msra.mxu0 0.0
        %374 = vmatprep.subr.mxu0 0.0
        %375 = vmatpush1.msra.mxu0 0.0
        %376 = vmatprep.subr.mxu0 0.0
        %377 = vmatpush1.msra.mxu0 0.0
        %378 = vmatprep.subr.mxu0 0.0
        %379 = vmatpush1.msra.mxu0 0.0
        %380 = vmatprep.subr.mxu0 0.0
        %381 = vmatpush1.msra.mxu0 0.0
        %382 = vmatprep.subr.mxu0 0.0
        %383 = vmatpush1.msra.mxu0 0.0
        %384 = vmatprep.subr.mxu0 0.0
        %385 = vmatpush1.msra.mxu0 0.0
        %386 = vmatprep.subr.mxu0 0.0
        %387 = vmatpush1.msra.mxu0 0.0
        %388 = vmatprep.subr.mxu0 0.0
        %389 = vmatpush1.msra.mxu0 0.0
        %390 = vmatprep.subr.mxu0 0.0
        %391 = vmatpush1.msra.mxu0 0.0
        %392 = vmatprep.mubr.f32.mxu0 0.0
        %393 = vmatmul.mubr.f32.gmra.mrb[0].mxu0 %v265
        %v394 = vpop.f32.mrb[0].mxu0
        %v395 = vadd.f32 0.0, %v394
        %v396 = vpop.f32.mrb[0].mxu0
        %397 = vmatprep.mubr.f32.mxu0 0.0
        %398 = vmatmul.mubr.f32.gmra.mrb[0].mxu0 %v268
        %v399 = vpop.f32.mrb[0].mxu0
        %v400 = vadd.f32 0.0, %v399
        %v401 = vpop.f32.mrb[0].mxu0
        %402 = vmatprep.mubr.f32.mxu0 0.0
        %403 = vmatmul.mubr.f32.gmra.mrb[0].mxu0 %v271
        %v404 = vpop.f32.mrb[0].mxu0
        %v405 = vadd.f32 0.0, %v404
        %v406 = vpop.f32.mrb[0].mxu0
        %407 = vmatprep.mubr.f32.mxu0 0.0
        %408 = vmatmul.mubr.f32.gmra.mrb[0].mxu0 %v274
        %v409 = vpop.f32.mrb[0].mxu0
        %v410 = vadd.f32 0.0, %v409
        %v411 = vpop.f32.mrb[0].mxu0
        %412 = vmatprep.mubr.f32.mxu0 0.0
        %413 = vmatmul.mubr.f32.gmra.mrb[0].mxu0 %v277
        %v414 = vpop.f32.mrb[0].mxu0
        %v415 = vadd.f32 0.0, %v414
        %v416 = vpop.f32.mrb[0].mxu0
        %417 = vmatprep.mubr.f32.mxu0 0.0
        %418 = vmatmul.mubr.f32.gmra.mrb[0].mxu0 %v280
        %v419 = vpop.f32.mrb[0].mxu0
        %v420 = vadd.f32 0.0, %v419
        %v421 = vpop.f32.mrb[0].mxu0
        %422 = vmatprep.mubr.f32.mxu0 0.0
        %423 = vmatmul.mubr.f32.gmra.mrb[0].mxu0 %v283
        %v424 = vpop.f32.mrb[0].mxu0
        %v425 = vadd.f32 0.0, %v424
        %v426 = vpop.f32.mrb[0].mxu0
        %427 = vmatprep.mubr.f32.mxu0 0.0
        %428 = vmatmul.mubr.f32.gmra.mrb[0].mxu0 %v286
        %v429 = vpop.f32.mrb[0].mxu0
        %v430 = vadd.f32 0.0, %v429
        %v431 = vpop.f32.mrb[0].mxu0
        %432 = vmatprep.mubr.f32.mxu0 0.0
        %433 = vmatmul.mubr.f32.gmra.mrb[0].mxu0 %v289
        %v434 = vpop.f32.mrb[0].mxu0
        %v435 = vadd.f32 0.0, %v434
        %v436 = vpop.f32.mrb[0].mxu0
        %437 = vmatprep.mubr.f32.mxu0 0.0
        %438 = vmatmul.mubr.f32.gmra.mrb[0].mxu0 %v292
        %v439 = vpop.f32.mrb[0].mxu0
        %v440 = vadd.f32 0.0, %v439
        %v441 = vpop.f32.mrb[0].mxu0
        %442 = vmatprep.mubr.f32.mxu0 0.0
        %443 = vmatmul.mubr.f32.gmra.mrb[0].mxu0 %v295
        %v444 = vpop.f32.mrb[0].mxu0
        %v445 = vadd.f32 0.0, %v444
        %v446 = vpop.f32.mrb[0].mxu0
        %447 = vmatprep.mubr.f32.mxu0 0.0
        %448 = vmatmul.mubr.f32.gmra.mrb[0].mxu0 %v298
        %v449 = vpop.f32.mrb[0].mxu0
        %v450 = vadd.f32 0.0, %v449
        %v451 = vpop.f32.mrb[0].mxu0
        %452 = vmatprep.mubr.f32.mxu0 0.0
        %453 = vmatmul.mubr.f32.gmra.mrb[0].mxu0 %v301
        %v454 = vpop.f32.mrb[0].mxu0
        %v455 = vadd.f32 0.0, %v454
        %v456 = vpop.f32.mrb[0].mxu0
        %457 = vmatprep.mubr.f32.mxu0 0.0
        %458 = vmatmul.mubr.f32.gmra.mrb[0].mxu0 %v304
        %v459 = vpop.f32.mrb[0].mxu0
        %v460 = vadd.f32 0.0, %v459
        %v461 = vpop.f32.mrb[0].mxu0
        %462 = vmatprep.mubr.f32.mxu0 0.0
        %463 = vmatmul.mubr.f32.gmra.mrb[0].mxu0 %v307
        %v464 = vpop.f32.mrb[0].mxu0
        %v465 = vadd.f32 0.0, %v464
        %v466 = vpop.f32.mrb[0].mxu0
        %467 = vmatprep.mubr.f32.mxu0 0.0
        %468 = vmatmul.mubr.f32.gmra.mrb[0].mxu0 %v310
        %v469 = vpop.f32.mrb[0].mxu0
        %v470 = vadd.f32 0.0, %v469
        %v471 = vpop.f32.mrb[0].mxu0
        %472 = vmatprep.mubr.f32.mxu0 0.0
        %473 = vmatmul.mubr.f32.gmra.mrb[0].mxu0 %v313
        %v474 = vpop.f32.mrb[0].mxu0
        %v475 = vadd.f32 0.0, %v474
        %v476 = vpop.f32.mrb[0].mxu0
        %477 = vmatprep.mubr.f32.mxu0 0.0
        %478 = vmatmul.mubr.f32.gmra.mrb[0].mxu0 %v316
        %v479 = vpop.f32.mrb[0].mxu0
        %v480 = vadd.f32 0.0, %v479
        %v481 = vpop.f32.mrb[0].mxu0
        %482 = vmatprep.mubr.f32.mxu0 0.0
        %483 = vmatmul.mubr.f32.gmra.mrb[0].mxu0 %v319
        %v484 = vpop.f32.mrb[0].mxu0
        %v485 = vadd.f32 0.0, %v484
        %v486 = vpop.f32.mrb[0].mxu0
        %487 = vmatprep.mubr.f32.mxu0 0.0
        %488 = vmatmul.mubr.f32.gmra.mrb[0].mxu0 %v322
        %v489 = vpop.f32.mrb[0].mxu0
        %v490 = vadd.f32 0.0, %v489
        %v491 = vpop.f32.mrb[0].mxu0
        %492 = vdwg.mxu0
        %497 = vrot.lane.b32.xlu0 %v415, 127
        %v498 = vpop.permute.xlu0 %497
        %499 = vrot.lane.b32.xlu0 %v420, 127
        %v500 = vpop.permute.xlu0 %499
        %501 = vrot.lane.b32.xlu0 %v425, 127
        %v502 = vpop.permute.xlu0 %501
        %503 = vrot.lane.b32.xlu0 %v430, 127
        %v504 = vpop.permute.xlu0 %503
        %v509 = vadd.f32 %v395, %v498
        %v510 = vadd.f32 %v400, %v500
        %v511 = vadd.f32 %v405, %v502
        %v512 = vadd.f32 %v410, %v504
        %517 = vrot.lane.b32.xlu0 %v435, 126
        %v518 = vpop.permute.xlu0 %517
        %519 = vrot.lane.b32.xlu0 %v440, 126
        %v520 = vpop.permute.xlu0 %519
        %521 = vrot.lane.b32.xlu0 %v445, 126
        %v522 = vpop.permute.xlu0 %521
        %523 = vrot.lane.b32.xlu0 %v450, 126
        %v524 = vpop.permute.xlu0 %523
        %v529 = vadd.f32 %v509, %v518
        %v530 = vadd.f32 %v510, %v520
        %v531 = vadd.f32 %v511, %v522
        %v532 = vadd.f32 %v512, %v524
        %537 = vrot.lane.b32.xlu0 %v455, 125
        %v538 = vpop.permute.xlu0 %537
        %539 = vrot.lane.b32.xlu0 %v460, 125
        %v540 = vpop.permute.xlu0 %539
        %541 = vrot.lane.b32.xlu0 %v465, 125
        %v542 = vpop.permute.xlu0 %541
        %543 = vrot.lane.b32.xlu0 %v470, 125
        %v544 = vpop.permute.xlu0 %543
        %v549 = vadd.f32 %v529, %v538
        %v550 = vadd.f32 %v530, %v540
        %v551 = vadd.f32 %v531, %v542
        %v552 = vadd.f32 %v532, %v544
        %557 = vrot.lane.b32.xlu0 %v475, 124
        %v558 = vpop.permute.xlu0 %557
        %559 = vrot.lane.b32.xlu0 %v480, 124
        %v560 = vpop.permute.xlu0 %559
        %561 = vrot.lane.b32.xlu0 %v485, 124
        %v562 = vpop.permute.xlu0 %561
        %563 = vrot.lane.b32.xlu0 %v490, 124
        %v564 = vpop.permute.xlu0 %563
        %v569 = vadd.f32 %v549, %v558
        %v570 = vadd.f32 %v550, %v560
        %v571 = vadd.f32 %v551, %v562
        %v572 = vadd.f32 %v552, %v564
        %s573 = smul.u32 %s230, 2
        %s574 = sadd.s32 %s573, 1
        %s575 = smul.u32 %s574, 5
        %s576 = sadd.s32 %s575, %s236
        %s577 = scalar_lea.vmem %s210, %s576
        %v578 = vld [vmem:[%s577] sm:$0xff]
        %v579 = vld [vmem:[%s577 + $0x8] sm:$0xff]
        %v580 = vld [vmem:[%s577 + $0x10] sm:$0xff]
        %v581 = vld [vmem:[%s577 + $0x18] sm:$0x1]
        %v583 = vsel %vm324, %v581, 0
        %585 = vmatprep.subr.mxu0 0.0
        %586 = vmatpush1.msra.mxu0 %v578
        %587 = vmatprep.subr.mxu0 0.0
        %588 = vmatpush1.msra.mxu0 %v579
        %589 = vmatprep.subr.mxu0 0.0
        %590 = vmatpush1.msra.mxu0 %v580
        %591 = vmatprep.subr.mxu0 0.0
        %592 = vmatpush1.msra.mxu0 %v583
        %593 = vmatprep.subr.mxu0 0.0
        %594 = vmatpush1.msra.mxu0 0.0
        %595 = vmatprep.subr.mxu0 0.0
        %596 = vmatpush1.msra.mxu0 0.0
        %597 = vmatprep.subr.mxu0 0.0
        %598 = vmatpush1.msra.mxu0 0.0
        %599 = vmatprep.subr.mxu0 0.0
        %600 = vmatpush1.msra.mxu0 0.0
        %601 = vmatprep.subr.mxu0 0.0
        %602 = vmatpush1.msra.mxu0 0.0
        %603 = vmatprep.subr.mxu0 0.0
        %604 = vmatpush1.msra.mxu0 0.0
        %605 = vmatprep.subr.mxu0 0.0
        %606 = vmatpush1.msra.mxu0 0.0
        %607 = vmatprep.subr.mxu0 0.0
        %608 = vmatpush1.msra.mxu0 0.0
        %609 = vmatprep.subr.mxu0 0.0
        %610 = vmatpush1.msra.mxu0 0.0
        %611 = vmatprep.subr.mxu0 0.0
        %612 = vmatpush1.msra.mxu0 0.0
        %613 = vmatprep.subr.mxu0 0.0
        %614 = vmatpush1.msra.mxu0 0.0
        %615 = vmatprep.subr.mxu0 0.0
        %616 = vmatpush1.msra.mxu0 0.0
        %617 = vmatprep.subr.mxu0 0.0
        %618 = vmatpush1.msra.mxu0 0.0
        %619 = vmatprep.subr.mxu0 0.0
        %620 = vmatpush1.msra.mxu0 0.0
        %621 = vmatprep.subr.mxu0 0.0
        %622 = vmatpush1.msra.mxu0 0.0
        %623 = vmatprep.subr.mxu0 0.0
        %624 = vmatpush1.msra.mxu0 0.0
        %625 = vmatprep.subr.mxu0 0.0
        %626 = vmatpush1.msra.mxu0 0.0
        %627 = vmatprep.subr.mxu0 0.0
        %628 = vmatpush1.msra.mxu0 0.0
        %629 = vmatprep.subr.mxu0 0.0
        %630 = vmatpush1.msra.mxu0 0.0
        %631 = vmatprep.subr.mxu0 0.0
        %632 = vmatpush1.msra.mxu0 0.0
        %633 = vmatprep.subr.mxu0 0.0
        %634 = vmatpush1.msra.mxu0 0.0
        %635 = vmatprep.subr.mxu0 0.0
        %636 = vmatpush1.msra.mxu0 0.0
        %637 = vmatprep.subr.mxu0 0.0
        %638 = vmatpush1.msra.mxu0 0.0
        %639 = vmatprep.subr.mxu0 0.0
        %640 = vmatpush1.msra.mxu0 0.0
        %641 = vmatprep.subr.mxu0 0.0
        %642 = vmatpush1.msra.mxu0 0.0
        %643 = vmatprep.subr.mxu0 0.0
        %644 = vmatpush1.msra.mxu0 0.0
        %645 = vmatprep.subr.mxu0 0.0
        %646 = vmatpush1.msra.mxu0 0.0
        %647 = vmatprep.subr.mxu0 0.0
        %648 = vmatpush1.msra.mxu0 0.0
        %649 = vmatprep.mubr.f32.mxu0 0.0
        %650 = vmatmul.mubr.f32.gmra.mrb[0].mxu0 %v265
        %v651 = vpop.f32.mrb[0].mxu0
        %v652 = vadd.f32 0.0, %v651
        %v653 = vpop.f32.mrb[0].mxu0
        %654 = vmatprep.mubr.f32.mxu0 0.0
        %655 = vmatmul.mubr.f32.gmra.mrb[0].mxu0 %v268
        %v656 = vpop.f32.mrb[0].mxu0
        %v657 = vadd.f32 0.0, %v656
        %v658 = vpop.f32.mrb[0].mxu0
        %659 = vmatprep.mubr.f32.mxu0 0.0
        %660 = vmatmul.mubr.f32.gmra.mrb[0].mxu0 %v271
        %v661 = vpop.f32.mrb[0].mxu0
        %v662 = vadd.f32 0.0, %v661
        %v663 = vpop.f32.mrb[0].mxu0
        %664 = vmatprep.mubr.f32.mxu0 0.0
        %665 = vmatmul.mubr.f32.gmra.mrb[0].mxu0 %v274
        %v666 = vpop.f32.mrb[0].mxu0
        %v667 = vadd.f32 0.0, %v666
        %v668 = vpop.f32.mrb[0].mxu0
        %669 = vmatprep.mubr.f32.mxu0 0.0
        %670 = vmatmul.mubr.f32.gmra.mrb[0].mxu0 %v277
        %v671 = vpop.f32.mrb[0].mxu0
        %v672 = vadd.f32 0.0, %v671
        %v673 = vpop.f32.mrb[0].mxu0
        %674 = vmatprep.mubr.f32.mxu0 0.0
        %675 = vmatmul.mubr.f32.gmra.mrb[0].mxu0 %v280
        %v676 = vpop.f32.mrb[0].mxu0
        %v677 = vadd.f32 0.0, %v676
        %v678 = vpop.f32.mrb[0].mxu0
        %679 = vmatprep.mubr.f32.mxu0 0.0
        %680 = vmatmul.mubr.f32.gmra.mrb[0].mxu0 %v283
        %v681 = vpop.f32.mrb[0].mxu0
        %v682 = vadd.f32 0.0, %v681
        %v683 = vpop.f32.mrb[0].mxu0
        %684 = vmatprep.mubr.f32.mxu0 0.0
        %685 = vmatmul.mubr.f32.gmra.mrb[0].mxu0 %v286
        %v686 = vpop.f32.mrb[0].mxu0
        %v687 = vadd.f32 0.0, %v686
        %v688 = vpop.f32.mrb[0].mxu0
        %689 = vmatprep.mubr.f32.mxu0 0.0
        %690 = vmatmul.mubr.f32.gmra.mrb[0].mxu0 %v289
        %v691 = vpop.f32.mrb[0].mxu0
        %v692 = vadd.f32 0.0, %v691
        %v693 = vpop.f32.mrb[0].mxu0
        %694 = vmatprep.mubr.f32.mxu0 0.0
        %695 = vmatmul.mubr.f32.gmra.mrb[0].mxu0 %v292
        %v696 = vpop.f32.mrb[0].mxu0
        %v697 = vadd.f32 0.0, %v696
        %v698 = vpop.f32.mrb[0].mxu0
        %699 = vmatprep.mubr.f32.mxu0 0.0
        %700 = vmatmul.mubr.f32.gmra.mrb[0].mxu0 %v295
        %v701 = vpop.f32.mrb[0].mxu0
        %v702 = vadd.f32 0.0, %v701
        %v703 = vpop.f32.mrb[0].mxu0
        %704 = vmatprep.mubr.f32.mxu0 0.0
        %705 = vmatmul.mubr.f32.gmra.mrb[0].mxu0 %v298
        %v706 = vpop.f32.mrb[0].mxu0
        %v707 = vadd.f32 0.0, %v706
        %v708 = vpop.f32.mrb[0].mxu0
        %709 = vmatprep.mubr.f32.mxu0 0.0
        %710 = vmatmul.mubr.f32.gmra.mrb[0].mxu0 %v301
        %v711 = vpop.f32.mrb[0].mxu0
        %v712 = vadd.f32 0.0, %v711
        %v713 = vpop.f32.mrb[0].mxu0
        %714 = vmatprep.mubr.f32.mxu0 0.0
        %715 = vmatmul.mubr.f32.gmra.mrb[0].mxu0 %v304
        %v716 = vpop.f32.mrb[0].mxu0
        %v717 = vadd.f32 0.0, %v716
        %v718 = vpop.f32.mrb[0].mxu0
        %719 = vmatprep.mubr.f32.mxu0 0.0
        %720 = vmatmul.mubr.f32.gmra.mrb[0].mxu0 %v307
        %v721 = vpop.f32.mrb[0].mxu0
        %v722 = vadd.f32 0.0, %v721
        %v723 = vpop.f32.mrb[0].mxu0
        %724 = vmatprep.mubr.f32.mxu0 0.0
        %725 = vmatmul.mubr.f32.gmra.mrb[0].mxu0 %v310
        %v726 = vpop.f32.mrb[0].mxu0
        %v727 = vadd.f32 0.0, %v726
        %v728 = vpop.f32.mrb[0].mxu0
        %729 = vmatprep.mubr.f32.mxu0 0.0
        %730 = vmatmul.mubr.f32.gmra.mrb[0].mxu0 %v313
        %v731 = vpop.f32.mrb[0].mxu0
        %v732 = vadd.f32 0.0, %v731
        %v733 = vpop.f32.mrb[0].mxu0
        %734 = vmatprep.mubr.f32.mxu0 0.0
        %735 = vmatmul.mubr.f32.gmra.mrb[0].mxu0 %v316
        %v736 = vpop.f32.mrb[0].mxu0
        %v737 = vadd.f32 0.0, %v736
        %v738 = vpop.f32.mrb[0].mxu0
        %739 = vmatprep.mubr.f32.mxu0 0.0
        %740 = vmatmul.mubr.f32.gmra.mrb[0].mxu0 %v319
        %v741 = vpop.f32.mrb[0].mxu0
        %v742 = vadd.f32 0.0, %v741
        %v743 = vpop.f32.mrb[0].mxu0
        %744 = vmatprep.mubr.f32.mxu0 0.0
        %745 = vmatmul.mubr.f32.gmra.mrb[0].mxu0 %v322
        %v746 = vpop.f32.mrb[0].mxu0
        %v747 = vadd.f32 0.0, %v746
        %v748 = vpop.f32.mrb[0].mxu0
        %749 = vdwg.mxu0
        %754 = vrot.lane.b32.xlu0 %v672, 127
        %v755 = vpop.permute.xlu0 %754
        %756 = vrot.lane.b32.xlu0 %v677, 127
        %v757 = vpop.permute.xlu0 %756
        %758 = vrot.lane.b32.xlu0 %v682, 127
        %v759 = vpop.permute.xlu0 %758
        %760 = vrot.lane.b32.xlu0 %v687, 127
        %v761 = vpop.permute.xlu0 %760
        %v766 = vadd.f32 %v652, %v755
        %v767 = vadd.f32 %v657, %v757
        %v768 = vadd.f32 %v662, %v759
        %v769 = vadd.f32 %v667, %v761
        %774 = vrot.lane.b32.xlu0 %v692, 126
        %v775 = vpop.permute.xlu0 %774
        %776 = vrot.lane.b32.xlu0 %v697, 126
        %v777 = vpop.permute.xlu0 %776
        %778 = vrot.lane.b32.xlu0 %v702, 126
        %v779 = vpop.permute.xlu0 %778
        %780 = vrot.lane.b32.xlu0 %v707, 126
        %v781 = vpop.permute.xlu0 %780
        %v786 = vadd.f32 %v766, %v775
        %v787 = vadd.f32 %v767, %v777
        %v788 = vadd.f32 %v768, %v779
        %v789 = vadd.f32 %v769, %v781
        %794 = vrot.lane.b32.xlu0 %v712, 125
        %v795 = vpop.permute.xlu0 %794
        %796 = vrot.lane.b32.xlu0 %v717, 125
        %v797 = vpop.permute.xlu0 %796
        %798 = vrot.lane.b32.xlu0 %v722, 125
        %v799 = vpop.permute.xlu0 %798
        %800 = vrot.lane.b32.xlu0 %v727, 125
        %v801 = vpop.permute.xlu0 %800
        %v806 = vadd.f32 %v786, %v795
        %v807 = vadd.f32 %v787, %v797
        %v808 = vadd.f32 %v788, %v799
        %v809 = vadd.f32 %v789, %v801
        %814 = vrot.lane.b32.xlu0 %v732, 124
        %v815 = vpop.permute.xlu0 %814
        %816 = vrot.lane.b32.xlu0 %v737, 124
        %v817 = vpop.permute.xlu0 %816
        %818 = vrot.lane.b32.xlu0 %v742, 124
        %v819 = vpop.permute.xlu0 %818
        %820 = vrot.lane.b32.xlu0 %v747, 124
        %v821 = vpop.permute.xlu0 %820
        %v826 = vadd.f32 %v806, %v815
        %v827 = vadd.f32 %v807, %v817
        %v828 = vadd.f32 %v808, %v819
        %v829 = vadd.f32 %v809, %v821
        %v830 = vmax.f32 %v569, %v826
        %v831 = vmax.f32 %v570, %v827
        %v832 = vmax.f32 %v571, %v828
        %v833 = vmax.f32 %v572, %v829
        %s834 = sadd.s32 %s220, 1
        %s835 = smul.u32 %s834, 184
        %s836 = sadd.s32 %s235, %s835
        %s837 = scalar_lea.vmem %s210, %s836
        %v838 = vld [vmem:[%s837] sm:$0xff]
        %v839 = vld [vmem:[%s837 + $0x8] sm:$0xff]
        %v840 = vld [vmem:[%s837 + $0x10] sm:$0xff]
        %v841 = vld [vmem:[%s837 + $0x18] sm:$0x1]
        %v843 = vsel %vm324, %v841, 0
        %845 = vmatprep.subr.mxu0 0.0
        %846 = vmatpush1.msra.mxu0 %v838
        %847 = vmatprep.subr.mxu0 0.0
        %848 = vmatpush1.msra.mxu0 %v839
        %849 = vmatprep.subr.mxu0 0.0
        %850 = vmatpush1.msra.mxu0 %v840
        %851 = vmatprep.subr.mxu0 0.0
        %852 = vmatpush1.msra.mxu0 %v843
        %853 = vmatprep.subr.mxu0 0.0
        %854 = vmatpush1.msra.mxu0 0.0
        %855 = vmatprep.subr.mxu0 0.0
        %856 = vmatpush1.msra.mxu0 0.0
        %857 = vmatprep.subr.mxu0 0.0
        %858 = vmatpush1.msra.mxu0 0.0
        %859 = vmatprep.subr.mxu0 0.0
        %860 = vmatpush1.msra.mxu0 0.0
        %861 = vmatprep.subr.mxu0 0.0
        %862 = vmatpush1.msra.mxu0 0.0
        %863 = vmatprep.subr.mxu0 0.0
        %864 = vmatpush1.msra.mxu0 0.0
        %865 = vmatprep.subr.mxu0 0.0
        %866 = vmatpush1.msra.mxu0 0.0
        %867 = vmatprep.subr.mxu0 0.0
        %868 = vmatpush1.msra.mxu0 0.0
        %869 = vmatprep.subr.mxu0 0.0
        %870 = vmatpush1.msra.mxu0 0.0
        %871 = vmatprep.subr.mxu0 0.0
        %872 = vmatpush1.msra.mxu0 0.0
        %873 = vmatprep.subr.mxu0 0.0
        %874 = vmatpush1.msra.mxu0 0.0
        %875 = vmatprep.subr.mxu0 0.0
        %876 = vmatpush1.msra.mxu0 0.0
        %877 = vmatprep.subr.mxu0 0.0
        %878 = vmatpush1.msra.mxu0 0.0
        %879 = vmatprep.subr.mxu0 0.0
        %880 = vmatpush1.msra.mxu0 0.0
        %881 = vmatprep.subr.mxu0 0.0
        %882 = vmatpush1.msra.mxu0 0.0
        %883 = vmatprep.subr.mxu0 0.0
        %884 = vmatpush1.msra.mxu0 0.0
        %885 = vmatprep.subr.mxu0 0.0
        %886 = vmatpush1.msra.mxu0 0.0
        %887 = vmatprep.subr.mxu0 0.0
        %888 = vmatpush1.msra.mxu0 0.0
        %889 = vmatprep.subr.mxu0 0.0
        %890 = vmatpush1.msra.mxu0 0.0
        %891 = vmatprep.subr.mxu0 0.0
        %892 = vmatpush1.msra.mxu0 0.0
        %893 = vmatprep.subr.mxu0 0.0
        %894 = vmatpush1.msra.mxu0 0.0
        %895 = vmatprep.subr.mxu0 0.0
        %896 = vmatpush1.msra.mxu0 0.0
        %897 = vmatprep.subr.mxu0 0.0
        %898 = vmatpush1.msra.mxu0 0.0
        %899 = vmatprep.subr.mxu0 0.0
        %900 = vmatpush1.msra.mxu0 0.0
        %901 = vmatprep.subr.mxu0 0.0
        %902 = vmatpush1.msra.mxu0 0.0
        %903 = vmatprep.subr.mxu0 0.0
        %904 = vmatpush1.msra.mxu0 0.0
        %905 = vmatprep.subr.mxu0 0.0
        %906 = vmatpush1.msra.mxu0 0.0
        %907 = vmatprep.subr.mxu0 0.0
        %908 = vmatpush1.msra.mxu0 0.0
        %909 = vmatprep.mubr.f32.mxu0 0.0
        %910 = vmatmul.mubr.f32.gmra.mrb[0].mxu0 %v265
        %v911 = vpop.f32.mrb[0].mxu0
        %v912 = vadd.f32 0.0, %v911
        %v913 = vpop.f32.mrb[0].mxu0
        %914 = vmatprep.mubr.f32.mxu0 0.0
        %915 = vmatmul.mubr.f32.gmra.mrb[0].mxu0 %v268
        %v916 = vpop.f32.mrb[0].mxu0
        %v917 = vadd.f32 0.0, %v916
        %v918 = vpop.f32.mrb[0].mxu0
        %919 = vmatprep.mubr.f32.mxu0 0.0
        %920 = vmatmul.mubr.f32.gmra.mrb[0].mxu0 %v271
        %v921 = vpop.f32.mrb[0].mxu0
        %v922 = vadd.f32 0.0, %v921
        %v923 = vpop.f32.mrb[0].mxu0
        %924 = vmatprep.mubr.f32.mxu0 0.0
        %925 = vmatmul.mubr.f32.gmra.mrb[0].mxu0 %v274
        %v926 = vpop.f32.mrb[0].mxu0
        %v927 = vadd.f32 0.0, %v926
        %v928 = vpop.f32.mrb[0].mxu0
        %929 = vmatprep.mubr.f32.mxu0 0.0
        %930 = vmatmul.mubr.f32.gmra.mrb[0].mxu0 %v277
        %v931 = vpop.f32.mrb[0].mxu0
        %v932 = vadd.f32 0.0, %v931
        %v933 = vpop.f32.mrb[0].mxu0
        %934 = vmatprep.mubr.f32.mxu0 0.0
        %935 = vmatmul.mubr.f32.gmra.mrb[0].mxu0 %v280
        %v936 = vpop.f32.mrb[0].mxu0
        %v937 = vadd.f32 0.0, %v936
        %v938 = vpop.f32.mrb[0].mxu0
        %939 = vmatprep.mubr.f32.mxu0 0.0
        %940 = vmatmul.mubr.f32.gmra.mrb[0].mxu0 %v283
        %v941 = vpop.f32.mrb[0].mxu0
        %v942 = vadd.f32 0.0, %v941
        %v943 = vpop.f32.mrb[0].mxu0
        %944 = vmatprep.mubr.f32.mxu0 0.0
        %945 = vmatmul.mubr.f32.gmra.mrb[0].mxu0 %v286
        %v946 = vpop.f32.mrb[0].mxu0
        %v947 = vadd.f32 0.0, %v946
        %v948 = vpop.f32.mrb[0].mxu0
        %949 = vmatprep.mubr.f32.mxu0 0.0
        %950 = vmatmul.mubr.f32.gmra.mrb[0].mxu0 %v289
        %v951 = vpop.f32.mrb[0].mxu0
        %v952 = vadd.f32 0.0, %v951
        %v953 = vpop.f32.mrb[0].mxu0
        %954 = vmatprep.mubr.f32.mxu0 0.0
        %955 = vmatmul.mubr.f32.gmra.mrb[0].mxu0 %v292
        %v956 = vpop.f32.mrb[0].mxu0
        %v957 = vadd.f32 0.0, %v956
        %v958 = vpop.f32.mrb[0].mxu0
        %959 = vmatprep.mubr.f32.mxu0 0.0
        %960 = vmatmul.mubr.f32.gmra.mrb[0].mxu0 %v295
        %v961 = vpop.f32.mrb[0].mxu0
        %v962 = vadd.f32 0.0, %v961
        %v963 = vpop.f32.mrb[0].mxu0
        %964 = vmatprep.mubr.f32.mxu0 0.0
        %965 = vmatmul.mubr.f32.gmra.mrb[0].mxu0 %v298
        %v966 = vpop.f32.mrb[0].mxu0
        %v967 = vadd.f32 0.0, %v966
        %v968 = vpop.f32.mrb[0].mxu0
        %969 = vmatprep.mubr.f32.mxu0 0.0
        %970 = vmatmul.mubr.f32.gmra.mrb[0].mxu0 %v301
        %v971 = vpop.f32.mrb[0].mxu0
        %v972 = vadd.f32 0.0, %v971
        %v973 = vpop.f32.mrb[0].mxu0
        %974 = vmatprep.mubr.f32.mxu0 0.0
        %975 = vmatmul.mubr.f32.gmra.mrb[0].mxu0 %v304
        %v976 = vpop.f32.mrb[0].mxu0
        %v977 = vadd.f32 0.0, %v976
        %v978 = vpop.f32.mrb[0].mxu0
        %979 = vmatprep.mubr.f32.mxu0 0.0
        %980 = vmatmul.mubr.f32.gmra.mrb[0].mxu0 %v307
        %v981 = vpop.f32.mrb[0].mxu0
        %v982 = vadd.f32 0.0, %v981
        %v983 = vpop.f32.mrb[0].mxu0
        %984 = vmatprep.mubr.f32.mxu0 0.0
        %985 = vmatmul.mubr.f32.gmra.mrb[0].mxu0 %v310
        %v986 = vpop.f32.mrb[0].mxu0
        %v987 = vadd.f32 0.0, %v986
        %v988 = vpop.f32.mrb[0].mxu0
        %989 = vmatprep.mubr.f32.mxu0 0.0
        %990 = vmatmul.mubr.f32.gmra.mrb[0].mxu0 %v313
        %v991 = vpop.f32.mrb[0].mxu0
        %v992 = vadd.f32 0.0, %v991
        %v993 = vpop.f32.mrb[0].mxu0
        %994 = vmatprep.mubr.f32.mxu0 0.0
        %995 = vmatmul.mubr.f32.gmra.mrb[0].mxu0 %v316
        %v996 = vpop.f32.mrb[0].mxu0
        %v997 = vadd.f32 0.0, %v996
        %v998 = vpop.f32.mrb[0].mxu0
        %999 = vmatprep.mubr.f32.mxu0 0.0
        %1000 = vmatmul.mubr.f32.gmra.mrb[0].mxu0 %v319
        %v1001 = vpop.f32.mrb[0].mxu0
        %v1002 = vadd.f32 0.0, %v1001
        %v1003 = vpop.f32.mrb[0].mxu0
        %1004 = vmatprep.mubr.f32.mxu0 0.0
        %1005 = vmatmul.mubr.f32.gmra.mrb[0].mxu0 %v322
        %v1006 = vpop.f32.mrb[0].mxu0
        %v1007 = vadd.f32 0.0, %v1006
        %v1008 = vpop.f32.mrb[0].mxu0
        %1009 = vdwg.mxu0
        %1014 = vrot.lane.b32.xlu0 %v932, 127
        %v1015 = vpop.permute.xlu0 %1014
        %1016 = vrot.lane.b32.xlu0 %v937, 127
        %v1017 = vpop.permute.xlu0 %1016
        %1018 = vrot.lane.b32.xlu0 %v942, 127
        %v1019 = vpop.permute.xlu0 %1018
        %1020 = vrot.lane.b32.xlu0 %v947, 127
        %v1021 = vpop.permute.xlu0 %1020
        %v1026 = vadd.f32 %v912, %v1015
        %v1027 = vadd.f32 %v917, %v1017
        %v1028 = vadd.f32 %v922, %v1019
        %v1029 = vadd.f32 %v927, %v1021
        %1034 = vrot.lane.b32.xlu0 %v952, 126
        %v1035 = vpop.permute.xlu0 %1034
        %1036 = vrot.lane.b32.xlu0 %v957, 126
        %v1037 = vpop.permute.xlu0 %1036
        %1038 = vrot.lane.b32.xlu0 %v962, 126
        %v1039 = vpop.permute.xlu0 %1038
        %1040 = vrot.lane.b32.xlu0 %v967, 126
        %v1041 = vpop.permute.xlu0 %1040
        %v1046 = vadd.f32 %v1026, %v1035
        %v1047 = vadd.f32 %v1027, %v1037
        %v1048 = vadd.f32 %v1028, %v1039
        %v1049 = vadd.f32 %v1029, %v1041
        %1054 = vrot.lane.b32.xlu0 %v972, 125
        %v1055 = vpop.permute.xlu0 %1054
        %1056 = vrot.lane.b32.xlu0 %v977, 125
        %v1057 = vpop.permute.xlu0 %1056
        %1058 = vrot.lane.b32.xlu0 %v982, 125
        %v1059 = vpop.permute.xlu0 %1058
        %1060 = vrot.lane.b32.xlu0 %v987, 125
        %v1061 = vpop.permute.xlu0 %1060
        %v1066 = vadd.f32 %v1046, %v1055
        %v1067 = vadd.f32 %v1047, %v1057
        %v1068 = vadd.f32 %v1048, %v1059
        %v1069 = vadd.f32 %v1049, %v1061
        %1074 = vrot.lane.b32.xlu0 %v992, 124
        %v1075 = vpop.permute.xlu0 %1074
        %1076 = vrot.lane.b32.xlu0 %v997, 124
        %v1077 = vpop.permute.xlu0 %1076
        %1078 = vrot.lane.b32.xlu0 %v1002, 124
        %v1079 = vpop.permute.xlu0 %1078
        %1080 = vrot.lane.b32.xlu0 %v1007, 124
        %v1081 = vpop.permute.xlu0 %1080
        %v1086 = vadd.f32 %v1066, %v1075
        %v1087 = vadd.f32 %v1067, %v1077
        %v1088 = vadd.f32 %v1068, %v1079
        %v1089 = vadd.f32 %v1069, %v1081
        %v1090 = vmax.f32 %v830, %v1086
        %v1091 = vmax.f32 %v831, %v1087
        %v1092 = vmax.f32 %v832, %v1088
        %v1093 = vmax.f32 %v833, %v1089
        %s1094 = sadd.s32 %s575, %s835
        %s1095 = scalar_lea.vmem %s210, %s1094
        %v1096 = vld [vmem:[%s1095] sm:$0xff]
        %v1097 = vld [vmem:[%s1095 + $0x8] sm:$0xff]
        %v1098 = vld [vmem:[%s1095 + $0x10] sm:$0xff]
        %v1099 = vld [vmem:[%s1095 + $0x18] sm:$0x1]
        %v1101 = vsel %vm324, %v1099, 0
        %1103 = vmatprep.subr.mxu0 0.0
        %1104 = vmatpush1.msra.mxu0 %v1096
        %1105 = vmatprep.subr.mxu0 0.0
        %1106 = vmatpush1.msra.mxu0 %v1097
        %1107 = vmatprep.subr.mxu0 0.0
        %1108 = vmatpush1.msra.mxu0 %v1098
        %1109 = vmatprep.subr.mxu0 0.0
        %1110 = vmatpush1.msra.mxu0 %v1101
        %1111 = vmatprep.subr.mxu0 0.0
        %1112 = vmatpush1.msra.mxu0 0.0
        %1113 = vmatprep.subr.mxu0 0.0
        %1114 = vmatpush1.msra.mxu0 0.0
        %1115 = vmatprep.subr.mxu0 0.0
        %1116 = vmatpush1.msra.mxu0 0.0
        %1117 = vmatprep.subr.mxu0 0.0
        %1118 = vmatpush1.msra.mxu0 0.0
        %1119 = vmatprep.subr.mxu0 0.0
        %1120 = vmatpush1.msra.mxu0 0.0
        %1121 = vmatprep.subr.mxu0 0.0
        %1122 = vmatpush1.msra.mxu0 0.0
        %1123 = vmatprep.subr.mxu0 0.0
        %1124 = vmatpush1.msra.mxu0 0.0
        %1125 = vmatprep.subr.mxu0 0.0
        %1126 = vmatpush1.msra.mxu0 0.0
        %1127 = vmatprep.subr.mxu0 0.0
        %1128 = vmatpush1.msra.mxu0 0.0
        %1129 = vmatprep.subr.mxu0 0.0
        %1130 = vmatpush1.msra.mxu0 0.0
        %1131 = vmatprep.subr.mxu0 0.0
        %1132 = vmatpush1.msra.mxu0 0.0
        %1133 = vmatprep.subr.mxu0 0.0
        %1134 = vmatpush1.msra.mxu0 0.0
        %1135 = vmatprep.subr.mxu0 0.0
        %1136 = vmatpush1.msra.mxu0 0.0
        %1137 = vmatprep.subr.mxu0 0.0
        %1138 = vmatpush1.msra.mxu0 0.0
        %1139 = vmatprep.subr.mxu0 0.0
        %1140 = vmatpush1.msra.mxu0 0.0
        %1141 = vmatprep.subr.mxu0 0.0
        %1142 = vmatpush1.msra.mxu0 0.0
        %1143 = vmatprep.subr.mxu0 0.0
        %1144 = vmatpush1.msra.mxu0 0.0
        %1145 = vmatprep.subr.mxu0 0.0
        %1146 = vmatpush1.msra.mxu0 0.0
        %1147 = vmatprep.subr.mxu0 0.0
        %1148 = vmatpush1.msra.mxu0 0.0
        %1149 = vmatprep.subr.mxu0 0.0
        %1150 = vmatpush1.msra.mxu0 0.0
        %1151 = vmatprep.subr.mxu0 0.0
        %1152 = vmatpush1.msra.mxu0 0.0
        %1153 = vmatprep.subr.mxu0 0.0
        %1154 = vmatpush1.msra.mxu0 0.0
        %1155 = vmatprep.subr.mxu0 0.0
        %1156 = vmatpush1.msra.mxu0 0.0
        %1157 = vmatprep.subr.mxu0 0.0
        %1158 = vmatpush1.msra.mxu0 0.0
        %1159 = vmatprep.subr.mxu0 0.0
        %1160 = vmatpush1.msra.mxu0 0.0
        %1161 = vmatprep.subr.mxu0 0.0
        %1162 = vmatpush1.msra.mxu0 0.0
        %1163 = vmatprep.subr.mxu0 0.0
        %1164 = vmatpush1.msra.mxu0 0.0
        %1165 = vmatprep.subr.mxu0 0.0
        %1166 = vmatpush1.msra.mxu0 0.0
        %1167 = vmatprep.mubr.f32.mxu0 0.0
        %1168 = vmatmul.mubr.f32.gmra.mrb[0].mxu0 %v265
        %v1169 = vpop.f32.mrb[0].mxu0
        %v1170 = vadd.f32 0.0, %v1169
        %v1171 = vpop.f32.mrb[0].mxu0
        %1172 = vmatprep.mubr.f32.mxu0 0.0
        %1173 = vmatmul.mubr.f32.gmra.mrb[0].mxu0 %v268
        %v1174 = vpop.f32.mrb[0].mxu0
        %v1175 = vadd.f32 0.0, %v1174
        %v1176 = vpop.f32.mrb[0].mxu0
        %1177 = vmatprep.mubr.f32.mxu0 0.0
        %1178 = vmatmul.mubr.f32.gmra.mrb[0].mxu0 %v271
        %v1179 = vpop.f32.mrb[0].mxu0
        %v1180 = vadd.f32 0.0, %v1179
        %v1181 = vpop.f32.mrb[0].mxu0
        %1182 = vmatprep.mubr.f32.mxu0 0.0
        %1183 = vmatmul.mubr.f32.gmra.mrb[0].mxu0 %v274
        %v1184 = vpop.f32.mrb[0].mxu0
        %v1185 = vadd.f32 0.0, %v1184
        %v1186 = vpop.f32.mrb[0].mxu0
        %1187 = vmatprep.mubr.f32.mxu0 0.0
        %1188 = vmatmul.mubr.f32.gmra.mrb[0].mxu0 %v277
        %v1189 = vpop.f32.mrb[0].mxu0
        %v1190 = vadd.f32 0.0, %v1189
        %v1191 = vpop.f32.mrb[0].mxu0
        %1192 = vmatprep.mubr.f32.mxu0 0.0
        %1193 = vmatmul.mubr.f32.gmra.mrb[0].mxu0 %v280
        %v1194 = vpop.f32.mrb[0].mxu0
        %v1195 = vadd.f32 0.0, %v1194
        %v1196 = vpop.f32.mrb[0].mxu0
        %1197 = vmatprep.mubr.f32.mxu0 0.0
        %1198 = vmatmul.mubr.f32.gmra.mrb[0].mxu0 %v283
        %v1199 = vpop.f32.mrb[0].mxu0
        %v1200 = vadd.f32 0.0, %v1199
        %v1201 = vpop.f32.mrb[0].mxu0
        %1202 = vmatprep.mubr.f32.mxu0 0.0
        %1203 = vmatmul.mubr.f32.gmra.mrb[0].mxu0 %v286
        %v1204 = vpop.f32.mrb[0].mxu0
        %v1205 = vadd.f32 0.0, %v1204
        %v1206 = vpop.f32.mrb[0].mxu0
        %1207 = vmatprep.mubr.f32.mxu0 0.0
        %1208 = vmatmul.mubr.f32.gmra.mrb[0].mxu0 %v289
        %v1209 = vpop.f32.mrb[0].mxu0
        %v1210 = vadd.f32 0.0, %v1209
        %v1211 = vpop.f32.mrb[0].mxu0
        %1212 = vmatprep.mubr.f32.mxu0 0.0
        %1213 = vmatmul.mubr.f32.gmra.mrb[0].mxu0 %v292
        %v1214 = vpop.f32.mrb[0].mxu0
        %v1215 = vadd.f32 0.0, %v1214
        %v1216 = vpop.f32.mrb[0].mxu0
        %1217 = vmatprep.mubr.f32.mxu0 0.0
        %1218 = vmatmul.mubr.f32.gmra.mrb[0].mxu0 %v295
        %v1219 = vpop.f32.mrb[0].mxu0
        %v1220 = vadd.f32 0.0, %v1219
        %v1221 = vpop.f32.mrb[0].mxu0
        %1222 = vmatprep.mubr.f32.mxu0 0.0
        %1223 = vmatmul.mubr.f32.gmra.mrb[0].mxu0 %v298
        %v1224 = vpop.f32.mrb[0].mxu0
        %v1225 = vadd.f32 0.0, %v1224
        %v1226 = vpop.f32.mrb[0].mxu0
        %1227 = vmatprep.mubr.f32.mxu0 0.0
        %1228 = vmatmul.mubr.f32.gmra.mrb[0].mxu0 %v301
        %v1229 = vpop.f32.mrb[0].mxu0
        %v1230 = vadd.f32 0.0, %v1229
        %v1231 = vpop.f32.mrb[0].mxu0
        %1232 = vmatprep.mubr.f32.mxu0 0.0
        %1233 = vmatmul.mubr.f32.gmra.mrb[0].mxu0 %v304
        %v1234 = vpop.f32.mrb[0].mxu0
        %v1235 = vadd.f32 0.0, %v1234
        %v1236 = vpop.f32.mrb[0].mxu0
        %1237 = vmatprep.mubr.f32.mxu0 0.0
        %1238 = vmatmul.mubr.f32.gmra.mrb[0].mxu0 %v307
        %v1239 = vpop.f32.mrb[0].mxu0
        %v1240 = vadd.f32 0.0, %v1239
        %v1241 = vpop.f32.mrb[0].mxu0
        %1242 = vmatprep.mubr.f32.mxu0 0.0
        %1243 = vmatmul.mubr.f32.gmra.mrb[0].mxu0 %v310
        %v1244 = vpop.f32.mrb[0].mxu0
        %v1245 = vadd.f32 0.0, %v1244
        %v1246 = vpop.f32.mrb[0].mxu0
        %1247 = vmatprep.mubr.f32.mxu0 0.0
        %1248 = vmatmul.mubr.f32.gmra.mrb[0].mxu0 %v313
        %v1249 = vpop.f32.mrb[0].mxu0
        %v1250 = vadd.f32 0.0, %v1249
        %v1251 = vpop.f32.mrb[0].mxu0
        %1252 = vmatprep.mubr.f32.mxu0 0.0
        %1253 = vmatmul.mubr.f32.gmra.mrb[0].mxu0 %v316
        %v1254 = vpop.f32.mrb[0].mxu0
        %v1255 = vadd.f32 0.0, %v1254
        %v1256 = vpop.f32.mrb[0].mxu0
        %1257 = vmatprep.mubr.f32.mxu0 0.0
        %1258 = vmatmul.mubr.f32.gmra.mrb[0].mxu0 %v319
        %v1259 = vpop.f32.mrb[0].mxu0
        %v1260 = vadd.f32 0.0, %v1259
        %v1261 = vpop.f32.mrb[0].mxu0
        %1262 = vmatprep.mubr.f32.mxu0 0.0
        %1263 = vmatmul.mubr.f32.gmra.mrb[0].mxu0 %v322
        %v1264 = vpop.f32.mrb[0].mxu0
        %v1265 = vadd.f32 0.0, %v1264
        %v1266 = vpop.f32.mrb[0].mxu0
        %1267 = vdwg.mxu0
        %1272 = vrot.lane.b32.xlu0 %v1190, 127
        %v1273 = vpop.permute.xlu0 %1272
        %1274 = vrot.lane.b32.xlu0 %v1195, 127
        %v1275 = vpop.permute.xlu0 %1274
        %1276 = vrot.lane.b32.xlu0 %v1200, 127
        %v1277 = vpop.permute.xlu0 %1276
        %1278 = vrot.lane.b32.xlu0 %v1205, 127
        %v1279 = vpop.permute.xlu0 %1278
        %v1284 = vadd.f32 %v1170, %v1273
        %v1285 = vadd.f32 %v1175, %v1275
        %v1286 = vadd.f32 %v1180, %v1277
        %v1287 = vadd.f32 %v1185, %v1279
        %1292 = vrot.lane.b32.xlu0 %v1210, 126
        %v1293 = vpop.permute.xlu0 %1292
        %1294 = vrot.lane.b32.xlu0 %v1215, 126
        %v1295 = vpop.permute.xlu0 %1294
        %1296 = vrot.lane.b32.xlu0 %v1220, 126
        %v1297 = vpop.permute.xlu0 %1296
        %1298 = vrot.lane.b32.xlu0 %v1225, 126
        %v1299 = vpop.permute.xlu0 %1298
        %v1304 = vadd.f32 %v1284, %v1293
        %v1305 = vadd.f32 %v1285, %v1295
        %v1306 = vadd.f32 %v1286, %v1297
        %v1307 = vadd.f32 %v1287, %v1299
        %1312 = vrot.lane.b32.xlu0 %v1230, 125
        %v1313 = vpop.permute.xlu0 %1312
        %1314 = vrot.lane.b32.xlu0 %v1235, 125
        %v1315 = vpop.permute.xlu0 %1314
        %1316 = vrot.lane.b32.xlu0 %v1240, 125
        %v1317 = vpop.permute.xlu0 %1316
        %1318 = vrot.lane.b32.xlu0 %v1245, 125
        %v1319 = vpop.permute.xlu0 %1318
        %v1324 = vadd.f32 %v1304, %v1313
        %v1325 = vadd.f32 %v1305, %v1315
        %v1326 = vadd.f32 %v1306, %v1317
        %v1327 = vadd.f32 %v1307, %v1319
        %1332 = vrot.lane.b32.xlu0 %v1250, 124
        %v1333 = vpop.permute.xlu0 %1332
        %1334 = vrot.lane.b32.xlu0 %v1255, 124
        %v1335 = vpop.permute.xlu0 %1334
        %1336 = vrot.lane.b32.xlu0 %v1260, 124
        %v1337 = vpop.permute.xlu0 %1336
        %1338 = vrot.lane.b32.xlu0 %v1265, 124
        %v1339 = vpop.permute.xlu0 %1338
        %v1344 = vadd.f32 %v1324, %v1333
        %v1345 = vadd.f32 %v1325, %v1335
        %v1346 = vadd.f32 %v1326, %v1337
        %v1347 = vadd.f32 %v1327, %v1339
        %v1348 = vmax.f32 %v1090, %v1344
        %v1349 = vmax.f32 %v1091, %v1345
        %v1350 = vmax.f32 %v1092, %v1346
        %v1351 = vmax.f32 %v1093, %v1347
        %1353 = vset.pattern.permute.xlu0 0
        %1354 = vperm.xlu0 %1353, %v221
        %v1355 = vpop.permute.xlu0 %1354
        %1358 = vset.pattern.permute.xlu0 0
        %1359 = vperm.xlu0 %1358, %v222
        %v1360 = vpop.permute.xlu0 %1359
        %1363 = vset.pattern.permute.xlu0 0
        %1364 = vperm.xlu0 %1363, %v223
        %v1365 = vpop.permute.xlu0 %1364
        %1368 = vset.pattern.permute.xlu0 0
        %1369 = vperm.xlu0 %1368, %v224
        %v1370 = vpop.permute.xlu0 %1369
        %v1372 = vadd.f32 %v1348, %v1355
        %v1373 = vadd.f32 %v1349, %v1360
        %v1374 = vadd.f32 %v1350, %v1365
        %v1375 = vadd.f32 %v1351, %v1370
        %v1376 = vmax.f32 %v1372, 0.0
        %v1377 = vmax.f32 %v1373, 0.0
        %v1378 = vmax.f32 %v1374, 0.0
        %v1379 = vmax.f32 %v1375, 0.0
        %1384 = vrot.lane.b32.xlu0 %v1376, 127
        %v1385 = vpop.permute.xlu0 %1384
        %1386 = vrot.lane.b32.xlu0 %v1377, 127
        %v1387 = vpop.permute.xlu0 %1386
        %1388 = vrot.lane.b32.xlu0 %v1378, 127
        %v1389 = vpop.permute.xlu0 %1388
        %1390 = vrot.lane.b32.xlu0 %v1379, 127
        %v1391 = vpop.permute.xlu0 %1390
        %v1396 = vmax.f32 %v1376, %v1385
        %v1397 = vmax.f32 %v1377, %v1387
        %v1398 = vmax.f32 %v1378, %v1389
        %v1399 = vmax.f32 %v1379, %v1391
        %vm1400 = vcmask 220160
        %v1402 = vsel %vm1400, %v1396, 0
        %v1405 = vsel %vm1400, %v1397, 0
        %v1408 = vsel %vm1400, %v1398, 0
        %v1411 = vsel %vm1400, %v1399, 0
        %vm1413 = vcmask 1042432
        %v1415 = vsel %vm1413, %v228, 0
        %1417 = vmatprep.subr.mxu0 0.0
        %1418 = vmatpush1.msra.mxu0 %v225
        %1419 = vmatprep.subr.mxu0 0.0
        %1420 = vmatpush1.msra.mxu0 %v226
        %1421 = vmatprep.subr.mxu0 0.0
        %1422 = vmatpush1.msra.mxu0 %v227
        %1423 = vmatprep.subr.mxu0 0.0
        %1424 = vmatpush1.msra.mxu0 %v1415
        %1425 = vmatprep.subr.mxu0 0.0
        %1426 = vmatpush1.msra.mxu0 0.0
        %1427 = vmatprep.subr.mxu0 0.0
        %1428 = vmatpush1.msra.mxu0 0.0
        %1429 = vmatprep.subr.mxu0 0.0
        %1430 = vmatpush1.msra.mxu0 0.0
        %1431 = vmatprep.subr.mxu0 0.0
        %1432 = vmatpush1.msra.mxu0 0.0
        %1433 = vmatprep.subr.mxu0 0.0
        %1434 = vmatpush1.msra.mxu0 0.0
        %1435 = vmatprep.subr.mxu0 0.0
        %1436 = vmatpush1.msra.mxu0 0.0
        %1437 = vmatprep.subr.mxu0 0.0
        %1438 = vmatpush1.msra.mxu0 0.0
        %1439 = vmatprep.subr.mxu0 0.0
        %1440 = vmatpush1.msra.mxu0 0.0
        %1441 = vmatprep.subr.mxu0 0.0
        %1442 = vmatpush1.msra.mxu0 0.0
        %1443 = vmatprep.subr.mxu0 0.0
        %1444 = vmatpush1.msra.mxu0 0.0
        %1445 = vmatprep.subr.mxu0 0.0
        %1446 = vmatpush1.msra.mxu0 0.0
        %1447 = vmatprep.subr.mxu0 0.0
        %1448 = vmatpush1.msra.mxu0 0.0
        %1449 = vmatprep.subr.mxu0 0.0
        %1450 = vmatpush1.msra.mxu0 0.0
        %1451 = vmatprep.subr.mxu0 0.0
        %1452 = vmatpush1.msra.mxu0 0.0
        %1453 = vmatprep.subr.mxu0 0.0
        %1454 = vmatpush1.msra.mxu0 0.0
        %1455 = vmatprep.subr.mxu0 0.0
        %1456 = vmatpush1.msra.mxu0 0.0
        %1457 = vmatprep.subr.mxu0 0.0
        %1458 = vmatpush1.msra.mxu0 0.0
        %1459 = vmatprep.subr.mxu0 0.0
        %1460 = vmatpush1.msra.mxu0 0.0
        %1461 = vmatprep.subr.mxu0 0.0
        %1462 = vmatpush1.msra.mxu0 0.0
        %1463 = vmatprep.subr.mxu0 0.0
        %1464 = vmatpush1.msra.mxu0 0.0
        %1465 = vmatprep.subr.mxu0 0.0
        %1466 = vmatpush1.msra.mxu0 0.0
        %1467 = vmatprep.subr.mxu0 0.0
        %1468 = vmatpush1.msra.mxu0 0.0
        %1469 = vmatprep.subr.mxu0 0.0
        %1470 = vmatpush1.msra.mxu0 0.0
        %1471 = vmatprep.subr.mxu0 0.0
        %1472 = vmatpush1.msra.mxu0 0.0
        %1473 = vmatprep.subr.mxu0 0.0
        %1474 = vmatpush1.msra.mxu0 0.0
        %1475 = vmatprep.subr.mxu0 0.0
        %1476 = vmatpush1.msra.mxu0 0.0
        %1477 = vmatprep.subr.mxu0 0.0
        %1478 = vmatpush1.msra.mxu0 0.0
        %1479 = vmatprep.subr.mxu0 0.0
        %1480 = vmatpush1.msra.mxu0 0.0
        %1481 = vmatprep.mubr.f32.mxu0 0.0
        %1482 = vmatmul.mubr.f32.gmra.mrb[0].mxu0 %v1402
        %v1483 = vpop.f32.mrb[0].mxu0
        %v1484 = vadd.f32 0.0, %v1483
        %v1485 = vpop.f32.mrb[0].mxu0
        %1486 = vmatprep.mubr.f32.mxu0 0.0
        %1487 = vmatmul.mubr.f32.gmra.mrb[0].mxu0 %v1405
        %v1488 = vpop.f32.mrb[0].mxu0
        %v1489 = vadd.f32 0.0, %v1488
        %v1490 = vpop.f32.mrb[0].mxu0
        %1491 = vmatprep.mubr.f32.mxu0 0.0
        %1492 = vmatmul.mubr.f32.gmra.mrb[0].mxu0 %v1408
        %v1493 = vpop.f32.mrb[0].mxu0
        %v1494 = vadd.f32 0.0, %v1493
        %v1495 = vpop.f32.mrb[0].mxu0
        %1496 = vmatprep.mubr.f32.mxu0 0.0
        %1497 = vmatmul.mubr.f32.gmra.mrb[0].mxu0 %v1411
        %v1498 = vpop.f32.mrb[0].mxu0
        %v1499 = vadd.f32 0.0, %v1498
        %v1500 = vpop.f32.mrb[0].mxu0
        %1501 = vdwg.mxu0
        %s1502 = smul.u32 %s230, 32
        %s1503 = scalar_lea.vmem %s219, %s1502
        %vm1504 = vcmask 113664
        %1505 = vst.msk [vmem:[%s1503] sm:$0xff] %vm1504, %v1484
        %1506 = vst.msk [vmem:[%s1503 + $0x8] sm:$0xff] %vm1504, %v1489
        %1507 = vst.msk [vmem:[%s1503 + $0x10] sm:$0xff] %vm1504, %v1494
        %1508 = vst.msk [vmem:[%s1503 + $0x18] sm:$0xff] %vm1504, %v1499
      $region41: #{local_brief_net_forward.4} parent=35 // loop_footer
        %s234 = sadd.s32 1, %s230
      $region42: #{local_brief_net_forward.4} parent=35 // loop_footer_branch
        %229 = sbr.rel target = $region38
      $region43: #{local_brief_net_forward.4} parent=35 // loop_exit
        _
      %p1509 = scmp.lt.s32.totalorder %s19, 1
      %s1510 = scalar_select %p1509, %s19, 1
      %p1511 = scmp.lt.s32.totalorder %s20, 13
      %s1512 = scalar_select %p1511, %s20, 13
      %s1513 = smul.addr %s1512, 64
      %s1514 = smul.addr %s1510, 896
      %s1515 = sadd.s32 %s1513, %s1514
      %s1516 = smul.addr %s1515, 8
      %s1517 = scalar_lea.vmem %s4, %s1516
      // Predicated region
      $region44: #{local_brief_net_forward.4} parent=35 // pred_check
        %p1518 = pneg %p136
      $region45: #{local_brief_net_forward.4} parent=35 // pred_check_branch
        %1520 = sbr.rel (%p1518) target = $region47
      $region46: #{local_brief_net_forward.4} parent=35 // pred_region
        _
      $region47: #{local_brief_net_forward.4} parent=35 // pred_fallthru
        _
    $region36: #{local_brief_net_forward.4} parent=5 // pred_fallthru
      _
    %p1521 = scmp.le.s32.totalorder 2, %s10
    // Predicated region
    $region48: #{local_brief_net_forward.4} parent=5 // pred_check
      %p1522 = pneg %p1521
    $region49: #{local_brief_net_forward.4} parent=5 // pred_check_branch
      %1524 = sbr.rel (%p1522) target = $region51
    $region50: #{local_brief_net_forward.4} parent=5 // pred_region
      %s1525 = ssub.s32 %s10, 2
      // Predicated region
      $region52: #{local_brief_net_forward.4} parent=50 // pred_check
        %p1526 = pneg %p142
      $region53: #{local_brief_net_forward.4} parent=50 // pred_check_branch
        %1528 = sbr.rel (%p1526) target = $region55
      $region54: #{local_brief_net_forward.4} parent=50 // pred_region
        %p1529 = scmp.lt.s32.totalorder %s21, 1
        %s1530 = scalar_select %p1529, %s21, 1
        %p1531 = scmp.lt.s32.totalorder %s22, 13
        %s1532 = scalar_select %p1531, %s22, 13
        %s1533 = smul.addr %s1532, 64
        %s1534 = smul.addr %s1530, 896
        %s1535 = sadd.s32 %s1533, %s1534
        %s1536 = smul.addr %s1535, 8
        %s1537 = scalar_lea.vmem %s4, %s1536
      $region55: #{local_brief_net_forward.4} parent=50 // pred_fallthru
        _
    $region51: #{local_brief_net_forward.4} parent=5 // pred_fallthru
      _
  $region6: #{local_brief_net_forward.4} parent=0 // loop_footer
    %s14 = sadd.s32 1, %s10
  $region7: #{local_brief_net_forward.4} parent=0 // loop_footer_branch
    %9 = sbr.rel target = $region3
  $region8: #{local_brief_net_forward.4} parent=0 // loop_exit
    _

// kernel: local_brief_net_forward.6
$region0: #{local_brief_net_forward.6}
  #allocation0 [shape = 'u32[]', space=smem, size = 0x4, offset = 0x4, fixed_abs, tag = 'smem constant byte address 0x4 - core index']
  #allocation1 [shape = 'u32[144,128]{1,0:T(1,128)}', space=vmem, size = 0x12000, scoped, tag = 'internal scratch']
  %s0 = inlined_call_operand.vmem [shape: f32[2,12,448,12], index: 0, kind: input, shape index: {}]
  %s1 = inlined_call_operand.vmem [shape: f32[3,96,96], index: 1, kind: input, shape index: {}]
  %s2 = inlined_call_operand.vmem [shape: f32[32,1], index: 2, kind: input, shape index: {}]
  %s3 = inlined_call_operand.vmem [shape: f32[2,10,384,10], index: 3, kind: output, shape index: {}]
  %s4 = sld [smem:[#allocation0]]
  $region52: #{local_brief_net_forward.6} parent=0
    _
  %s6 = ssub.s32 1, %s4
  %s7 = scalar_select 0, %s6, %s4
  loop: start=0, step=1, limit=22
  $region2: #{local_brief_net_forward.6} parent=0 // loop_pre_header
    _
  $region3: #{local_brief_net_forward.6} parent=0 // loop_header
    %s9 = sphi 0, %s13
    %p10 = scmp.ge.s32.totalorder %s9, 22
    %s16 = sphi 0, %s28
    %s17 = sphi 0, %s24
    %s18 = sphi 0, %s16
    %s19 = sphi 0, %s17
    %s20 = sphi 0, %s18
    %s21 = sphi 0, %s19
    %s31 = sphi 0, %s33
    %s34 = sphi 0, %s31
    %s35 = sphi 0, %s34
    %s51 = sphi 0, %s35
    %s55 = sphi 0, %s55
    %s57 = sphi 0, %s55
    %s58 = sphi 0, %s57
    %s72 = sphi 0, %s58
    %s76 = sphi 0, %s76
    %s78 = sphi 0, %s76
    %s79 = sphi 0, %s78
    %s93 = sphi 0, %s79
    %s101 = sphi 0, %s103
    %s104 = sphi 0, %s101
    %s105 = sphi 0, %s104
    %s121 = sphi 0, %s105
  $region4: #{local_brief_net_forward.6} parent=0 // loop_header_branch
    %12 = sbr.rel (%p10) target = $region8
  $region5: #{local_brief_net_forward.6} parent=0 // loop_body
    %s14 = ssub.s32 %s9, 1
    %s15 = ssub.s32 %s9, 2
    %s22 = sadd.s32 1, %s17
    %p23 = scmp.ge.s32.totalorder %s22, 10
    %s24 = scalar_select %p23, 0, %s22
    %s25 = sadd.s32 1, %s16
    %s26 = scalar_select %p23, %s25, %s16
    %p27 = scmp.ge.s32.totalorder %s26, 2
    %s28 = scalar_select %p27, 0, %s26
    %s29 = ssub.s32 %s16, %s28
    %p30 = scmp.eq.s32.totalorder %s29, 0
    %s32 = sadd.s32 %s31, 1
    %s33 = scalar_select %p30, %s31, %s32
    %p36 = pneg %p30
    %p37 = scmp.eq.s32.totalorder %s9, 19
    %p38 = por %p36, %p37
    %p39 = scmp.ne.s32.totalorder %s31, %s34
    %p40 = scmp.eq.s32.totalorder %s9, 0
    %p41 = por %p39, %p40
    %p42 = scmp.ne.s32.totalorder %s31, %s34
    %p43 = scmp.eq.s32.totalorder %s14, 19
    %p44 = por %p42, %p43
    %p45 = scmp.ne.s32.totalorder %s34, %s35
    %p46 = scmp.eq.s32.totalorder %s14, 0
    %p47 = por %p45, %p46
    %p48 = scmp.ne.s32.totalorder %s34, %s35
    %p49 = scmp.eq.s32.totalorder %s15, 19
    %p50 = por %p48, %p49
    %p52 = scmp.ne.s32.totalorder %s35, %s51
    %p53 = scmp.eq.s32.totalorder %s15, 0
    %p54 = por %p52, %p53
    %s56 = sadd.s32 %s55, 1
    %p59 = scmp.eq.s32.totalorder %s9, 19
    %p60 = scmp.ne.s32.totalorder %s55, %s57
    %p61 = scmp.eq.s32.totalorder %s9, 0
    %p62 = por %p60, %p61
    %p63 = scmp.ne.s32.totalorder %s55, %s57
    %p64 = scmp.eq.s32.totalorder %s14, 19
    %p65 = por %p63, %p64
    %p66 = scmp.ne.s32.totalorder %s57, %s58
    %p67 = scmp.eq.s32.totalorder %s14, 0
    %p68 = por %p66, %p67
    %p69 = scmp.ne.s32.totalorder %s57, %s58
    %p70 = scmp.eq.s32.totalorder %s15, 19
    %p71 = por %p69, %p70
    %p73 = scmp.ne.s32.totalorder %s58, %s72
    %p74 = scmp.eq.s32.totalorder %s15, 0
    %p75 = por %p73, %p74
    %s77 = sadd.s32 %s76, 1
    %p80 = scmp.eq.s32.totalorder %s9, 19
    %p81 = scmp.ne.s32.totalorder %s76, %s78
    %p82 = scmp.eq.s32.totalorder %s9, 0
    %p83 = por %p81, %p82
    %p84 = scmp.ne.s32.totalorder %s76, %s78
    %p85 = scmp.eq.s32.totalorder %s14, 19
    %p86 = por %p84, %p85
    %p87 = scmp.ne.s32.totalorder %s78, %s79
    %p88 = scmp.eq.s32.totalorder %s14, 0
    %p89 = por %p87, %p88
    %p90 = scmp.ne.s32.totalorder %s78, %s79
    %p91 = scmp.eq.s32.totalorder %s15, 19
    %p92 = por %p90, %p91
    %p94 = scmp.ne.s32.totalorder %s79, %s93
    %p95 = scmp.eq.s32.totalorder %s15, 0
    %p96 = por %p94, %p95
    %s97 = ssub.s32 %s16, %s28
    %s98 = ssub.s32 %s17, %s24
    %s99 = sor.u32 %s97, %s98
    %p100 = scmp.eq.s32.totalorder %s99, 0
    %s102 = sadd.s32 %s101, 1
    %s103 = scalar_select %p100, %s101, %s102
    %p106 = pneg %p100
    %p107 = scmp.eq.s32.totalorder %s9, 19
    %p108 = por %p106, %p107
    %p109 = scmp.ne.s32.totalorder %s101, %s104
    %p110 = scmp.eq.s32.totalorder %s9, 0
    %p111 = por %p109, %p110
    %p112 = scmp.ne.s32.totalorder %s101, %s104
    %p113 = scmp.eq.s32.totalorder %s14, 19
    %p114 = por %p112, %p113
    %p115 = scmp.ne.s32.totalorder %s104, %s105
    %p116 = scmp.eq.s32.totalorder %s14, 0
    %p117 = por %p115, %p116
    %p118 = scmp.ne.s32.totalorder %s104, %s105
    %p119 = scmp.eq.s32.totalorder %s15, 19
    %p120 = por %p118, %p119
    %p122 = scmp.ne.s32.totalorder %s105, %s121
    %p123 = scmp.eq.s32.totalorder %s15, 0
    %p124 = por %p122, %p123
    %p125 = scmp.le.s32.totalorder 1, %s9
    %p126 = scmp.lt.s32.totalorder %s9, 21
    %p127 = pnand %p125, %p126
    %p128 = pneg %p127
    // Predicated region
    $region9: #{local_brief_net_forward.6} parent=5 // pred_check
      _
    $region10: #{local_brief_net_forward.6} parent=5 // pred_check_branch
      %130 = sbr.rel (%p127) target = $region12
    $region11: #{local_brief_net_forward.6} parent=5 // pred_region
      %s131 = ssub.s32 %s9, 1
      // Predicated region
      $region13: #{local_brief_net_forward.6} parent=11 // pred_check
        %p132 = pneg %p68
      $region14: #{local_brief_net_forward.6} parent=11 // pred_check_branch
        %134 = sbr.rel (%p132) target = $region16
      $region15: #{local_brief_net_forward.6} parent=11 // pred_region
        _
      $region16: #{local_brief_net_forward.6} parent=11 // pred_fallthru
        _
      // Predicated region
      $region17: #{local_brief_net_forward.6} parent=11 // pred_check
        %p135 = pneg %p89
      $region18: #{local_brief_net_forward.6} parent=11 // pred_check_branch
        %137 = sbr.rel (%p135) target = $region20
      $region19: #{local_brief_net_forward.6} parent=11 // pred_region
        _
      $region20: #{local_brief_net_forward.6} parent=11 // pred_fallthru
        _
    $region12: #{local_brief_net_forward.6} parent=5 // pred_fallthru
      _
    %p138 = scmp.lt.s32.totalorder %s9, 20
    // Predicated region
    $region21: #{local_brief_net_forward.6} parent=5 // pred_check
      %p139 = pneg %p138
    $region22: #{local_brief_net_forward.6} parent=5 // pred_check_branch
      %141 = sbr.rel (%p139) target = $region24
    $region23: #{local_brief_net_forward.6} parent=5 // pred_region
      // Predicated region
      $region25: #{local_brief_net_forward.6} parent=23 // pred_check
        %p142 = pneg %p41
      $region26: #{local_brief_net_forward.6} parent=23 // pred_check_branch
        %144 = sbr.rel (%p142) target = $region28
      $region27: #{local_brief_net_forward.6} parent=23 // pred_region
        %p145 = scmp.lt.s32.totalorder %s16, 1
        %s146 = scalar_select %p145, %s16, 1
        %s147 = smul.addr %s146, 672
        %s148 = smul.addr %s147, 8
        %s149 = scalar_lea.vmem %s0, %s148
      $region28: #{local_brief_net_forward.6} parent=23 // pred_fallthru
        _
    $region24: #{local_brief_net_forward.6} parent=5 // pred_fallthru
      _
    %p150 = scmp.le.s32.totalorder 1, %s9
    %p151 = scmp.lt.s32.totalorder %s9, 21
    %p152 = pnand %p150, %p151
    %p153 = pneg %p152
    // Predicated region
    $region29: #{local_brief_net_forward.6} parent=5 // pred_check
      _
    $region30: #{local_brief_net_forward.6} parent=5 // pred_check_branch
      %155 = sbr.rel (%p152) target = $region32
    $region31: #{local_brief_net_forward.6} parent=5 // pred_region
      %s156 = ssub.s32 %s9, 1
      %p157 = scmp.lt.s32.totalorder %s18, 1
      %s158 = scalar_select %p157, %s18, 1
      %s159 = smul.addr %s158, 672
      %s160 = smul.addr %s159, 8
      %s161 = scalar_lea.vmem %s0, %s160
      %p162 = pneg %p47
      %p163 = pneg %p44
      %p164 = pneg %p68
      %p165 = pneg %p65
      %p166 = pneg %p89
      %p167 = pneg %p86
      %p168 = pneg %p117
      %p169 = pneg %p114
      %p170 = scmp.lt.s32.totalorder %s18, 1
      %s171 = scalar_select %p170, %s18, 1
      %p172 = scmp.lt.s32.totalorder %s19, 9
      %s173 = scalar_select %p172, %s19, 9
      %s174 = smul.addr %s173, 48
      %s175 = smul.addr %s171, 480
      %s176 = sadd.s32 %s174, %s175
      %s177 = smul.addr %s176, 8
      %s178 = scalar_lea.vmem %s3, %s177
      %p179 = scmp.lt.s32.totalorder %s18, 1
      %s180 = scalar_select %p179, %s18, 1
      %s181 = smul.addr %s180, 672
      %s182 = smul.addr %s181, 8
      %s183 = scalar_lea.vmem %s0, %s182
      %p184 = scmp.lt.s32.totalorder %s18, 1
      %s185 = scalar_select %p184, %s18, 1
      %p186 = scmp.lt.s32.totalorder %s19, 9
      %s187 = scalar_select %p186, %s19, 9
      %s188 = smul.addr %s187, 48
      %s189 = smul.addr %s185, 480
      %s190 = sadd.s32 %s188, %s189
      %s191 = smul.addr %s190, 8
      %s192 = scalar_lea.vmem %s3, %s191
      %v193 = vld [vmem:[%s2] sm:$0xff]
      %v194 = vld [vmem:[%s2 + $0x8] sm:$0xff]
      %v195 = vld [vmem:[%s2 + $0x10] sm:$0xff]
      %v196 = vld [vmem:[%s2 + $0x18] sm:$0xff]
      loop: start=0, step=1, limit=12
      $region33: #{local_brief_net_forward.6} parent=31 // loop_pre_header
        _
      $region34: #{local_brief_net_forward.6} parent=31 // loop_header
        %s198 = sphi 0, %s202
        %p199 = scmp.ge.s32.totalorder %s198, 12
      $region35: #{local_brief_net_forward.6} parent=31 // loop_header_branch
        %201 = sbr.rel (%p199) target = $region39
      $region36: #{local_brief_net_forward.6} parent=31 // loop_body
        %s203 = smul.u32 %s198, 32
        %s204 = smul.u32 %s19, 448
        %s205 = sadd.s32 %s203, %s204
        %s206 = scalar_lea.vmem %s183, %s205
        %v207 = vld [vmem:[%s206] sm:$0xff]
        %v208 = vld [vmem:[%s206 + $0x8] sm:$0xff]
        %v209 = vld [vmem:[%s206 + $0x10] sm:$0xff]
        %v210 = vld [vmem:[%s206 + $0x18] sm:$0xff]
        %v211 = vld [vmem:[%s206 + $0x20] sm:$0xff]
        %v212 = vld [vmem:[%s206 + $0x28] sm:$0xff]
        %v213 = vld [vmem:[%s206 + $0x30] sm:$0xff]
        %v214 = vld [vmem:[%s206 + $0x38] sm:$0xff]
        %v215 = vld [vmem:[%s206 + $0x40] sm:$0xff]
        %v216 = vld [vmem:[%s206 + $0x48] sm:$0xff]
        %v217 = vld [vmem:[%s206 + $0x50] sm:$0xff]
        %v218 = vld [vmem:[%s206 + $0x58] sm:$0xff]
        %v219 = vld [vmem:[%s1] sm:$0xff]
        %v220 = vld [vmem:[%s1 + $0x8] sm:$0xff]
        %v221 = vld [vmem:[%s1 + $0x10] sm:$0xff]
        %v222 = vld [vmem:[%s1 + $0x18] sm:$0xff]
        %v223 = vld [vmem:[%s1 + $0x20] sm:$0xff]
        %v224 = vld [vmem:[%s1 + $0x28] sm:$0xff]
        %v225 = vld [vmem:[%s1 + $0x30] sm:$0xff]
        %v226 = vld [vmem:[%s1 + $0x38] sm:$0xff]
        %v227 = vld [vmem:[%s1 + $0x40] sm:$0xff]
        %v228 = vld [vmem:[%s1 + $0x48] sm:$0xff]
        %v229 = vld [vmem:[%s1 + $0x50] sm:$0xff]
        %v230 = vld [vmem:[%s1 + $0x58] sm:$0xff]
        %s231 = sadd.s32 %s19, 1
        %s232 = smul.u32 %s231, 448
        %s233 = sadd.s32 %s203, %s232
        %s234 = scalar_lea.vmem %s183, %s233
        %v235 = vld [vmem:[%s234] sm:$0xff]
        %v236 = vld [vmem:[%s234 + $0x8] sm:$0xff]
        %v237 = vld [vmem:[%s234 + $0x10] sm:$0xff]
        %v238 = vld [vmem:[%s234 + $0x18] sm:$0xff]
        %v239 = vld [vmem:[%s234 + $0x20] sm:$0xff]
        %v240 = vld [vmem:[%s234 + $0x28] sm:$0xff]
        %v241 = vld [vmem:[%s234 + $0x30] sm:$0xff]
        %v242 = vld [vmem:[%s234 + $0x38] sm:$0xff]
        %v243 = vld [vmem:[%s234 + $0x40] sm:$0xff]
        %v244 = vld [vmem:[%s234 + $0x48] sm:$0xff]
        %v245 = vld [vmem:[%s234 + $0x50] sm:$0xff]
        %v246 = vld [vmem:[%s234 + $0x58] sm:$0xff]
        %s247 = scalar_lea.vmem %s1, 96
        %v248 = vld [vmem:[%s247] sm:$0xff]
        %v249 = vld [vmem:[%s247 + $0x8] sm:$0xff]
        %v250 = vld [vmem:[%s247 + $0x10] sm:$0xff]
        %v251 = vld [vmem:[%s247 + $0x18] sm:$0xff]
        %v252 = vld [vmem:[%s247 + $0x20] sm:$0xff]
        %v253 = vld [vmem:[%s247 + $0x28] sm:$0xff]
        %v254 = vld [vmem:[%s247 + $0x30] sm:$0xff]
        %v255 = vld [vmem:[%s247 + $0x38] sm:$0xff]
        %v256 = vld [vmem:[%s247 + $0x40] sm:$0xff]
        %v257 = vld [vmem:[%s247 + $0x48] sm:$0xff]
        %v258 = vld [vmem:[%s247 + $0x50] sm:$0xff]
        %v259 = vld [vmem:[%s247 + $0x58] sm:$0xff]
        %vm260 = vcmask 785408
        %v262 = vsel %vm260, %v248, 0
        %v265 = vsel %vm260, %v249, 0
        %v268 = vsel %vm260, %v250, 0
        %v271 = vsel %vm260, %v251, 0
        %v274 = vsel %vm260, %v252, 0
        %v277 = vsel %vm260, %v253, 0
        %v280 = vsel %vm260, %v254, 0
        %v283 = vsel %vm260, %v255, 0
        %v286 = vsel %vm260, %v256, 0
        %v289 = vsel %vm260, %v257, 0
        %v292 = vsel %vm260, %v258, 0
        %v295 = vsel %vm260, %v259, 0
        %297 = vmatprep.subr.mxu0 0.0
        %298 = vmatpush1.msra.mxu0 %v235
        %299 = vmatprep.subr.mxu0 0.0
        %300 = vmatpush1.msra.mxu0 %v236
        %301 = vmatprep.subr.mxu0 0.0
        %302 = vmatpush1.msra.mxu0 %v237
        %303 = vmatprep.subr.mxu0 0.0
        %304 = vmatpush1.msra.mxu0 %v238
        %305 = vmatprep.subr.mxu0 0.0
        %306 = vmatpush1.msra.mxu0 %v239
        %307 = vmatprep.subr.mxu0 0.0
        %308 = vmatpush1.msra.mxu0 %v240
        %309 = vmatprep.subr.mxu0 0.0
        %310 = vmatpush1.msra.mxu0 %v241
        %311 = vmatprep.subr.mxu0 0.0
        %312 = vmatpush1.msra.mxu0 %v242
        %313 = vmatprep.subr.mxu0 0.0
        %314 = vmatpush1.msra.mxu0 %v243
        %315 = vmatprep.subr.mxu0 0.0
        %316 = vmatpush1.msra.mxu0 %v244
        %317 = vmatprep.subr.mxu0 0.0
        %318 = vmatpush1.msra.mxu0 %v245
        %319 = vmatprep.subr.mxu0 0.0
        %320 = vmatpush1.msra.mxu0 %v246
        %321 = vmatprep.subr.mxu0 0.0
        %322 = vmatpush1.msra.mxu0 0.0
        %323 = vmatprep.subr.mxu0 0.0
        %324 = vmatpush1.msra.mxu0 0.0
        %325 = vmatprep.subr.mxu0 0.0
        %326 = vmatpush1.msra.mxu0 0.0
        %327 = vmatprep.subr.mxu0 0.0
        %328 = vmatpush1.msra.mxu0 0.0
        %329 = vmatprep.subr.mxu0 0.0
        %330 = vmatpush1.msra.mxu0 0.0
        %331 = vmatprep.subr.mxu0 0.0
        %332 = vmatpush1.msra.mxu0 0.0
        %333 = vmatprep.subr.mxu0 0.0
        %334 = vmatpush1.msra.mxu0 0.0
        %335 = vmatprep.subr.mxu0 0.0
        %336 = vmatpush1.msra.mxu0 0.0
        %337 = vmatprep.subr.mxu0 0.0
        %338 = vmatpush1.msra.mxu0 0.0
        %339 = vmatprep.subr.mxu0 0.0
        %340 = vmatpush1.msra.mxu0 0.0
        %341 = vmatprep.subr.mxu0 0.0
        %342 = vmatpush1.msra.mxu0 0.0
        %343 = vmatprep.subr.mxu0 0.0
        %344 = vmatpush1.msra.mxu0 0.0
        %345 = vmatprep.subr.mxu0 0.0
        %346 = vmatpush1.msra.mxu0 0.0
        %347 = vmatprep.subr.mxu0 0.0
        %348 = vmatpush1.msra.mxu0 0.0
        %349 = vmatprep.subr.mxu0 0.0
        %350 = vmatpush1.msra.mxu0 0.0
        %351 = vmatprep.subr.mxu0 0.0
        %352 = vmatpush1.msra.mxu0 0.0
        %353 = vmatprep.subr.mxu0 0.0
        %354 = vmatpush1.msra.mxu0 0.0
        %355 = vmatprep.subr.mxu0 0.0
        %356 = vmatpush1.msra.mxu0 0.0
        %357 = vmatprep.subr.mxu0 0.0
        %358 = vmatpush1.msra.mxu0 0.0
        %359 = vmatprep.subr.mxu0 0.0
        %360 = vmatpush1.msra.mxu0 0.0
        %361 = vmatprep.mubr.f32.mxu0 0.0
        %362 = vmatmul.mubr.f32.gmra.mrb[0].mxu0 %v262
        %v363 = vpop.f32.mrb[0].mxu0
        %v364 = vadd.f32 0.0, %v363
        %v365 = vpop.f32.mrb[0].mxu0
        %366 = vmatprep.mubr.f32.mxu0 0.0
        %367 = vmatmul.mubr.f32.gmra.mrb[0].mxu0 %v265
        %v368 = vpop.f32.mrb[0].mxu0
        %v369 = vadd.f32 0.0, %v368
        %v370 = vpop.f32.mrb[0].mxu0
        %371 = vmatprep.mubr.f32.mxu0 0.0
        %372 = vmatmul.mubr.f32.gmra.mrb[0].mxu0 %v268
        %v373 = vpop.f32.mrb[0].mxu0
        %v374 = vadd.f32 0.0, %v373
        %v375 = vpop.f32.mrb[0].mxu0
        %376 = vmatprep.mubr.f32.mxu0 0.0
        %377 = vmatmul.mubr.f32.gmra.mrb[0].mxu0 %v271
        %v378 = vpop.f32.mrb[0].mxu0
        %v379 = vadd.f32 0.0, %v378
        %v380 = vpop.f32.mrb[0].mxu0
        %381 = vmatprep.mubr.f32.mxu0 0.0
        %382 = vmatmul.mubr.f32.gmra.mrb[0].mxu0 %v274
        %v383 = vpop.f32.mrb[0].mxu0
        %v384 = vadd.f32 0.0, %v383
        %v385 = vpop.f32.mrb[0].mxu0
        %386 = vmatprep.mubr.f32.mxu0 0.0
        %387 = vmatmul.mubr.f32.gmra.mrb[0].mxu0 %v277
        %v388 = vpop.f32.mrb[0].mxu0
        %v389 = vadd.f32 0.0, %v388
        %v390 = vpop.f32.mrb[0].mxu0
        %391 = vmatprep.mubr.f32.mxu0 0.0
        %392 = vmatmul.mubr.f32.gmra.mrb[0].mxu0 %v280
        %v393 = vpop.f32.mrb[0].mxu0
        %v394 = vadd.f32 0.0, %v393
        %v395 = vpop.f32.mrb[0].mxu0
        %396 = vmatprep.mubr.f32.mxu0 0.0
        %397 = vmatmul.mubr.f32.gmra.mrb[0].mxu0 %v283
        %v398 = vpop.f32.mrb[0].mxu0
        %v399 = vadd.f32 0.0, %v398
        %v400 = vpop.f32.mrb[0].mxu0
        %401 = vmatprep.mubr.f32.mxu0 0.0
        %402 = vmatmul.mubr.f32.gmra.mrb[0].mxu0 %v286
        %v403 = vpop.f32.mrb[0].mxu0
        %v404 = vadd.f32 0.0, %v403
        %v405 = vpop.f32.mrb[0].mxu0
        %406 = vmatprep.mubr.f32.mxu0 0.0
        %407 = vmatmul.mubr.f32.gmra.mrb[0].mxu0 %v289
        %v408 = vpop.f32.mrb[0].mxu0
        %v409 = vadd.f32 0.0, %v408
        %v410 = vpop.f32.mrb[0].mxu0
        %411 = vmatprep.mubr.f32.mxu0 0.0
        %412 = vmatmul.mubr.f32.gmra.mrb[0].mxu0 %v292
        %v413 = vpop.f32.mrb[0].mxu0
        %v414 = vadd.f32 0.0, %v413
        %v415 = vpop.f32.mrb[0].mxu0
        %416 = vmatprep.mubr.f32.mxu0 0.0
        %417 = vmatmul.mubr.f32.gmra.mrb[0].mxu0 %v295
        %v418 = vpop.f32.mrb[0].mxu0
        %v419 = vadd.f32 0.0, %v418
        %v420 = vpop.f32.mrb[0].mxu0
        %421 = vdwg.mxu0
        %v423 = vsel %vm260, %v219, 0
        %v426 = vsel %vm260, %v220, 0
        %v429 = vsel %vm260, %v221, 0
        %v432 = vsel %vm260, %v222, 0
        %v435 = vsel %vm260, %v223, 0
        %v438 = vsel %vm260, %v224, 0
        %v441 = vsel %vm260, %v225, 0
        %v444 = vsel %vm260, %v226, 0
        %v447 = vsel %vm260, %v227, 0
        %v450 = vsel %vm260, %v228, 0
        %v453 = vsel %vm260, %v229, 0
        %v456 = vsel %vm260, %v230, 0
        %458 = vmatprep.subr.mxu0 0.0
        %459 = vmatpush1.msra.mxu0 %v207
        %460 = vmatprep.subr.mxu0 0.0
        %461 = vmatpush1.msra.mxu0 %v208
        %462 = vmatprep.subr.mxu0 0.0
        %463 = vmatpush1.msra.mxu0 %v209
        %464 = vmatprep.subr.mxu0 0.0
        %465 = vmatpush1.msra.mxu0 %v210
        %466 = vmatprep.subr.mxu0 0.0
        %467 = vmatpush1.msra.mxu0 %v211
        %468 = vmatprep.subr.mxu0 0.0
        %469 = vmatpush1.msra.mxu0 %v212
        %470 = vmatprep.subr.mxu0 0.0
        %471 = vmatpush1.msra.mxu0 %v213
        %472 = vmatprep.subr.mxu0 0.0
        %473 = vmatpush1.msra.mxu0 %v214
        %474 = vmatprep.subr.mxu0 0.0
        %475 = vmatpush1.msra.mxu0 %v215
        %476 = vmatprep.subr.mxu0 0.0
        %477 = vmatpush1.msra.mxu0 %v216
        %478 = vmatprep.subr.mxu0 0.0
        %479 = vmatpush1.msra.mxu0 %v217
        %480 = vmatprep.subr.mxu0 0.0
        %481 = vmatpush1.msra.mxu0 %v218
        %482 = vmatprep.subr.mxu0 0.0
        %483 = vmatpush1.msra.mxu0 0.0
        %484 = vmatprep.subr.mxu0 0.0
        %485 = vmatpush1.msra.mxu0 0.0
        %486 = vmatprep.subr.mxu0 0.0
        %487 = vmatpush1.msra.mxu0 0.0
        %488 = vmatprep.subr.mxu0 0.0
        %489 = vmatpush1.msra.mxu0 0.0
        %490 = vmatprep.subr.mxu0 0.0
        %491 = vmatpush1.msra.mxu0 0.0
        %492 = vmatprep.subr.mxu0 0.0
        %493 = vmatpush1.msra.mxu0 0.0
        %494 = vmatprep.subr.mxu0 0.0
        %495 = vmatpush1.msra.mxu0 0.0
        %496 = vmatprep.subr.mxu0 0.0
        %497 = vmatpush1.msra.mxu0 0.0
        %498 = vmatprep.subr.mxu0 0.0
        %499 = vmatpush1.msra.mxu0 0.0
        %500 = vmatprep.subr.mxu0 0.0
        %501 = vmatpush1.msra.mxu0 0.0
        %502 = vmatprep.subr.mxu0 0.0
        %503 = vmatpush1.msra.mxu0 0.0
        %504 = vmatprep.subr.mxu0 0.0
        %505 = vmatpush1.msra.mxu0 0.0
        %506 = vmatprep.subr.mxu0 0.0
        %507 = vmatpush1.msra.mxu0 0.0
        %508 = vmatprep.subr.mxu0 0.0
        %509 = vmatpush1.msra.mxu0 0.0
        %510 = vmatprep.subr.mxu0 0.0
        %511 = vmatpush1.msra.mxu0 0.0
        %512 = vmatprep.subr.mxu0 0.0
        %513 = vmatpush1.msra.mxu0 0.0
        %514 = vmatprep.subr.mxu0 0.0
        %515 = vmatpush1.msra.mxu0 0.0
        %516 = vmatprep.subr.mxu0 0.0
        %517 = vmatpush1.msra.mxu0 0.0
        %518 = vmatprep.subr.mxu0 0.0
        %519 = vmatpush1.msra.mxu0 0.0
        %520 = vmatprep.subr.mxu0 0.0
        %521 = vmatpush1.msra.mxu0 0.0
        %522 = vmatprep.mubr.f32.mxu0 0.0
        %523 = vmatmul.mubr.f32.gmra.mrb[0].mxu0 %v423
        %v524 = vpop.f32.mrb[0].mxu0
        %v525 = vadd.f32 %v364, %v524
        %v526 = vpop.f32.mrb[0].mxu0
        %527 = vmatprep.mubr.f32.mxu0 0.0
        %528 = vmatmul.mubr.f32.gmra.mrb[0].mxu0 %v426
        %v529 = vpop.f32.mrb[0].mxu0
        %v530 = vadd.f32 %v369, %v529
        %v531 = vpop.f32.mrb[0].mxu0
        %532 = vmatprep.mubr.f32.mxu0 0.0
        %533 = vmatmul.mubr.f32.gmra.mrb[0].mxu0 %v429
        %v534 = vpop.f32.mrb[0].mxu0
        %v535 = vadd.f32 %v374, %v534
        %v536 = vpop.f32.mrb[0].mxu0
        %537 = vmatprep.mubr.f32.mxu0 0.0
        %538 = vmatmul.mubr.f32.gmra.mrb[0].mxu0 %v432
        %v539 = vpop.f32.mrb[0].mxu0
        %v540 = vadd.f32 %v379, %v539
        %v541 = vpop.f32.mrb[0].mxu0
        %542 = vmatprep.mubr.f32.mxu0 0.0
        %543 = vmatmul.mubr.f32.gmra.mrb[0].mxu0 %v435
        %v544 = vpop.f32.mrb[0].mxu0
        %v545 = vadd.f32 %v384, %v544
        %v546 = vpop.f32.mrb[0].mxu0
        %547 = vmatprep.mubr.f32.mxu0 0.0
        %548 = vmatmul.mubr.f32.gmra.mrb[0].mxu0 %v438
        %v549 = vpop.f32.mrb[0].mxu0
        %v550 = vadd.f32 %v389, %v549
        %v551 = vpop.f32.mrb[0].mxu0
        %552 = vmatprep.mubr.f32.mxu0 0.0
        %553 = vmatmul.mubr.f32.gmra.mrb[0].mxu0 %v441
        %v554 = vpop.f32.mrb[0].mxu0
        %v555 = vadd.f32 %v394, %v554
        %v556 = vpop.f32.mrb[0].mxu0
        %557 = vmatprep.mubr.f32.mxu0 0.0
        %558 = vmatmul.mubr.f32.gmra.mrb[0].mxu0 %v444
        %v559 = vpop.f32.mrb[0].mxu0
        %v560 = vadd.f32 %v399, %v559
        %v561 = vpop.f32.mrb[0].mxu0
        %562 = vmatprep.mubr.f32.mxu0 0.0
        %563 = vmatmul.mubr.f32.gmra.mrb[0].mxu0 %v447
        %v564 = vpop.f32.mrb[0].mxu0
        %v565 = vadd.f32 %v404, %v564
        %v566 = vpop.f32.mrb[0].mxu0
        %567 = vmatprep.mubr.f32.mxu0 0.0
        %568 = vmatmul.mubr.f32.gmra.mrb[0].mxu0 %v450
        %v569 = vpop.f32.mrb[0].mxu0
        %v570 = vadd.f32 %v409, %v569
        %v571 = vpop.f32.mrb[0].mxu0
        %572 = vmatprep.mubr.f32.mxu0 0.0
        %573 = vmatmul.mubr.f32.gmra.mrb[0].mxu0 %v453
        %v574 = vpop.f32.mrb[0].mxu0
        %v575 = vadd.f32 %v414, %v574
        %v576 = vpop.f32.mrb[0].mxu0
        %577 = vmatprep.mubr.f32.mxu0 0.0
        %578 = vmatmul.mubr.f32.gmra.mrb[0].mxu0 %v456
        %v579 = vpop.f32.mrb[0].mxu0
        %v580 = vadd.f32 %v419, %v579
        %v581 = vpop.f32.mrb[0].mxu0
        %582 = vdwg.mxu0
        %s583 = sadd.s32 %s19, 2
        %s584 = smul.u32 %s583, 448
        %s585 = sadd.s32 %s203, %s584
        %s586 = scalar_lea.vmem %s183, %s585
        %v587 = vld [vmem:[%s586] sm:$0xff]
        %v588 = vld [vmem:[%s586 + $0x8] sm:$0xff]
        %v589 = vld [vmem:[%s586 + $0x10] sm:$0xff]
        %v590 = vld [vmem:[%s586 + $0x18] sm:$0xff]
        %v591 = vld [vmem:[%s586 + $0x20] sm:$0xff]
        %v592 = vld [vmem:[%s586 + $0x28] sm:$0xff]
        %v593 = vld [vmem:[%s586 + $0x30] sm:$0xff]
        %v594 = vld [vmem:[%s586 + $0x38] sm:$0xff]
        %v595 = vld [vmem:[%s586 + $0x40] sm:$0xff]
        %v596 = vld [vmem:[%s586 + $0x48] sm:$0xff]
        %v597 = vld [vmem:[%s586 + $0x50] sm:$0xff]
        %v598 = vld [vmem:[%s586 + $0x58] sm:$0xff]
        %s599 = scalar_lea.vmem %s1, 192
        %v600 = vld [vmem:[%s599] sm:$0xff]
        %v601 = vld [vmem:[%s599 + $0x8] sm:$0xff]
        %v602 = vld [vmem:[%s599 + $0x10] sm:$0xff]
        %v603 = vld [vmem:[%s599 + $0x18] sm:$0xff]
        %v604 = vld [vmem:[%s599 + $0x20] sm:$0xff]
        %v605 = vld [vmem:[%s599 + $0x28] sm:$0xff]
        %v606 = vld [vmem:[%s599 + $0x30] sm:$0xff]
        %v607 = vld [vmem:[%s599 + $0x38] sm:$0xff]
        %v608 = vld [vmem:[%s599 + $0x40] sm:$0xff]
        %v609 = vld [vmem:[%s599 + $0x48] sm:$0xff]
        %v610 = vld [vmem:[%s599 + $0x50] sm:$0xff]
        %v611 = vld [vmem:[%s599 + $0x58] sm:$0xff]
        %v613 = vsel %vm260, %v600, 0
        %v616 = vsel %vm260, %v601, 0
        %v619 = vsel %vm260, %v602, 0
        %v622 = vsel %vm260, %v603, 0
        %v625 = vsel %vm260, %v604, 0
        %v628 = vsel %vm260, %v605, 0
        %v631 = vsel %vm260, %v606, 0
        %v634 = vsel %vm260, %v607, 0
        %v637 = vsel %vm260, %v608, 0
        %v640 = vsel %vm260, %v609, 0
        %v643 = vsel %vm260, %v610, 0
        %v646 = vsel %vm260, %v611, 0
        %648 = vmatprep.subr.mxu0 0.0
        %649 = vmatpush1.msra.mxu0 %v587
        %650 = vmatprep.subr.mxu0 0.0
        %651 = vmatpush1.msra.mxu0 %v588
        %652 = vmatprep.subr.mxu0 0.0
        %653 = vmatpush1.msra.mxu0 %v589
        %654 = vmatprep.subr.mxu0 0.0
        %655 = vmatpush1.msra.mxu0 %v590
        %656 = vmatprep.subr.mxu0 0.0
        %657 = vmatpush1.msra.mxu0 %v591
        %658 = vmatprep.subr.mxu0 0.0
        %659 = vmatpush1.msra.mxu0 %v592
        %660 = vmatprep.subr.mxu0 0.0
        %661 = vmatpush1.msra.mxu0 %v593
        %662 = vmatprep.subr.mxu0 0.0
        %663 = vmatpush1.msra.mxu0 %v594
        %664 = vmatprep.subr.mxu0 0.0
        %665 = vmatpush1.msra.mxu0 %v595
        %666 = vmatprep.subr.mxu0 0.0
        %667 = vmatpush1.msra.mxu0 %v596
        %668 = vmatprep.subr.mxu0 0.0
        %669 = vmatpush1.msra.mxu0 %v597
        %670 = vmatprep.subr.mxu0 0.0
        %671 = vmatpush1.msra.mxu0 %v598
        %672 = vmatprep.subr.mxu0 0.0
        %673 = vmatpush1.msra.mxu0 0.0
        %674 = vmatprep.subr.mxu0 0.0
        %675 = vmatpush1.msra.mxu0 0.0
        %676 = vmatprep.subr.mxu0 0.0
        %677 = vmatpush1.msra.mxu0 0.0
        %678 = vmatprep.subr.mxu0 0.0
        %679 = vmatpush1.msra.mxu0 0.0
        %680 = vmatprep.subr.mxu0 0.0
        %681 = vmatpush1.msra.mxu0 0.0
        %682 = vmatprep.subr.mxu0 0.0
        %683 = vmatpush1.msra.mxu0 0.0
        %684 = vmatprep.subr.mxu0 0.0
        %685 = vmatpush1.msra.mxu0 0.0
        %686 = vmatprep.subr.mxu0 0.0
        %687 = vmatpush1.msra.mxu0 0.0
        %688 = vmatprep.subr.mxu0 0.0
        %689 = vmatpush1.msra.mxu0 0.0
        %690 = vmatprep.subr.mxu0 0.0
        %691 = vmatpush1.msra.mxu0 0.0
        %692 = vmatprep.subr.mxu0 0.0
        %693 = vmatpush1.msra.mxu0 0.0
        %694 = vmatprep.subr.mxu0 0.0
        %695 = vmatpush1.msra.mxu0 0.0
        %696 = vmatprep.subr.mxu0 0.0
        %697 = vmatpush1.msra.mxu0 0.0
        %698 = vmatprep.subr.mxu0 0.0
        %699 = vmatpush1.msra.mxu0 0.0
        %700 = vmatprep.subr.mxu0 0.0
        %701 = vmatpush1.msra.mxu0 0.0
        %702 = vmatprep.subr.mxu0 0.0
        %703 = vmatpush1.msra.mxu0 0.0
        %704 = vmatprep.subr.mxu0 0.0
        %705 = vmatpush1.msra.mxu0 0.0
        %706 = vmatprep.subr.mxu0 0.0
        %707 = vmatpush1.msra.mxu0 0.0
        %708 = vmatprep.subr.mxu0 0.0
        %709 = vmatpush1.msra.mxu0 0.0
        %710 = vmatprep.subr.mxu0 0.0
        %711 = vmatpush1.msra.mxu0 0.0
        %712 = vmatprep.mubr.f32.mxu0 0.0
        %713 = vmatmul.mubr.f32.gmra.mrb[0].mxu0 %v613
        %v714 = vpop.f32.mrb[0].mxu0
        %v715 = vadd.f32 0.0, %v714
        %v716 = vpop.f32.mrb[0].mxu0
        %717 = vmatprep.mubr.f32.mxu0 0.0
        %718 = vmatmul.mubr.f32.gmra.mrb[0].mxu0 %v616
        %v719 = vpop.f32.mrb[0].mxu0
        %v720 = vadd.f32 0.0, %v719
        %v721 = vpop.f32.mrb[0].mxu0
        %722 = vmatprep.mubr.f32.mxu0 0.0
        %723 = vmatmul.mubr.f32.gmra.mrb[0].mxu0 %v619
        %v724 = vpop.f32.mrb[0].mxu0
        %v725 = vadd.f32 0.0, %v724
        %v726 = vpop.f32.mrb[0].mxu0
        %727 = vmatprep.mubr.f32.mxu0 0.0
        %728 = vmatmul.mubr.f32.gmra.mrb[0].mxu0 %v622
        %v729 = vpop.f32.mrb[0].mxu0
        %v730 = vadd.f32 0.0, %v729
        %v731 = vpop.f32.mrb[0].mxu0
        %732 = vmatprep.mubr.f32.mxu0 0.0
        %733 = vmatmul.mubr.f32.gmra.mrb[0].mxu0 %v625
        %v734 = vpop.f32.mrb[0].mxu0
        %v735 = vadd.f32 0.0, %v734
        %v736 = vpop.f32.mrb[0].mxu0
        %737 = vmatprep.mubr.f32.mxu0 0.0
        %738 = vmatmul.mubr.f32.gmra.mrb[0].mxu0 %v628
        %v739 = vpop.f32.mrb[0].mxu0
        %v740 = vadd.f32 0.0, %v739
        %v741 = vpop.f32.mrb[0].mxu0
        %742 = vmatprep.mubr.f32.mxu0 0.0
        %743 = vmatmul.mubr.f32.gmra.mrb[0].mxu0 %v631
        %v744 = vpop.f32.mrb[0].mxu0
        %v745 = vadd.f32 0.0, %v744
        %v746 = vpop.f32.mrb[0].mxu0
        %747 = vmatprep.mubr.f32.mxu0 0.0
        %748 = vmatmul.mubr.f32.gmra.mrb[0].mxu0 %v634
        %v749 = vpop.f32.mrb[0].mxu0
        %v750 = vadd.f32 0.0, %v749
        %v751 = vpop.f32.mrb[0].mxu0
        %752 = vmatprep.mubr.f32.mxu0 0.0
        %753 = vmatmul.mubr.f32.gmra.mrb[0].mxu0 %v637
        %v754 = vpop.f32.mrb[0].mxu0
        %v755 = vadd.f32 0.0, %v754
        %v756 = vpop.f32.mrb[0].mxu0
        %757 = vmatprep.mubr.f32.mxu0 0.0
        %758 = vmatmul.mubr.f32.gmra.mrb[0].mxu0 %v640
        %v759 = vpop.f32.mrb[0].mxu0
        %v760 = vadd.f32 0.0, %v759
        %v761 = vpop.f32.mrb[0].mxu0
        %762 = vmatprep.mubr.f32.mxu0 0.0
        %763 = vmatmul.mubr.f32.gmra.mrb[0].mxu0 %v643
        %v764 = vpop.f32.mrb[0].mxu0
        %v765 = vadd.f32 0.0, %v764
        %v766 = vpop.f32.mrb[0].mxu0
        %767 = vmatprep.mubr.f32.mxu0 0.0
        %768 = vmatmul.mubr.f32.gmra.mrb[0].mxu0 %v646
        %v769 = vpop.f32.mrb[0].mxu0
        %v770 = vadd.f32 0.0, %v769
        %v771 = vpop.f32.mrb[0].mxu0
        %772 = vdwg.mxu0
        %v773 = vadd.f32 %v525, %v715
        %v774 = vadd.f32 %v530, %v720
        %v775 = vadd.f32 %v535, %v725
        %v776 = vadd.f32 %v540, %v730
        %v777 = vadd.f32 %v545, %v735
        %v778 = vadd.f32 %v550, %v740
        %v779 = vadd.f32 %v555, %v745
        %v780 = vadd.f32 %v560, %v750
        %v781 = vadd.f32 %v565, %v755
        %v782 = vadd.f32 %v570, %v760
        %v783 = vadd.f32 %v575, %v765
        %v784 = vadd.f32 %v580, %v770
        %789 = vrot.lane.b32.xlu0 %v777, 127
        %v790 = vpop.permute.xlu0 %789
        %791 = vrot.lane.b32.xlu0 %v778, 127
        %v792 = vpop.permute.xlu0 %791
        %793 = vrot.lane.b32.xlu0 %v779, 127
        %v794 = vpop.permute.xlu0 %793
        %795 = vrot.lane.b32.xlu0 %v780, 127
        %v796 = vpop.permute.xlu0 %795
        %v801 = vadd.f32 %v773, %v790
        %v802 = vadd.f32 %v774, %v792
        %v803 = vadd.f32 %v775, %v794
        %v804 = vadd.f32 %v776, %v796
        %809 = vrot.lane.b32.xlu0 %v781, 126
        %v810 = vpop.permute.xlu0 %809
        %811 = vrot.lane.b32.xlu0 %v782, 126
        %v812 = vpop.permute.xlu0 %811
        %813 = vrot.lane.b32.xlu0 %v783, 126
        %v814 = vpop.permute.xlu0 %813
        %815 = vrot.lane.b32.xlu0 %v784, 126
        %v816 = vpop.permute.xlu0 %815
        %v821 = vadd.f32 %v801, %v810
        %v822 = vadd.f32 %v802, %v812
        %v823 = vadd.f32 %v803, %v814
        %v824 = vadd.f32 %v804, %v816
        %826 = vset.pattern.permute.xlu0 0
        %827 = vperm.xlu0 %826, %v193
        %v828 = vpop.permute.xlu0 %827
        %831 = vset.pattern.permute.xlu0 0
        %832 = vperm.xlu0 %831, %v194
        %v833 = vpop.permute.xlu0 %832
        %836 = vset.pattern.permute.xlu0 0
        %837 = vperm.xlu0 %836, %v195
        %v838 = vpop.permute.xlu0 %837
        %841 = vset.pattern.permute.xlu0 0
        %842 = vperm.xlu0 %841, %v196
        %v843 = vpop.permute.xlu0 %842
        %v845 = vadd.f32 %v821, %v828
        %v846 = vadd.f32 %v822, %v833
        %v847 = vadd.f32 %v823, %v838
        %v848 = vadd.f32 %v824, %v843
        %v849 = vmax.f32 %v845, 0.0
        %v850 = vmax.f32 %v846, 0.0
        %v851 = vmax.f32 %v847, 0.0
        %v852 = vmax.f32 %v848, 0.0
        %s853 = scalar_lea.vmem %s192, %s203
        %vm854 = vcmask 80896
        %855 = vst.msk [vmem:[%s853] sm:$0xff] %vm854, %v849
        %856 = vst.msk [vmem:[%s853 + $0x8] sm:$0xff] %vm854, %v850
        %857 = vst.msk [vmem:[%s853 + $0x10] sm:$0xff] %vm854, %v851
        %858 = vst.msk [vmem:[%s853 + $0x18] sm:$0xff] %vm854, %v852
      $region37: #{local_brief_net_forward.6} parent=31 // loop_footer
        %s202 = sadd.s32 1, %s198
      $region38: #{local_brief_net_forward.6} parent=31 // loop_footer_branch
        %197 = sbr.rel target = $region34
      $region39: #{local_brief_net_forward.6} parent=31 // loop_exit
        _
      %p859 = scmp.lt.s32.totalorder %s18, 1
      %s860 = scalar_select %p859, %s18, 1
      %p861 = scmp.lt.s32.totalorder %s19, 9
      %s862 = scalar_select %p861, %s19, 9
      %s863 = smul.addr %s862, 48
      %s864 = smul.addr %s860, 480
      %s865 = sadd.s32 %s863, %s864
      %s866 = smul.addr %s865, 8
      %s867 = scalar_lea.vmem %s3, %s866
      // Predicated region
      $region40: #{local_brief_net_forward.6} parent=31 // pred_check
        %p868 = pneg %p114
      $region41: #{local_brief_net_forward.6} parent=31 // pred_check_branch
        %870 = sbr.rel (%p868) target = $region43
      $region42: #{local_brief_net_forward.6} parent=31 // pred_region
        _
      $region43: #{local_brief_net_forward.6} parent=31 // pred_fallthru
        _
    $region32: #{local_brief_net_forward.6} parent=5 // pred_fallthru
      _
    %p871 = scmp.le.s32.totalorder 2, %s9
    // Predicated region
    $region44: #{local_brief_net_forward.6} parent=5 // pred_check
      %p872 = pneg %p871
    $region45: #{local_brief_net_forward.6} parent=5 // pred_check_branch
      %874 = sbr.rel (%p872) target = $region47
    $region46: #{local_brief_net_forward.6} parent=5 // pred_region
      %s875 = ssub.s32 %s9, 2
      // Predicated region
      $region48: #{local_brief_net_forward.6} parent=46 // pred_check
        %p876 = pneg %p120
      $region49: #{local_brief_net_forward.6} parent=46 // pred_check_branch
        %878 = sbr.rel (%p876) target = $region51
      $region50: #{local_brief_net_forward.6} parent=46 // pred_region
        %p879 = scmp.lt.s32.totalorder %s20, 1
        %s880 = scalar_select %p879, %s20, 1
        %p881 = scmp.lt.s32.totalorder %s21, 9
        %s882 = scalar_select %p881, %s21, 9
        %s883 = smul.addr %s882, 48
        %s884 = smul.addr %s880, 480
        %s885 = sadd.s32 %s883, %s884
        %s886 = smul.addr %s885, 8
        %s887 = scalar_lea.vmem %s3, %s886
      $region51: #{local_brief_net_forward.6} parent=46 // pred_fallthru
        _
    $region47: #{local_brief_net_forward.6} parent=5 // pred_fallthru
      _
  $region6: #{local_brief_net_forward.6} parent=0 // loop_footer
    %s13 = sadd.s32 1, %s9
  $region7: #{local_brief_net_forward.6} parent=0 // loop_footer_branch
    %8 = sbr.rel target = $region3
  $region8: #{local_brief_net_forward.6} parent=0 // loop_exit
    _

// kernel: local_brief_net_forward.7
$region0: #{local_brief_net_forward.7}
  #allocation0 [shape = 'u32[]', space=smem, size = 0x4, offset = 0x4, fixed_abs, tag = 'smem constant byte address 0x4 - core index']
  #allocation1 [shape = 'u32[144,128]{1,0:T(1,128)}', space=vmem, size = 0x12000, scoped, tag = 'internal scratch']
  %s0 = inlined_call_operand.vmem [shape: f32[2,10,384,10], index: 0, kind: input, shape index: {}]
  %s1 = inlined_call_operand.vmem [shape: f32[3,96,96], index: 1, kind: input, shape index: {}]
  %s2 = inlined_call_operand.vmem [shape: f32[32,1], index: 2, kind: input, shape index: {}]
  %s3 = inlined_call_operand.vmem [shape: f32[7,4], index: 3, kind: input, shape index: {}]
  %s4 = inlined_call_operand.vmem [shape: f32[2,4,160,4], index: 4, kind: output, shape index: {}]
  %s5 = sld [smem:[#allocation0]]
  $region56: #{local_brief_net_forward.7} parent=0
    _
  %s7 = ssub.s32 1, %s5
  %s8 = scalar_select 0, %s7, %s5
  loop: start=0, step=1, limit=10
  $region2: #{local_brief_net_forward.7} parent=0 // loop_pre_header
    _
  $region3: #{local_brief_net_forward.7} parent=0 // loop_header
    %s10 = sphi 0, %s14
    %p11 = scmp.ge.s32.totalorder %s10, 10
    %s17 = sphi 0, %s29
    %s18 = sphi 0, %s25
    %s19 = sphi 0, %s17
    %s20 = sphi 0, %s18
    %s21 = sphi 0, %s19
    %s22 = sphi 0, %s20
    %s32 = sphi 0, %s34
    %s35 = sphi 0, %s32
    %s36 = sphi 0, %s35
    %s52 = sphi 0, %s36
    %s56 = sphi 0, %s56
    %s58 = sphi 0, %s56
    %s59 = sphi 0, %s58
    %s73 = sphi 0, %s59
    %s77 = sphi 0, %s77
    %s79 = sphi 0, %s77
    %s80 = sphi 0, %s79
    %s94 = sphi 0, %s80
    %s98 = sphi 0, %s98
    %s100 = sphi 0, %s98
    %s101 = sphi 0, %s100
    %s115 = sphi 0, %s101
    %s123 = sphi 0, %s125
    %s126 = sphi 0, %s123
    %s127 = sphi 0, %s126
    %s143 = sphi 0, %s127
  $region4: #{local_brief_net_forward.7} parent=0 // loop_header_branch
    %13 = sbr.rel (%p11) target = $region8
  $region5: #{local_brief_net_forward.7} parent=0 // loop_body
    %s15 = ssub.s32 %s10, 1
    %s16 = ssub.s32 %s10, 2
    %s23 = sadd.s32 1, %s18
    %p24 = scmp.ge.s32.totalorder %s23, 4
    %s25 = scalar_select %p24, 0, %s23
    %s26 = sadd.s32 1, %s17
    %s27 = scalar_select %p24, %s26, %s17
    %p28 = scmp.ge.s32.totalorder %s27, 2
    %s29 = scalar_select %p28, 0, %s27
    %s30 = ssub.s32 %s17, %s29
    %p31 = scmp.eq.s32.totalorder %s30, 0
    %s33 = sadd.s32 %s32, 1
    %s34 = scalar_select %p31, %s32, %s33
    %p37 = pneg %p31
    %p38 = scmp.eq.s32.totalorder %s10, 7
    %p39 = por %p37, %p38
    %p40 = scmp.ne.s32.totalorder %s32, %s35
    %p41 = scmp.eq.s32.totalorder %s10, 0
    %p42 = por %p40, %p41
    %p43 = scmp.ne.s32.totalorder %s32, %s35
    %p44 = scmp.eq.s32.totalorder %s15, 7
    %p45 = por %p43, %p44
    %p46 = scmp.ne.s32.totalorder %s35, %s36
    %p47 = scmp.eq.s32.totalorder %s15, 0
    %p48 = por %p46, %p47
    %p49 = scmp.ne.s32.totalorder %s35, %s36
    %p50 = scmp.eq.s32.totalorder %s16, 7
    %p51 = por %p49, %p50
    %p53 = scmp.ne.s32.totalorder %s36, %s52
    %p54 = scmp.eq.s32.totalorder %s16, 0
    %p55 = por %p53, %p54
    %s57 = sadd.s32 %s56, 1
    %p60 = scmp.eq.s32.totalorder %s10, 7
    %p61 = scmp.ne.s32.totalorder %s56, %s58
    %p62 = scmp.eq.s32.totalorder %s10, 0
    %p63 = por %p61, %p62
    %p64 = scmp.ne.s32.totalorder %s56, %s58
    %p65 = scmp.eq.s32.totalorder %s15, 7
    %p66 = por %p64, %p65
    %p67 = scmp.ne.s32.totalorder %s58, %s59
    %p68 = scmp.eq.s32.totalorder %s15, 0
    %p69 = por %p67, %p68
    %p70 = scmp.ne.s32.totalorder %s58, %s59
    %p71 = scmp.eq.s32.totalorder %s16, 7
    %p72 = por %p70, %p71
    %p74 = scmp.ne.s32.totalorder %s59, %s73
    %p75 = scmp.eq.s32.totalorder %s16, 0
    %p76 = por %p74, %p75
    %s78 = sadd.s32 %s77, 1
    %p81 = scmp.eq.s32.totalorder %s10, 7
    %p82 = scmp.ne.s32.totalorder %s77, %s79
    %p83 = scmp.eq.s32.totalorder %s10, 0
    %p84 = por %p82, %p83
    %p85 = scmp.ne.s32.totalorder %s77, %s79
    %p86 = scmp.eq.s32.totalorder %s15, 7
    %p87 = por %p85, %p86
    %p88 = scmp.ne.s32.totalorder %s79, %s80
    %p89 = scmp.eq.s32.totalorder %s15, 0
    %p90 = por %p88, %p89
    %p91 = scmp.ne.s32.totalorder %s79, %s80
    %p92 = scmp.eq.s32.totalorder %s16, 7
    %p93 = por %p91, %p92
    %p95 = scmp.ne.s32.totalorder %s80, %s94
    %p96 = scmp.eq.s32.totalorder %s16, 0
    %p97 = por %p95, %p96
    %s99 = sadd.s32 %s98, 1
    %p102 = scmp.eq.s32.totalorder %s10, 7
    %p103 = scmp.ne.s32.totalorder %s98, %s100
    %p104 = scmp.eq.s32.totalorder %s10, 0
    %p105 = por %p103, %p104
    %p106 = scmp.ne.s32.totalorder %s98, %s100
    %p107 = scmp.eq.s32.totalorder %s15, 7
    %p108 = por %p106, %p107
    %p109 = scmp.ne.s32.totalorder %s100, %s101
    %p110 = scmp.eq.s32.totalorder %s15, 0
    %p111 = por %p109, %p110
    %p112 = scmp.ne.s32.totalorder %s100, %s101
    %p113 = scmp.eq.s32.totalorder %s16, 7
    %p114 = por %p112, %p113
    %p116 = scmp.ne.s32.totalorder %s101, %s115
    %p117 = scmp.eq.s32.totalorder %s16, 0
    %p118 = por %p116, %p117
    %s119 = ssub.s32 %s17, %s29
    %s120 = ssub.s32 %s18, %s25
    %s121 = sor.u32 %s119, %s120
    %p122 = scmp.eq.s32.totalorder %s121, 0
    %s124 = sadd.s32 %s123, 1
    %s125 = scalar_select %p122, %s123, %s124
    %p128 = pneg %p122
    %p129 = scmp.eq.s32.totalorder %s10, 7
    %p130 = por %p128, %p129
    %p131 = scmp.ne.s32.totalorder %s123, %s126
    %p132 = scmp.eq.s32.totalorder %s10, 0
    %p133 = por %p131, %p132
    %p134 = scmp.ne.s32.totalorder %s123, %s126
    %p135 = scmp.eq.s32.totalorder %s15, 7
    %p136 = por %p134, %p135
    %p137 = scmp.ne.s32.totalorder %s126, %s127
    %p138 = scmp.eq.s32.totalorder %s15, 0
    %p139 = por %p137, %p138
    %p140 = scmp.ne.s32.totalorder %s126, %s127
    %p141 = scmp.eq.s32.totalorder %s16, 7
    %p142 = por %p140, %p141
    %p144 = scmp.ne.s32.totalorder %s127, %s143
    %p145 = scmp.eq.s32.totalorder %s16, 0
    %p146 = por %p144, %p145
    %p147 = scmp.le.s32.totalorder 1, %s10
    %p148 = scmp.lt.s32.totalorder %s10, 9
    %p149 = pnand %p147, %p148
    %p150 = pneg %p149
    // Predicated region
    $region9: #{local_brief_net_forward.7} parent=5 // pred_check
      _
    $region10: #{local_brief_net_forward.7} parent=5 // pred_check_branch
      %152 = sbr.rel (%p149) target = $region12
    $region11: #{local_brief_net_forward.7} parent=5 // pred_region
      %s153 = ssub.s32 %s10, 1
      // Predicated region
      $region13: #{local_brief_net_forward.7} parent=11 // pred_check
        %p154 = pneg %p69
      $region14: #{local_brief_net_forward.7} parent=11 // pred_check_branch
        %156 = sbr.rel (%p154) target = $region16
      $region15: #{local_brief_net_forward.7} parent=11 // pred_region
        _
      $region16: #{local_brief_net_forward.7} parent=11 // pred_fallthru
        _
      // Predicated region
      $region17: #{local_brief_net_forward.7} parent=11 // pred_check
        %p157 = pneg %p90
      $region18: #{local_brief_net_forward.7} parent=11 // pred_check_branch
        %159 = sbr.rel (%p157) target = $region20
      $region19: #{local_brief_net_forward.7} parent=11 // pred_region
        _
      $region20: #{local_brief_net_forward.7} parent=11 // pred_fallthru
        _
      // Predicated region
      $region21: #{local_brief_net_forward.7} parent=11 // pred_check
        %p160 = pneg %p111
      $region22: #{local_brief_net_forward.7} parent=11 // pred_check_branch
        %162 = sbr.rel (%p160) target = $region24
      $region23: #{local_brief_net_forward.7} parent=11 // pred_region
        _
      $region24: #{local_brief_net_forward.7} parent=11 // pred_fallthru
        _
    $region12: #{local_brief_net_forward.7} parent=5 // pred_fallthru
      _
    %p163 = scmp.lt.s32.totalorder %s10, 8
    // Predicated region
    $region25: #{local_brief_net_forward.7} parent=5 // pred_check
      %p164 = pneg %p163
    $region26: #{local_brief_net_forward.7} parent=5 // pred_check_branch
      %166 = sbr.rel (%p164) target = $region28
    $region27: #{local_brief_net_forward.7} parent=5 // pred_region
      // Predicated region
      $region29: #{local_brief_net_forward.7} parent=27 // pred_check
        %p167 = pneg %p42
      $region30: #{local_brief_net_forward.7} parent=27 // pred_check_branch
        %169 = sbr.rel (%p167) target = $region32
      $region31: #{local_brief_net_forward.7} parent=27 // pred_region
        %p170 = scmp.lt.s32.totalorder %s17, 1
        %s171 = scalar_select %p170, %s17, 1
        %s172 = smul.addr %s171, 480
        %s173 = smul.addr %s172, 8
        %s174 = scalar_lea.vmem %s0, %s173
      $region32: #{local_brief_net_forward.7} parent=27 // pred_fallthru
        _
    $region28: #{local_brief_net_forward.7} parent=5 // pred_fallthru
      _
    %p175 = scmp.le.s32.totalorder 1, %s10
    %p176 = scmp.lt.s32.totalorder %s10, 9
    %p177 = pnand %p175, %p176
    %p178 = pneg %p177
    // Predicated region
    $region33: #{local_brief_net_forward.7} parent=5 // pred_check
      _
    $region34: #{local_brief_net_forward.7} parent=5 // pred_check_branch
      %180 = sbr.rel (%p177) target = $region36
    $region35: #{local_brief_net_forward.7} parent=5 // pred_region
      %s181 = ssub.s32 %s10, 1
      %p182 = scmp.lt.s32.totalorder %s19, 1
      %s183 = scalar_select %p182, %s19, 1
      %s184 = smul.addr %s183, 480
      %s185 = smul.addr %s184, 8
      %s186 = scalar_lea.vmem %s0, %s185
      %p187 = pneg %p48
      %p188 = pneg %p45
      %p189 = pneg %p69
      %p190 = pneg %p66
      %p191 = pneg %p90
      %p192 = pneg %p87
      %p193 = pneg %p111
      %p194 = pneg %p108
      %p195 = pneg %p139
      %p196 = pneg %p136
      %p197 = scmp.lt.s32.totalorder %s19, 1
      %s198 = scalar_select %p197, %s19, 1
      %p199 = scmp.lt.s32.totalorder %s20, 3
      %s200 = scalar_select %p199, %s20, 3
      %s201 = smul.addr %s200, 20
      %s202 = smul.addr %s198, 80
      %s203 = sadd.s32 %s201, %s202
      %s204 = smul.addr %s203, 8
      %s205 = scalar_lea.vmem %s4, %s204
      %p206 = scmp.lt.s32.totalorder %s19, 1
      %s207 = scalar_select %p206, %s19, 1
      %s208 = smul.addr %s207, 480
      %s209 = smul.addr %s208, 8
      %s210 = scalar_lea.vmem %s0, %s209
      %p211 = scmp.lt.s32.totalorder %s19, 1
      %s212 = scalar_select %p211, %s19, 1
      %p213 = scmp.lt.s32.totalorder %s20, 3
      %s214 = scalar_select %p213, %s20, 3
      %s215 = smul.addr %s214, 20
      %s216 = smul.addr %s212, 80
      %s217 = sadd.s32 %s215, %s216
      %s218 = smul.addr %s217, 8
      %s219 = scalar_lea.vmem %s4, %s218
      %s220 = smul.u32 %s20, 2
      %v221 = vld [vmem:[%s2] sm:$0xff]
      %v222 = vld [vmem:[%s2 + $0x8] sm:$0xff]
      %v223 = vld [vmem:[%s2 + $0x10] sm:$0xff]
      %v224 = vld [vmem:[%s2 + $0x18] sm:$0xff]
      %v225 = vld [vmem:[%s3] sm:$0x7f]
      loop: start=0, step=1, limit=5
      $region37: #{local_brief_net_forward.7} parent=35 // loop_pre_header
        _
      $region38: #{local_brief_net_forward.7} parent=35 // loop_header
        %s227 = sphi 0, %s231
        %p228 = scmp.ge.s32.totalorder %s227, 5
      $region39: #{local_brief_net_forward.7} parent=35 // loop_header_branch
        %230 = sbr.rel (%p228) target = $region43
      $region40: #{local_brief_net_forward.7} parent=35 // loop_body
        %s232 = smul.u32 %s227, 64
        %s233 = smul.u32 %s220, 384
        %s234 = sadd.s32 %s232, %s233
        %s235 = scalar_lea.vmem %s210, %s234
        %v236 = vld [vmem:[%s235] sm:$0xff]
        %v237 = vld [vmem:[%s235 + $0x8] sm:$0xff]
        %v238 = vld [vmem:[%s235 + $0x10] sm:$0xff]
        %v239 = vld [vmem:[%s235 + $0x18] sm:$0xff]
        %v240 = vld [vmem:[%s235 + $0x20] sm:$0xff]
        %v241 = vld [vmem:[%s235 + $0x28] sm:$0xff]
        %v242 = vld [vmem:[%s235 + $0x30] sm:$0xff]
        %v243 = vld [vmem:[%s235 + $0x38] sm:$0xff]
        %v244 = vld [vmem:[%s235 + $0x40] sm:$0xff]
        %v245 = vld [vmem:[%s235 + $0x48] sm:$0xff]
        %v246 = vld [vmem:[%s235 + $0x50] sm:$0xff]
        %v247 = vld [vmem:[%s235 + $0x58] sm:$0xff]
        %v248 = vld [vmem:[%s1] sm:$0xff]
        %v249 = vld [vmem:[%s1 + $0x8] sm:$0xff]
        %v250 = vld [vmem:[%s1 + $0x10] sm:$0xff]
        %v251 = vld [vmem:[%s1 + $0x18] sm:$0xff]
        %v252 = vld [vmem:[%s1 + $0x20] sm:$0xff]
        %v253 = vld [vmem:[%s1 + $0x28] sm:$0xff]
        %v254 = vld [vmem:[%s1 + $0x30] sm:$0xff]
        %v255 = vld [vmem:[%s1 + $0x38] sm:$0xff]
        %v256 = vld [vmem:[%s1 + $0x40] sm:$0xff]
        %v257 = vld [vmem:[%s1 + $0x48] sm:$0xff]
        %v258 = vld [vmem:[%s1 + $0x50] sm:$0xff]
        %v259 = vld [vmem:[%s1 + $0x58] sm:$0xff]
        %s260 = sadd.s32 %s220, 1
        %s261 = smul.u32 %s260, 384
        %s262 = sadd.s32 %s232, %s261
        %s263 = scalar_lea.vmem %s210, %s262
        %v264 = vld [vmem:[%s263] sm:$0xff]
        %v265 = vld [vmem:[%s263 + $0x8] sm:$0xff]
        %v266 = vld [vmem:[%s263 + $0x10] sm:$0xff]
        %v267 = vld [vmem:[%s263 + $0x18] sm:$0xff]
        %v268 = vld [vmem:[%s263 + $0x20] sm:$0xff]
        %v269 = vld [vmem:[%s263 + $0x28] sm:$0xff]
        %v270 = vld [vmem:[%s263 + $0x30] sm:$0xff]
        %v271 = vld [vmem:[%s263 + $0x38] sm:$0xff]
        %v272 = vld [vmem:[%s263 + $0x40] sm:$0xff]
        %v273 = vld [vmem:[%s263 + $0x48] sm:$0xff]
        %v274 = vld [vmem:[%s263 + $0x50] sm:$0xff]
        %v275 = vld [vmem:[%s263 + $0x58] sm:$0xff]
        %s276 = scalar_lea.vmem %s1, 96
        %v277 = vld [vmem:[%s276] sm:$0xff]
        %v278 = vld [vmem:[%s276 + $0x8] sm:$0xff]
        %v279 = vld [vmem:[%s276 + $0x10] sm:$0xff]
        %v280 = vld [vmem:[%s276 + $0x18] sm:$0xff]
        %v281 = vld [vmem:[%s276 + $0x20] sm:$0xff]
        %v282 = vld [vmem:[%s276 + $0x28] sm:$0xff]
        %v283 = vld [vmem:[%s276 + $0x30] sm:$0xff]
        %v284 = vld [vmem:[%s276 + $0x38] sm:$0xff]
        %v285 = vld [vmem:[%s276 + $0x40] sm:$0xff]
        %v286 = vld [vmem:[%s276 + $0x48] sm:$0xff]
        %v287 = vld [vmem:[%s276 + $0x50] sm:$0xff]
        %v288 = vld [vmem:[%s276 + $0x58] sm:$0xff]
        %vm289 = vcmask 785408
        %v291 = vsel %vm289, %v277, 0
        %v294 = vsel %vm289, %v278, 0
        %v297 = vsel %vm289, %v279, 0
        %v300 = vsel %vm289, %v280, 0
        %v303 = vsel %vm289, %v281, 0
        %v306 = vsel %vm289, %v282, 0
        %v309 = vsel %vm289, %v283, 0
        %v312 = vsel %vm289, %v284, 0
        %v315 = vsel %vm289, %v285, 0
        %v318 = vsel %vm289, %v286, 0
        %v321 = vsel %vm289, %v287, 0
        %v324 = vsel %vm289, %v288, 0
        %326 = vmatprep.subr.mxu0 0.0
        %327 = vmatpush1.msra.mxu0 %v264
        %328 = vmatprep.subr.mxu0 0.0
        %329 = vmatpush1.msra.mxu0 %v265
        %330 = vmatprep.subr.mxu0 0.0
        %331 = vmatpush1.msra.mxu0 %v266
        %332 = vmatprep.subr.mxu0 0.0
        %333 = vmatpush1.msra.mxu0 %v267
        %334 = vmatprep.subr.mxu0 0.0
        %335 = vmatpush1.msra.mxu0 %v268
        %336 = vmatprep.subr.mxu0 0.0
        %337 = vmatpush1.msra.mxu0 %v269
        %338 = vmatprep.subr.mxu0 0.0
        %339 = vmatpush1.msra.mxu0 %v270
        %340 = vmatprep.subr.mxu0 0.0
        %341 = vmatpush1.msra.mxu0 %v271
        %342 = vmatprep.subr.mxu0 0.0
        %343 = vmatpush1.msra.mxu0 %v272
        %344 = vmatprep.subr.mxu0 0.0
        %345 = vmatpush1.msra.mxu0 %v273
        %346 = vmatprep.subr.mxu0 0.0
        %347 = vmatpush1.msra.mxu0 %v274
        %348 = vmatprep.subr.mxu0 0.0
        %349 = vmatpush1.msra.mxu0 %v275
        %350 = vmatprep.subr.mxu0 0.0
        %351 = vmatpush1.msra.mxu0 0.0
        %352 = vmatprep.subr.mxu0 0.0
        %353 = vmatpush1.msra.mxu0 0.0
        %354 = vmatprep.subr.mxu0 0.0
        %355 = vmatpush1.msra.mxu0 0.0
        %356 = vmatprep.subr.mxu0 0.0
        %357 = vmatpush1.msra.mxu0 0.0
        %358 = vmatprep.subr.mxu0 0.0
        %359 = vmatpush1.msra.mxu0 0.0
        %360 = vmatprep.subr.mxu0 0.0
        %361 = vmatpush1.msra.mxu0 0.0
        %362 = vmatprep.subr.mxu0 0.0
        %363 = vmatpush1.msra.mxu0 0.0
        %364 = vmatprep.subr.mxu0 0.0
        %365 = vmatpush1.msra.mxu0 0.0
        %366 = vmatprep.subr.mxu0 0.0
        %367 = vmatpush1.msra.mxu0 0.0
        %368 = vmatprep.subr.mxu0 0.0
        %369 = vmatpush1.msra.mxu0 0.0
        %370 = vmatprep.subr.mxu0 0.0
        %371 = vmatpush1.msra.mxu0 0.0
        %372 = vmatprep.subr.mxu0 0.0
        %373 = vmatpush1.msra.mxu0 0.0
        %374 = vmatprep.subr.mxu0 0.0
        %375 = vmatpush1.msra.mxu0 0.0
        %376 = vmatprep.subr.mxu0 0.0
        %377 = vmatpush1.msra.mxu0 0.0
        %378 = vmatprep.subr.mxu0 0.0
        %379 = vmatpush1.msra.mxu0 0.0
        %380 = vmatprep.subr.mxu0 0.0
        %381 = vmatpush1.msra.mxu0 0.0
        %382 = vmatprep.subr.mxu0 0.0
        %383 = vmatpush1.msra.mxu0 0.0
        %384 = vmatprep.subr.mxu0 0.0
        %385 = vmatpush1.msra.mxu0 0.0
        %386 = vmatprep.subr.mxu0 0.0
        %387 = vmatpush1.msra.mxu0 0.0
        %388 = vmatprep.subr.mxu0 0.0
        %389 = vmatpush1.msra.mxu0 0.0
        %390 = vmatprep.mubr.f32.mxu0 0.0
        %391 = vmatmul.mubr.f32.gmra.mrb[0].mxu0 %v291
        %v392 = vpop.f32.mrb[0].mxu0
        %v393 = vadd.f32 0.0, %v392
        %v394 = vpop.f32.mrb[0].mxu0
        %395 = vmatprep.mubr.f32.mxu0 0.0
        %396 = vmatmul.mubr.f32.gmra.mrb[0].mxu0 %v294
        %v397 = vpop.f32.mrb[0].mxu0
        %v398 = vadd.f32 0.0, %v397
        %v399 = vpop.f32.mrb[0].mxu0
        %400 = vmatprep.mubr.f32.mxu0 0.0
        %401 = vmatmul.mubr.f32.gmra.mrb[0].mxu0 %v297
        %v402 = vpop.f32.mrb[0].mxu0
        %v403 = vadd.f32 0.0, %v402
        %v404 = vpop.f32.mrb[0].mxu0
        %405 = vmatprep.mubr.f32.mxu0 0.0
        %406 = vmatmul.mubr.f32.gmra.mrb[0].mxu0 %v300
        %v407 = vpop.f32.mrb[0].mxu0
        %v408 = vadd.f32 0.0, %v407
        %v409 = vpop.f32.mrb[0].mxu0
        %410 = vmatprep.mubr.f32.mxu0 0.0
        %411 = vmatmul.mubr.f32.gmra.mrb[0].mxu0 %v303
        %v412 = vpop.f32.mrb[0].mxu0
        %v413 = vadd.f32 0.0, %v412
        %v414 = vpop.f32.mrb[0].mxu0
        %415 = vmatprep.mubr.f32.mxu0 0.0
        %416 = vmatmul.mubr.f32.gmra.mrb[0].mxu0 %v306
        %v417 = vpop.f32.mrb[0].mxu0
        %v418 = vadd.f32 0.0, %v417
        %v419 = vpop.f32.mrb[0].mxu0
        %420 = vmatprep.mubr.f32.mxu0 0.0
        %421 = vmatmul.mubr.f32.gmra.mrb[0].mxu0 %v309
        %v422 = vpop.f32.mrb[0].mxu0
        %v423 = vadd.f32 0.0, %v422
        %v424 = vpop.f32.mrb[0].mxu0
        %425 = vmatprep.mubr.f32.mxu0 0.0
        %426 = vmatmul.mubr.f32.gmra.mrb[0].mxu0 %v312
        %v427 = vpop.f32.mrb[0].mxu0
        %v428 = vadd.f32 0.0, %v427
        %v429 = vpop.f32.mrb[0].mxu0
        %430 = vmatprep.mubr.f32.mxu0 0.0
        %431 = vmatmul.mubr.f32.gmra.mrb[0].mxu0 %v315
        %v432 = vpop.f32.mrb[0].mxu0
        %v433 = vadd.f32 0.0, %v432
        %v434 = vpop.f32.mrb[0].mxu0
        %435 = vmatprep.mubr.f32.mxu0 0.0
        %436 = vmatmul.mubr.f32.gmra.mrb[0].mxu0 %v318
        %v437 = vpop.f32.mrb[0].mxu0
        %v438 = vadd.f32 0.0, %v437
        %v439 = vpop.f32.mrb[0].mxu0
        %440 = vmatprep.mubr.f32.mxu0 0.0
        %441 = vmatmul.mubr.f32.gmra.mrb[0].mxu0 %v321
        %v442 = vpop.f32.mrb[0].mxu0
        %v443 = vadd.f32 0.0, %v442
        %v444 = vpop.f32.mrb[0].mxu0
        %445 = vmatprep.mubr.f32.mxu0 0.0
        %446 = vmatmul.mubr.f32.gmra.mrb[0].mxu0 %v324
        %v447 = vpop.f32.mrb[0].mxu0
        %v448 = vadd.f32 0.0, %v447
        %v449 = vpop.f32.mrb[0].mxu0
        %450 = vdwg.mxu0
        %v452 = vsel %vm289, %v248, 0
        %v455 = vsel %vm289, %v249, 0
        %v458 = vsel %vm289, %v250, 0
        %v461 = vsel %vm289, %v251, 0
        %v464 = vsel %vm289, %v252, 0
        %v467 = vsel %vm289, %v253, 0
        %v470 = vsel %vm289, %v254, 0
        %v473 = vsel %vm289, %v255, 0
        %v476 = vsel %vm289, %v256, 0
        %v479 = vsel %vm289, %v257, 0
        %v482 = vsel %vm289, %v258, 0
        %v485 = vsel %vm289, %v259, 0
        %487 = vmatprep.subr.mxu0 0.0
        %488 = vmatpush1.msra.mxu0 %v236
        %489 = vmatprep.subr.mxu0 0.0
        %490 = vmatpush1.msra.mxu0 %v237
        %491 = vmatprep.subr.mxu0 0.0
        %492 = vmatpush1.msra.mxu0 %v238
        %493 = vmatprep.subr.mxu0 0.0
        %494 = vmatpush1.msra.mxu0 %v239
        %495 = vmatprep.subr.mxu0 0.0
        %496 = vmatpush1.msra.mxu0 %v240
        %497 = vmatprep.subr.mxu0 0.0
        %498 = vmatpush1.msra.mxu0 %v241
        %499 = vmatprep.subr.mxu0 0.0
        %500 = vmatpush1.msra.mxu0 %v242
        %501 = vmatprep.subr.mxu0 0.0
        %502 = vmatpush1.msra.mxu0 %v243
        %503 = vmatprep.subr.mxu0 0.0
        %504 = vmatpush1.msra.mxu0 %v244
        %505 = vmatprep.subr.mxu0 0.0
        %506 = vmatpush1.msra.mxu0 %v245
        %507 = vmatprep.subr.mxu0 0.0
        %508 = vmatpush1.msra.mxu0 %v246
        %509 = vmatprep.subr.mxu0 0.0
        %510 = vmatpush1.msra.mxu0 %v247
        %511 = vmatprep.subr.mxu0 0.0
        %512 = vmatpush1.msra.mxu0 0.0
        %513 = vmatprep.subr.mxu0 0.0
        %514 = vmatpush1.msra.mxu0 0.0
        %515 = vmatprep.subr.mxu0 0.0
        %516 = vmatpush1.msra.mxu0 0.0
        %517 = vmatprep.subr.mxu0 0.0
        %518 = vmatpush1.msra.mxu0 0.0
        %519 = vmatprep.subr.mxu0 0.0
        %520 = vmatpush1.msra.mxu0 0.0
        %521 = vmatprep.subr.mxu0 0.0
        %522 = vmatpush1.msra.mxu0 0.0
        %523 = vmatprep.subr.mxu0 0.0
        %524 = vmatpush1.msra.mxu0 0.0
        %525 = vmatprep.subr.mxu0 0.0
        %526 = vmatpush1.msra.mxu0 0.0
        %527 = vmatprep.subr.mxu0 0.0
        %528 = vmatpush1.msra.mxu0 0.0
        %529 = vmatprep.subr.mxu0 0.0
        %530 = vmatpush1.msra.mxu0 0.0
        %531 = vmatprep.subr.mxu0 0.0
        %532 = vmatpush1.msra.mxu0 0.0
        %533 = vmatprep.subr.mxu0 0.0
        %534 = vmatpush1.msra.mxu0 0.0
        %535 = vmatprep.subr.mxu0 0.0
        %536 = vmatpush1.msra.mxu0 0.0
        %537 = vmatprep.subr.mxu0 0.0
        %538 = vmatpush1.msra.mxu0 0.0
        %539 = vmatprep.subr.mxu0 0.0
        %540 = vmatpush1.msra.mxu0 0.0
        %541 = vmatprep.subr.mxu0 0.0
        %542 = vmatpush1.msra.mxu0 0.0
        %543 = vmatprep.subr.mxu0 0.0
        %544 = vmatpush1.msra.mxu0 0.0
        %545 = vmatprep.subr.mxu0 0.0
        %546 = vmatpush1.msra.mxu0 0.0
        %547 = vmatprep.subr.mxu0 0.0
        %548 = vmatpush1.msra.mxu0 0.0
        %549 = vmatprep.subr.mxu0 0.0
        %550 = vmatpush1.msra.mxu0 0.0
        %551 = vmatprep.mubr.f32.mxu0 0.0
        %552 = vmatmul.mubr.f32.gmra.mrb[0].mxu0 %v452
        %v553 = vpop.f32.mrb[0].mxu0
        %v554 = vadd.f32 %v393, %v553
        %v555 = vpop.f32.mrb[0].mxu0
        %556 = vmatprep.mubr.f32.mxu0 0.0
        %557 = vmatmul.mubr.f32.gmra.mrb[0].mxu0 %v455
        %v558 = vpop.f32.mrb[0].mxu0
        %v559 = vadd.f32 %v398, %v558
        %v560 = vpop.f32.mrb[0].mxu0
        %561 = vmatprep.mubr.f32.mxu0 0.0
        %562 = vmatmul.mubr.f32.gmra.mrb[0].mxu0 %v458
        %v563 = vpop.f32.mrb[0].mxu0
        %v564 = vadd.f32 %v403, %v563
        %v565 = vpop.f32.mrb[0].mxu0
        %566 = vmatprep.mubr.f32.mxu0 0.0
        %567 = vmatmul.mubr.f32.gmra.mrb[0].mxu0 %v461
        %v568 = vpop.f32.mrb[0].mxu0
        %v569 = vadd.f32 %v408, %v568
        %v570 = vpop.f32.mrb[0].mxu0
        %571 = vmatprep.mubr.f32.mxu0 0.0
        %572 = vmatmul.mubr.f32.gmra.mrb[0].mxu0 %v464
        %v573 = vpop.f32.mrb[0].mxu0
        %v574 = vadd.f32 %v413, %v573
        %v575 = vpop.f32.mrb[0].mxu0
        %576 = vmatprep.mubr.f32.mxu0 0.0
        %577 = vmatmul.mubr.f32.gmra.mrb[0].mxu0 %v467
        %v578 = vpop.f32.mrb[0].mxu0
        %v579 = vadd.f32 %v418, %v578
        %v580 = vpop.f32.mrb[0].mxu0
        %581 = vmatprep.mubr.f32.mxu0 0.0
        %582 = vmatmul.mubr.f32.gmra.mrb[0].mxu0 %v470
        %v583 = vpop.f32.mrb[0].mxu0
        %v584 = vadd.f32 %v423, %v583
        %v585 = vpop.f32.mrb[0].mxu0
        %586 = vmatprep.mubr.f32.mxu0 0.0
        %587 = vmatmul.mubr.f32.gmra.mrb[0].mxu0 %v473
        %v588 = vpop.f32.mrb[0].mxu0
        %v589 = vadd.f32 %v428, %v588
        %v590 = vpop.f32.mrb[0].mxu0
        %591 = vmatprep.mubr.f32.mxu0 0.0
        %592 = vmatmul.mubr.f32.gmra.mrb[0].mxu0 %v476
        %v593 = vpop.f32.mrb[0].mxu0
        %v594 = vadd.f32 %v433, %v593
        %v595 = vpop.f32.mrb[0].mxu0
        %596 = vmatprep.mubr.f32.mxu0 0.0
        %597 = vmatmul.mubr.f32.gmra.mrb[0].mxu0 %v479
        %v598 = vpop.f32.mrb[0].mxu0
        %v599 = vadd.f32 %v438, %v598
        %v600 = vpop.f32.mrb[0].mxu0
        %601 = vmatprep.mubr.f32.mxu0 0.0
        %602 = vmatmul.mubr.f32.gmra.mrb[0].mxu0 %v482
        %v603 = vpop.f32.mrb[0].mxu0
        %v604 = vadd.f32 %v443, %v603
        %v605 = vpop.f32.mrb[0].mxu0
        %606 = vmatprep.mubr.f32.mxu0 0.0
        %607 = vmatmul.mubr.f32.gmra.mrb[0].mxu0 %v485
        %v608 = vpop.f32.mrb[0].mxu0
        %v609 = vadd.f32 %v448, %v608
        %v610 = vpop.f32.mrb[0].mxu0
        %611 = vdwg.mxu0
        %s612 = sadd.s32 %s220, 2
        %s613 = smul.u32 %s612, 384
        %s614 = sadd.s32 %s232, %s613
        %s615 = scalar_lea.vmem %s210, %s614
        %v616 = vld [vmem:[%s615] sm:$0xff]
        %v617 = vld [vmem:[%s615 + $0x8] sm:$0xff]
        %v618 = vld [vmem:[%s615 + $0x10] sm:$0xff]
        %v619 = vld [vmem:[%s615 + $0x18] sm:$0xff]
        %v620 = vld [vmem:[%s615 + $0x20] sm:$0xff]
        %v621 = vld [vmem:[%s615 + $0x28] sm:$0xff]
        %v622 = vld [vmem:[%s615 + $0x30] sm:$0xff]
        %v623 = vld [vmem:[%s615 + $0x38] sm:$0xff]
        %v624 = vld [vmem:[%s615 + $0x40] sm:$0xff]
        %v625 = vld [vmem:[%s615 + $0x48] sm:$0xff]
        %v626 = vld [vmem:[%s615 + $0x50] sm:$0xff]
        %v627 = vld [vmem:[%s615 + $0x58] sm:$0xff]
        %s628 = scalar_lea.vmem %s1, 192
        %v629 = vld [vmem:[%s628] sm:$0xff]
        %v630 = vld [vmem:[%s628 + $0x8] sm:$0xff]
        %v631 = vld [vmem:[%s628 + $0x10] sm:$0xff]
        %v632 = vld [vmem:[%s628 + $0x18] sm:$0xff]
        %v633 = vld [vmem:[%s628 + $0x20] sm:$0xff]
        %v634 = vld [vmem:[%s628 + $0x28] sm:$0xff]
        %v635 = vld [vmem:[%s628 + $0x30] sm:$0xff]
        %v636 = vld [vmem:[%s628 + $0x38] sm:$0xff]
        %v637 = vld [vmem:[%s628 + $0x40] sm:$0xff]
        %v638 = vld [vmem:[%s628 + $0x48] sm:$0xff]
        %v639 = vld [vmem:[%s628 + $0x50] sm:$0xff]
        %v640 = vld [vmem:[%s628 + $0x58] sm:$0xff]
        %v642 = vsel %vm289, %v629, 0
        %v645 = vsel %vm289, %v630, 0
        %v648 = vsel %vm289, %v631, 0
        %v651 = vsel %vm289, %v632, 0
        %v654 = vsel %vm289, %v633, 0
        %v657 = vsel %vm289, %v634, 0
        %v660 = vsel %vm289, %v635, 0
        %v663 = vsel %vm289, %v636, 0
        %v666 = vsel %vm289, %v637, 0
        %v669 = vsel %vm289, %v638, 0
        %v672 = vsel %vm289, %v639, 0
        %v675 = vsel %vm289, %v640, 0
        %677 = vmatprep.subr.mxu0 0.0
        %678 = vmatpush1.msra.mxu0 %v616
        %679 = vmatprep.subr.mxu0 0.0
        %680 = vmatpush1.msra.mxu0 %v617
        %681 = vmatprep.subr.mxu0 0.0
        %682 = vmatpush1.msra.mxu0 %v618
        %683 = vmatprep.subr.mxu0 0.0
        %684 = vmatpush1.msra.mxu0 %v619
        %685 = vmatprep.subr.mxu0 0.0
        %686 = vmatpush1.msra.mxu0 %v620
        %687 = vmatprep.subr.mxu0 0.0
        %688 = vmatpush1.msra.mxu0 %v621
        %689 = vmatprep.subr.mxu0 0.0
        %690 = vmatpush1.msra.mxu0 %v622
        %691 = vmatprep.subr.mxu0 0.0
        %692 = vmatpush1.msra.mxu0 %v623
        %693 = vmatprep.subr.mxu0 0.0
        %694 = vmatpush1.msra.mxu0 %v624
        %695 = vmatprep.subr.mxu0 0.0
        %696 = vmatpush1.msra.mxu0 %v625
        %697 = vmatprep.subr.mxu0 0.0
        %698 = vmatpush1.msra.mxu0 %v626
        %699 = vmatprep.subr.mxu0 0.0
        %700 = vmatpush1.msra.mxu0 %v627
        %701 = vmatprep.subr.mxu0 0.0
        %702 = vmatpush1.msra.mxu0 0.0
        %703 = vmatprep.subr.mxu0 0.0
        %704 = vmatpush1.msra.mxu0 0.0
        %705 = vmatprep.subr.mxu0 0.0
        %706 = vmatpush1.msra.mxu0 0.0
        %707 = vmatprep.subr.mxu0 0.0
        %708 = vmatpush1.msra.mxu0 0.0
        %709 = vmatprep.subr.mxu0 0.0
        %710 = vmatpush1.msra.mxu0 0.0
        %711 = vmatprep.subr.mxu0 0.0
        %712 = vmatpush1.msra.mxu0 0.0
        %713 = vmatprep.subr.mxu0 0.0
        %714 = vmatpush1.msra.mxu0 0.0
        %715 = vmatprep.subr.mxu0 0.0
        %716 = vmatpush1.msra.mxu0 0.0
        %717 = vmatprep.subr.mxu0 0.0
        %718 = vmatpush1.msra.mxu0 0.0
        %719 = vmatprep.subr.mxu0 0.0
        %720 = vmatpush1.msra.mxu0 0.0
        %721 = vmatprep.subr.mxu0 0.0
        %722 = vmatpush1.msra.mxu0 0.0
        %723 = vmatprep.subr.mxu0 0.0
        %724 = vmatpush1.msra.mxu0 0.0
        %725 = vmatprep.subr.mxu0 0.0
        %726 = vmatpush1.msra.mxu0 0.0
        %727 = vmatprep.subr.mxu0 0.0
        %728 = vmatpush1.msra.mxu0 0.0
        %729 = vmatprep.subr.mxu0 0.0
        %730 = vmatpush1.msra.mxu0 0.0
        %731 = vmatprep.subr.mxu0 0.0
        %732 = vmatpush1.msra.mxu0 0.0
        %733 = vmatprep.subr.mxu0 0.0
        %734 = vmatpush1.msra.mxu0 0.0
        %735 = vmatprep.subr.mxu0 0.0
        %736 = vmatpush1.msra.mxu0 0.0
        %737 = vmatprep.subr.mxu0 0.0
        %738 = vmatpush1.msra.mxu0 0.0
        %739 = vmatprep.subr.mxu0 0.0
        %740 = vmatpush1.msra.mxu0 0.0
        %741 = vmatprep.mubr.f32.mxu0 0.0
        %742 = vmatmul.mubr.f32.gmra.mrb[0].mxu0 %v642
        %v743 = vpop.f32.mrb[0].mxu0
        %v744 = vadd.f32 0.0, %v743
        %v745 = vpop.f32.mrb[0].mxu0
        %746 = vmatprep.mubr.f32.mxu0 0.0
        %747 = vmatmul.mubr.f32.gmra.mrb[0].mxu0 %v645
        %v748 = vpop.f32.mrb[0].mxu0
        %v749 = vadd.f32 0.0, %v748
        %v750 = vpop.f32.mrb[0].mxu0
        %751 = vmatprep.mubr.f32.mxu0 0.0
        %752 = vmatmul.mubr.f32.gmra.mrb[0].mxu0 %v648
        %v753 = vpop.f32.mrb[0].mxu0
        %v754 = vadd.f32 0.0, %v753
        %v755 = vpop.f32.mrb[0].mxu0
        %756 = vmatprep.mubr.f32.mxu0 0.0
        %757 = vmatmul.mubr.f32.gmra.mrb[0].mxu0 %v651
        %v758 = vpop.f32.mrb[0].mxu0
        %v759 = vadd.f32 0.0, %v758
        %v760 = vpop.f32.mrb[0].mxu0
        %761 = vmatprep.mubr.f32.mxu0 0.0
        %762 = vmatmul.mubr.f32.gmra.mrb[0].mxu0 %v654
        %v763 = vpop.f32.mrb[0].mxu0
        %v764 = vadd.f32 0.0, %v763
        %v765 = vpop.f32.mrb[0].mxu0
        %766 = vmatprep.mubr.f32.mxu0 0.0
        %767 = vmatmul.mubr.f32.gmra.mrb[0].mxu0 %v657
        %v768 = vpop.f32.mrb[0].mxu0
        %v769 = vadd.f32 0.0, %v768
        %v770 = vpop.f32.mrb[0].mxu0
        %771 = vmatprep.mubr.f32.mxu0 0.0
        %772 = vmatmul.mubr.f32.gmra.mrb[0].mxu0 %v660
        %v773 = vpop.f32.mrb[0].mxu0
        %v774 = vadd.f32 0.0, %v773
        %v775 = vpop.f32.mrb[0].mxu0
        %776 = vmatprep.mubr.f32.mxu0 0.0
        %777 = vmatmul.mubr.f32.gmra.mrb[0].mxu0 %v663
        %v778 = vpop.f32.mrb[0].mxu0
        %v779 = vadd.f32 0.0, %v778
        %v780 = vpop.f32.mrb[0].mxu0
        %781 = vmatprep.mubr.f32.mxu0 0.0
        %782 = vmatmul.mubr.f32.gmra.mrb[0].mxu0 %v666
        %v783 = vpop.f32.mrb[0].mxu0
        %v784 = vadd.f32 0.0, %v783
        %v785 = vpop.f32.mrb[0].mxu0
        %786 = vmatprep.mubr.f32.mxu0 0.0
        %787 = vmatmul.mubr.f32.gmra.mrb[0].mxu0 %v669
        %v788 = vpop.f32.mrb[0].mxu0
        %v789 = vadd.f32 0.0, %v788
        %v790 = vpop.f32.mrb[0].mxu0
        %791 = vmatprep.mubr.f32.mxu0 0.0
        %792 = vmatmul.mubr.f32.gmra.mrb[0].mxu0 %v672
        %v793 = vpop.f32.mrb[0].mxu0
        %v794 = vadd.f32 0.0, %v793
        %v795 = vpop.f32.mrb[0].mxu0
        %796 = vmatprep.mubr.f32.mxu0 0.0
        %797 = vmatmul.mubr.f32.gmra.mrb[0].mxu0 %v675
        %v798 = vpop.f32.mrb[0].mxu0
        %v799 = vadd.f32 0.0, %v798
        %v800 = vpop.f32.mrb[0].mxu0
        %801 = vdwg.mxu0
        %v802 = vadd.f32 %v554, %v744
        %v803 = vadd.f32 %v559, %v749
        %v804 = vadd.f32 %v564, %v754
        %v805 = vadd.f32 %v569, %v759
        %v806 = vadd.f32 %v574, %v764
        %v807 = vadd.f32 %v579, %v769
        %v808 = vadd.f32 %v584, %v774
        %v809 = vadd.f32 %v589, %v779
        %v810 = vadd.f32 %v594, %v784
        %v811 = vadd.f32 %v599, %v789
        %v812 = vadd.f32 %v604, %v794
        %v813 = vadd.f32 %v609, %v799
        %818 = vrot.lane.b32.xlu0 %v806, 127
        %v819 = vpop.permute.xlu0 %818
        %820 = vrot.lane.b32.xlu0 %v807, 127
        %v821 = vpop.permute.xlu0 %820
        %822 = vrot.lane.b32.xlu0 %v808, 127
        %v823 = vpop.permute.xlu0 %822
        %824 = vrot.lane.b32.xlu0 %v809, 127
        %v825 = vpop.permute.xlu0 %824
        %v830 = vadd.f32 %v802, %v819
        %v831 = vadd.f32 %v803, %v821
        %v832 = vadd.f32 %v804, %v823
        %v833 = vadd.f32 %v805, %v825
        %838 = vrot.lane.b32.xlu0 %v810, 126
        %v839 = vpop.permute.xlu0 %838
        %840 = vrot.lane.b32.xlu0 %v811, 126
        %v841 = vpop.permute.xlu0 %840
        %842 = vrot.lane.b32.xlu0 %v812, 126
        %v843 = vpop.permute.xlu0 %842
        %844 = vrot.lane.b32.xlu0 %v813, 126
        %v845 = vpop.permute.xlu0 %844
        %v850 = vadd.f32 %v830, %v839
        %v851 = vadd.f32 %v831, %v841
        %v852 = vadd.f32 %v832, %v843
        %v853 = vadd.f32 %v833, %v845
        %s854 = smul.u32 %s227, 2
        %s855 = sadd.s32 %s854, 1
        %s856 = smul.u32 %s855, 32
        %s857 = sadd.s32 %s856, %s233
        %s858 = scalar_lea.vmem %s210, %s857
        %v859 = vld [vmem:[%s858] sm:$0xff]
        %v860 = vld [vmem:[%s858 + $0x8] sm:$0xff]
        %v861 = vld [vmem:[%s858 + $0x10] sm:$0xff]
        %v862 = vld [vmem:[%s858 + $0x18] sm:$0xff]
        %v863 = vld [vmem:[%s858 + $0x20] sm:$0xff]
        %v864 = vld [vmem:[%s858 + $0x28] sm:$0xff]
        %v865 = vld [vmem:[%s858 + $0x30] sm:$0xff]
        %v866 = vld [vmem:[%s858 + $0x38] sm:$0xff]
        %v867 = vld [vmem:[%s858 + $0x40] sm:$0xff]
        %v868 = vld [vmem:[%s858 + $0x48] sm:$0xff]
        %v869 = vld [vmem:[%s858 + $0x50] sm:$0xff]
        %v870 = vld [vmem:[%s858 + $0x58] sm:$0xff]
        %s871 = sadd.s32 %s856, %s261
        %s872 = scalar_lea.vmem %s210, %s871
        %v873 = vld [vmem:[%s872] sm:$0xff]
        %v874 = vld [vmem:[%s872 + $0x8] sm:$0xff]
        %v875 = vld [vmem:[%s872 + $0x10] sm:$0xff]
        %v876 = vld [vmem:[%s872 + $0x18] sm:$0xff]
        %v877 = vld [vmem:[%s872 + $0x20] sm:$0xff]
        %v878 = vld [vmem:[%s872 + $0x28] sm:$0xff]
        %v879 = vld [vmem:[%s872 + $0x30] sm:$0xff]
        %v880 = vld [vmem:[%s872 + $0x38] sm:$0xff]
        %v881 = vld [vmem:[%s872 + $0x40] sm:$0xff]
        %v882 = vld [vmem:[%s872 + $0x48] sm:$0xff]
        %v883 = vld [vmem:[%s872 + $0x50] sm:$0xff]
        %v884 = vld [vmem:[%s872 + $0x58] sm:$0xff]
        %885 = vmatprep.subr.mxu0 0.0
        %886 = vmatpush1.msra.mxu0 %v873
        %887 = vmatprep.subr.mxu0 0.0
        %888 = vmatpush1.msra.mxu0 %v874
        %889 = vmatprep.subr.mxu0 0.0
        %890 = vmatpush1.msra.mxu0 %v875
        %891 = vmatprep.subr.mxu0 0.0
        %892 = vmatpush1.msra.mxu0 %v876
        %893 = vmatprep.subr.mxu0 0.0
        %894 = vmatpush1.msra.mxu0 %v877
        %895 = vmatprep.subr.mxu0 0.0
        %896 = vmatpush1.msra.mxu0 %v878
        %897 = vmatprep.subr.mxu0 0.0
        %898 = vmatpush1.msra.mxu0 %v879
        %899 = vmatprep.subr.mxu0 0.0
        %900 = vmatpush1.msra.mxu0 %v880
        %901 = vmatprep.subr.mxu0 0.0
        %902 = vmatpush1.msra.mxu0 %v881
        %903 = vmatprep.subr.mxu0 0.0
        %904 = vmatpush1.msra.mxu0 %v882
        %905 = vmatprep.subr.mxu0 0.0
        %906 = vmatpush1.msra.mxu0 %v883
        %907 = vmatprep.subr.mxu0 0.0
        %908 = vmatpush1.msra.mxu0 %v884
        %909 = vmatprep.subr.mxu0 0.0
        %910 = vmatpush1.msra.mxu0 0.0
        %911 = vmatprep.subr.mxu0 0.0
        %912 = vmatpush1.msra.mxu0 0.0
        %913 = vmatprep.subr.mxu0 0.0
        %914 = vmatpush1.msra.mxu0 0.0
        %915 = vmatprep.subr.mxu0 0.0
        %916 = vmatpush1.msra.mxu0 0.0
        %917 = vmatprep.subr.mxu0 0.0
        %918 = vmatpush1.msra.mxu0 0.0
        %919 = vmatprep.subr.mxu0 0.0
        %920 = vmatpush1.msra.mxu0 0.0
        %921 = vmatprep.subr.mxu0 0.0
        %922 = vmatpush1.msra.mxu0 0.0
        %923 = vmatprep.subr.mxu0 0.0
        %924 = vmatpush1.msra.mxu0 0.0
        %925 = vmatprep.subr.mxu0 0.0
        %926 = vmatpush1.msra.mxu0 0.0
        %927 = vmatprep.subr.mxu0 0.0
        %928 = vmatpush1.msra.mxu0 0.0
        %929 = vmatprep.subr.mxu0 0.0
        %930 = vmatpush1.msra.mxu0 0.0
        %931 = vmatprep.subr.mxu0 0.0
        %932 = vmatpush1.msra.mxu0 0.0
        %933 = vmatprep.subr.mxu0 0.0
        %934 = vmatpush1.msra.mxu0 0.0
        %935 = vmatprep.subr.mxu0 0.0
        %936 = vmatpush1.msra.mxu0 0.0
        %937 = vmatprep.subr.mxu0 0.0
        %938 = vmatpush1.msra.mxu0 0.0
        %939 = vmatprep.subr.mxu0 0.0
        %940 = vmatpush1.msra.mxu0 0.0
        %941 = vmatprep.subr.mxu0 0.0
        %942 = vmatpush1.msra.mxu0 0.0
        %943 = vmatprep.subr.mxu0 0.0
        %944 = vmatpush1.msra.mxu0 0.0
        %945 = vmatprep.subr.mxu0 0.0
        %946 = vmatpush1.msra.mxu0 0.0
        %947 = vmatprep.subr.mxu0 0.0
        %948 = vmatpush1.msra.mxu0 0.0
        %949 = vmatprep.mubr.f32.mxu0 0.0
        %950 = vmatmul.mubr.f32.gmra.mrb[0].mxu0 %v291
        %v951 = vpop.f32.mrb[0].mxu0
        %v952 = vadd.f32 0.0, %v951
        %v953 = vpop.f32.mrb[0].mxu0
        %954 = vmatprep.mubr.f32.mxu0 0.0
        %955 = vmatmul.mubr.f32.gmra.mrb[0].mxu0 %v294
        %v956 = vpop.f32.mrb[0].mxu0
        %v957 = vadd.f32 0.0, %v956
        %v958 = vpop.f32.mrb[0].mxu0
        %959 = vmatprep.mubr.f32.mxu0 0.0
        %960 = vmatmul.mubr.f32.gmra.mrb[0].mxu0 %v297
        %v961 = vpop.f32.mrb[0].mxu0
        %v962 = vadd.f32 0.0, %v961
        %v963 = vpop.f32.mrb[0].mxu0
        %964 = vmatprep.mubr.f32.mxu0 0.0
        %965 = vmatmul.mubr.f32.gmra.mrb[0].mxu0 %v300
        %v966 = vpop.f32.mrb[0].mxu0
        %v967 = vadd.f32 0.0, %v966
        %v968 = vpop.f32.mrb[0].mxu0
        %969 = vmatprep.mubr.f32.mxu0 0.0
        %970 = vmatmul.mubr.f32.gmra.mrb[0].mxu0 %v303
        %v971 = vpop.f32.mrb[0].mxu0
        %v972 = vadd.f32 0.0, %v971
        %v973 = vpop.f32.mrb[0].mxu0
        %974 = vmatprep.mubr.f32.mxu0 0.0
        %975 = vmatmul.mubr.f32.gmra.mrb[0].mxu0 %v306
        %v976 = vpop.f32.mrb[0].mxu0
        %v977 = vadd.f32 0.0, %v976
        %v978 = vpop.f32.mrb[0].mxu0
        %979 = vmatprep.mubr.f32.mxu0 0.0
        %980 = vmatmul.mubr.f32.gmra.mrb[0].mxu0 %v309
        %v981 = vpop.f32.mrb[0].mxu0
        %v982 = vadd.f32 0.0, %v981
        %v983 = vpop.f32.mrb[0].mxu0
        %984 = vmatprep.mubr.f32.mxu0 0.0
        %985 = vmatmul.mubr.f32.gmra.mrb[0].mxu0 %v312
        %v986 = vpop.f32.mrb[0].mxu0
        %v987 = vadd.f32 0.0, %v986
        %v988 = vpop.f32.mrb[0].mxu0
        %989 = vmatprep.mubr.f32.mxu0 0.0
        %990 = vmatmul.mubr.f32.gmra.mrb[0].mxu0 %v315
        %v991 = vpop.f32.mrb[0].mxu0
        %v992 = vadd.f32 0.0, %v991
        %v993 = vpop.f32.mrb[0].mxu0
        %994 = vmatprep.mubr.f32.mxu0 0.0
        %995 = vmatmul.mubr.f32.gmra.mrb[0].mxu0 %v318
        %v996 = vpop.f32.mrb[0].mxu0
        %v997 = vadd.f32 0.0, %v996
        %v998 = vpop.f32.mrb[0].mxu0
        %999 = vmatprep.mubr.f32.mxu0 0.0
        %1000 = vmatmul.mubr.f32.gmra.mrb[0].mxu0 %v321
        %v1001 = vpop.f32.mrb[0].mxu0
        %v1002 = vadd.f32 0.0, %v1001
        %v1003 = vpop.f32.mrb[0].mxu0
        %1004 = vmatprep.mubr.f32.mxu0 0.0
        %1005 = vmatmul.mubr.f32.gmra.mrb[0].mxu0 %v324
        %v1006 = vpop.f32.mrb[0].mxu0
        %v1007 = vadd.f32 0.0, %v1006
        %v1008 = vpop.f32.mrb[0].mxu0
        %1009 = vdwg.mxu0
        %1010 = vmatprep.subr.mxu0 0.0
        %1011 = vmatpush1.msra.mxu0 %v859
        %1012 = vmatprep.subr.mxu0 0.0
        %1013 = vmatpush1.msra.mxu0 %v860
        %1014 = vmatprep.subr.mxu0 0.0
        %1015 = vmatpush1.msra.mxu0 %v861
        %1016 = vmatprep.subr.mxu0 0.0
        %1017 = vmatpush1.msra.mxu0 %v862
        %1018 = vmatprep.subr.mxu0 0.0
        %1019 = vmatpush1.msra.mxu0 %v863
        %1020 = vmatprep.subr.mxu0 0.0
        %1021 = vmatpush1.msra.mxu0 %v864
        %1022 = vmatprep.subr.mxu0 0.0
        %1023 = vmatpush1.msra.mxu0 %v865
        %1024 = vmatprep.subr.mxu0 0.0
        %1025 = vmatpush1.msra.mxu0 %v866
        %1026 = vmatprep.subr.mxu0 0.0
        %1027 = vmatpush1.msra.mxu0 %v867
        %1028 = vmatprep.subr.mxu0 0.0
        %1029 = vmatpush1.msra.mxu0 %v868
        %1030 = vmatprep.subr.mxu0 0.0
        %1031 = vmatpush1.msra.mxu0 %v869
        %1032 = vmatprep.subr.mxu0 0.0
        %1033 = vmatpush1.msra.mxu0 %v870
        %1034 = vmatprep.subr.mxu0 0.0
        %1035 = vmatpush1.msra.mxu0 0.0
        %1036 = vmatprep.subr.mxu0 0.0
        %1037 = vmatpush1.msra.mxu0 0.0
        %1038 = vmatprep.subr.mxu0 0.0
        %1039 = vmatpush1.msra.mxu0 0.0
        %1040 = vmatprep.subr.mxu0 0.0
        %1041 = vmatpush1.msra.mxu0 0.0
        %1042 = vmatprep.subr.mxu0 0.0
        %1043 = vmatpush1.msra.mxu0 0.0
        %1044 = vmatprep.subr.mxu0 0.0
        %1045 = vmatpush1.msra.mxu0 0.0
        %1046 = vmatprep.subr.mxu0 0.0
        %1047 = vmatpush1.msra.mxu0 0.0
        %1048 = vmatprep.subr.mxu0 0.0
        %1049 = vmatpush1.msra.mxu0 0.0
        %1050 = vmatprep.subr.mxu0 0.0
        %1051 = vmatpush1.msra.mxu0 0.0
        %1052 = vmatprep.subr.mxu0 0.0
        %1053 = vmatpush1.msra.mxu0 0.0
        %1054 = vmatprep.subr.mxu0 0.0
        %1055 = vmatpush1.msra.mxu0 0.0
        %1056 = vmatprep.subr.mxu0 0.0
        %1057 = vmatpush1.msra.mxu0 0.0
        %1058 = vmatprep.subr.mxu0 0.0
        %1059 = vmatpush1.msra.mxu0 0.0
        %1060 = vmatprep.subr.mxu0 0.0
        %1061 = vmatpush1.msra.mxu0 0.0
        %1062 = vmatprep.subr.mxu0 0.0
        %1063 = vmatpush1.msra.mxu0 0.0
        %1064 = vmatprep.subr.mxu0 0.0
        %1065 = vmatpush1.msra.mxu0 0.0
        %1066 = vmatprep.subr.mxu0 0.0
        %1067 = vmatpush1.msra.mxu0 0.0
        %1068 = vmatprep.subr.mxu0 0.0
        %1069 = vmatpush1.msra.mxu0 0.0
        %1070 = vmatprep.subr.mxu0 0.0
        %1071 = vmatpush1.msra.mxu0 0.0
        %1072 = vmatprep.subr.mxu0 0.0
        %1073 = vmatpush1.msra.mxu0 0.0
        %1074 = vmatprep.mubr.f32.mxu0 0.0
        %1075 = vmatmul.mubr.f32.gmra.mrb[0].mxu0 %v452
        %v1076 = vpop.f32.mrb[0].mxu0
        %v1077 = vadd.f32 %v952, %v1076
        %v1078 = vpop.f32.mrb[0].mxu0
        %1079 = vmatprep.mubr.f32.mxu0 0.0
        %1080 = vmatmul.mubr.f32.gmra.mrb[0].mxu0 %v455
        %v1081 = vpop.f32.mrb[0].mxu0
        %v1082 = vadd.f32 %v957, %v1081
        %v1083 = vpop.f32.mrb[0].mxu0
        %1084 = vmatprep.mubr.f32.mxu0 0.0
        %1085 = vmatmul.mubr.f32.gmra.mrb[0].mxu0 %v458
        %v1086 = vpop.f32.mrb[0].mxu0
        %v1087 = vadd.f32 %v962, %v1086
        %v1088 = vpop.f32.mrb[0].mxu0
        %1089 = vmatprep.mubr.f32.mxu0 0.0
        %1090 = vmatmul.mubr.f32.gmra.mrb[0].mxu0 %v461
        %v1091 = vpop.f32.mrb[0].mxu0
        %v1092 = vadd.f32 %v967, %v1091
        %v1093 = vpop.f32.mrb[0].mxu0
        %1094 = vmatprep.mubr.f32.mxu0 0.0
        %1095 = vmatmul.mubr.f32.gmra.mrb[0].mxu0 %v464
        %v1096 = vpop.f32.mrb[0].mxu0
        %v1097 = vadd.f32 %v972, %v1096
        %v1098 = vpop.f32.mrb[0].mxu0
        %1099 = vmatprep.mubr.f32.mxu0 0.0
        %1100 = vmatmul.mubr.f32.gmra.mrb[0].mxu0 %v467
        %v1101 = vpop.f32.mrb[0].mxu0
        %v1102 = vadd.f32 %v977, %v1101
        %v1103 = vpop.f32.mrb[0].mxu0
        %1104 = vmatprep.mubr.f32.mxu0 0.0
        %1105 = vmatmul.mubr.f32.gmra.mrb[0].mxu0 %v470
        %v1106 = vpop.f32.mrb[0].mxu0
        %v1107 = vadd.f32 %v982, %v1106
        %v1108 = vpop.f32.mrb[0].mxu0
        %1109 = vmatprep.mubr.f32.mxu0 0.0
        %1110 = vmatmul.mubr.f32.gmra.mrb[0].mxu0 %v473
        %v1111 = vpop.f32.mrb[0].mxu0
        %v1112 = vadd.f32 %v987, %v1111
        %v1113 = vpop.f32.mrb[0].mxu0
        %1114 = vmatprep.mubr.f32.mxu0 0.0
        %1115 = vmatmul.mubr.f32.gmra.mrb[0].mxu0 %v476
        %v1116 = vpop.f32.mrb[0].mxu0
        %v1117 = vadd.f32 %v992, %v1116
        %v1118 = vpop.f32.mrb[0].mxu0
        %1119 = vmatprep.mubr.f32.mxu0 0.0
        %1120 = vmatmul.mubr.f32.gmra.mrb[0].mxu0 %v479
        %v1121 = vpop.f32.mrb[0].mxu0
        %v1122 = vadd.f32 %v997, %v1121
        %v1123 = vpop.f32.mrb[0].mxu0
        %1124 = vmatprep.mubr.f32.mxu0 0.0
        %1125 = vmatmul.mubr.f32.gmra.mrb[0].mxu0 %v482
        %v1126 = vpop.f32.mrb[0].mxu0
        %v1127 = vadd.f32 %v1002, %v1126
        %v1128 = vpop.f32.mrb[0].mxu0
        %1129 = vmatprep.mubr.f32.mxu0 0.0
        %1130 = vmatmul.mubr.f32.gmra.mrb[0].mxu0 %v485
        %v1131 = vpop.f32.mrb[0].mxu0
        %v1132 = vadd.f32 %v1007, %v1131
        %v1133 = vpop.f32.mrb[0].mxu0
        %1134 = vdwg.mxu0
        %s1135 = sadd.s32 %s856, %s613
        %s1136 = scalar_lea.vmem %s210, %s1135
        %v1137 = vld [vmem:[%s1136] sm:$0xff]
        %v1138 = vld [vmem:[%s1136 + $0x8] sm:$0xff]
        %v1139 = vld [vmem:[%s1136 + $0x10] sm:$0xff]
        %v1140 = vld [vmem:[%s1136 + $0x18] sm:$0xff]
        %v1141 = vld [vmem:[%s1136 + $0x20] sm:$0xff]
        %v1142 = vld [vmem:[%s1136 + $0x28] sm:$0xff]
        %v1143 = vld [vmem:[%s1136 + $0x30] sm:$0xff]
        %v1144 = vld [vmem:[%s1136 + $0x38] sm:$0xff]
        %v1145 = vld [vmem:[%s1136 + $0x40] sm:$0xff]
        %v1146 = vld [vmem:[%s1136 + $0x48] sm:$0xff]
        %v1147 = vld [vmem:[%s1136 + $0x50] sm:$0xff]
        %v1148 = vld [vmem:[%s1136 + $0x58] sm:$0xff]
        %1149 = vmatprep.subr.mxu0 0.0
        %1150 = vmatpush1.msra.mxu0 %v1137
        %1151 = vmatprep.subr.mxu0 0.0
        %1152 = vmatpush1.msra.mxu0 %v1138
        %1153 = vmatprep.subr.mxu0 0.0
        %1154 = vmatpush1.msra.mxu0 %v1139
        %1155 = vmatprep.subr.mxu0 0.0
        %1156 = vmatpush1.msra.mxu0 %v1140
        %1157 = vmatprep.subr.mxu0 0.0
        %1158 = vmatpush1.msra.mxu0 %v1141
        %1159 = vmatprep.subr.mxu0 0.0
        %1160 = vmatpush1.msra.mxu0 %v1142
        %1161 = vmatprep.subr.mxu0 0.0
        %1162 = vmatpush1.msra.mxu0 %v1143
        %1163 = vmatprep.subr.mxu0 0.0
        %1164 = vmatpush1.msra.mxu0 %v1144
        %1165 = vmatprep.subr.mxu0 0.0
        %1166 = vmatpush1.msra.mxu0 %v1145
        %1167 = vmatprep.subr.mxu0 0.0
        %1168 = vmatpush1.msra.mxu0 %v1146
        %1169 = vmatprep.subr.mxu0 0.0
        %1170 = vmatpush1.msra.mxu0 %v1147
        %1171 = vmatprep.subr.mxu0 0.0
        %1172 = vmatpush1.msra.mxu0 %v1148
        %1173 = vmatprep.subr.mxu0 0.0
        %1174 = vmatpush1.msra.mxu0 0.0
        %1175 = vmatprep.subr.mxu0 0.0
        %1176 = vmatpush1.msra.mxu0 0.0
        %1177 = vmatprep.subr.mxu0 0.0
        %1178 = vmatpush1.msra.mxu0 0.0
        %1179 = vmatprep.subr.mxu0 0.0
        %1180 = vmatpush1.msra.mxu0 0.0
        %1181 = vmatprep.subr.mxu0 0.0
        %1182 = vmatpush1.msra.mxu0 0.0
        %1183 = vmatprep.subr.mxu0 0.0
        %1184 = vmatpush1.msra.mxu0 0.0
        %1185 = vmatprep.subr.mxu0 0.0
        %1186 = vmatpush1.msra.mxu0 0.0
        %1187 = vmatprep.subr.mxu0 0.0
        %1188 = vmatpush1.msra.mxu0 0.0
        %1189 = vmatprep.subr.mxu0 0.0
        %1190 = vmatpush1.msra.mxu0 0.0
        %1191 = vmatprep.subr.mxu0 0.0
        %1192 = vmatpush1.msra.mxu0 0.0
        %1193 = vmatprep.subr.mxu0 0.0
        %1194 = vmatpush1.msra.mxu0 0.0
        %1195 = vmatprep.subr.mxu0 0.0
        %1196 = vmatpush1.msra.mxu0 0.0
        %1197 = vmatprep.subr.mxu0 0.0
        %1198 = vmatpush1.msra.mxu0 0.0
        %1199 = vmatprep.subr.mxu0 0.0
        %1200 = vmatpush1.msra.mxu0 0.0
        %1201 = vmatprep.subr.mxu0 0.0
        %1202 = vmatpush1.msra.mxu0 0.0
        %1203 = vmatprep.subr.mxu0 0.0
        %1204 = vmatpush1.msra.mxu0 0.0
        %1205 = vmatprep.subr.mxu0 0.0
        %1206 = vmatpush1.msra.mxu0 0.0
        %1207 = vmatprep.subr.mxu0 0.0
        %1208 = vmatpush1.msra.mxu0 0.0
        %1209 = vmatprep.subr.mxu0 0.0
        %1210 = vmatpush1.msra.mxu0 0.0
        %1211 = vmatprep.subr.mxu0 0.0
        %1212 = vmatpush1.msra.mxu0 0.0
        %1213 = vmatprep.mubr.f32.mxu0 0.0
        %1214 = vmatmul.mubr.f32.gmra.mrb[0].mxu0 %v642
        %v1215 = vpop.f32.mrb[0].mxu0
        %v1216 = vadd.f32 0.0, %v1215
        %v1217 = vpop.f32.mrb[0].mxu0
        %1218 = vmatprep.mubr.f32.mxu0 0.0
        %1219 = vmatmul.mubr.f32.gmra.mrb[0].mxu0 %v645
        %v1220 = vpop.f32.mrb[0].mxu0
        %v1221 = vadd.f32 0.0, %v1220
        %v1222 = vpop.f32.mrb[0].mxu0
        %1223 = vmatprep.mubr.f32.mxu0 0.0
        %1224 = vmatmul.mubr.f32.gmra.mrb[0].mxu0 %v648
        %v1225 = vpop.f32.mrb[0].mxu0
        %v1226 = vadd.f32 0.0, %v1225
        %v1227 = vpop.f32.mrb[0].mxu0
        %1228 = vmatprep.mubr.f32.mxu0 0.0
        %1229 = vmatmul.mubr.f32.gmra.mrb[0].mxu0 %v651
        %v1230 = vpop.f32.mrb[0].mxu0
        %v1231 = vadd.f32 0.0, %v1230
        %v1232 = vpop.f32.mrb[0].mxu0
        %1233 = vmatprep.mubr.f32.mxu0 0.0
        %1234 = vmatmul.mubr.f32.gmra.mrb[0].mxu0 %v654
        %v1235 = vpop.f32.mrb[0].mxu0
        %v1236 = vadd.f32 0.0, %v1235
        %v1237 = vpop.f32.mrb[0].mxu0
        %1238 = vmatprep.mubr.f32.mxu0 0.0
        %1239 = vmatmul.mubr.f32.gmra.mrb[0].mxu0 %v657
        %v1240 = vpop.f32.mrb[0].mxu0
        %v1241 = vadd.f32 0.0, %v1240
        %v1242 = vpop.f32.mrb[0].mxu0
        %1243 = vmatprep.mubr.f32.mxu0 0.0
        %1244 = vmatmul.mubr.f32.gmra.mrb[0].mxu0 %v660
        %v1245 = vpop.f32.mrb[0].mxu0
        %v1246 = vadd.f32 0.0, %v1245
        %v1247 = vpop.f32.mrb[0].mxu0
        %1248 = vmatprep.mubr.f32.mxu0 0.0
        %1249 = vmatmul.mubr.f32.gmra.mrb[0].mxu0 %v663
        %v1250 = vpop.f32.mrb[0].mxu0
        %v1251 = vadd.f32 0.0, %v1250
        %v1252 = vpop.f32.mrb[0].mxu0
        %1253 = vmatprep.mubr.f32.mxu0 0.0
        %1254 = vmatmul.mubr.f32.gmra.mrb[0].mxu0 %v666
        %v1255 = vpop.f32.mrb[0].mxu0
        %v1256 = vadd.f32 0.0, %v1255
        %v1257 = vpop.f32.mrb[0].mxu0
        %1258 = vmatprep.mubr.f32.mxu0 0.0
        %1259 = vmatmul.mubr.f32.gmra.mrb[0].mxu0 %v669
        %v1260 = vpop.f32.mrb[0].mxu0
        %v1261 = vadd.f32 0.0, %v1260
        %v1262 = vpop.f32.mrb[0].mxu0
        %1263 = vmatprep.mubr.f32.mxu0 0.0
        %1264 = vmatmul.mubr.f32.gmra.mrb[0].mxu0 %v672
        %v1265 = vpop.f32.mrb[0].mxu0
        %v1266 = vadd.f32 0.0, %v1265
        %v1267 = vpop.f32.mrb[0].mxu0
        %1268 = vmatprep.mubr.f32.mxu0 0.0
        %1269 = vmatmul.mubr.f32.gmra.mrb[0].mxu0 %v675
        %v1270 = vpop.f32.mrb[0].mxu0
        %v1271 = vadd.f32 0.0, %v1270
        %v1272 = vpop.f32.mrb[0].mxu0
        %1273 = vdwg.mxu0
        %v1274 = vadd.f32 %v1077, %v1216
        %v1275 = vadd.f32 %v1082, %v1221
        %v1276 = vadd.f32 %v1087, %v1226
        %v1277 = vadd.f32 %v1092, %v1231
        %v1278 = vadd.f32 %v1097, %v1236
        %v1279 = vadd.f32 %v1102, %v1241
        %v1280 = vadd.f32 %v1107, %v1246
        %v1281 = vadd.f32 %v1112, %v1251
        %v1282 = vadd.f32 %v1117, %v1256
        %v1283 = vadd.f32 %v1122, %v1261
        %v1284 = vadd.f32 %v1127, %v1266
        %v1285 = vadd.f32 %v1132, %v1271
        %1290 = vrot.lane.b32.xlu0 %v1278, 127
        %v1291 = vpop.permute.xlu0 %1290
        %1292 = vrot.lane.b32.xlu0 %v1279, 127
        %v1293 = vpop.permute.xlu0 %1292
        %1294 = vrot.lane.b32.xlu0 %v1280, 127
        %v1295 = vpop.permute.xlu0 %1294
        %1296 = vrot.lane.b32.xlu0 %v1281, 127
        %v1297 = vpop.permute.xlu0 %1296
        %v1302 = vadd.f32 %v1274, %v1291
        %v1303 = vadd.f32 %v1275, %v1293
        %v1304 = vadd.f32 %v1276, %v1295
        %v1305 = vadd.f32 %v1277, %v1297
        %1310 = vrot.lane.b32.xlu0 %v1282, 126
        %v1311 = vpop.permute.xlu0 %1310
        %1312 = vrot.lane.b32.xlu0 %v1283, 126
        %v1313 = vpop.permute.xlu0 %1312
        %1314 = vrot.lane.b32.xlu0 %v1284, 126
        %v1315 = vpop.permute.xlu0 %1314
        %1316 = vrot.lane.b32.xlu0 %v1285, 126
        %v1317 = vpop.permute.xlu0 %1316
        %v1322 = vadd.f32 %v1302, %v1311
        %v1323 = vadd.f32 %v1303, %v1313
        %v1324 = vadd.f32 %v1304, %v1315
        %v1325 = vadd.f32 %v1305, %v1317
        %v1326 = vmax.f32 %v850, %v1322
        %v1327 = vmax.f32 %v851, %v1323
        %v1328 = vmax.f32 %v852, %v1324
        %v1329 = vmax.f32 %v853, %v1325
        %1330 = vmatprep.subr.mxu0 0.0
        %1331 = vmatpush1.msra.mxu0 %v616
        %1332 = vmatprep.subr.mxu0 0.0
        %1333 = vmatpush1.msra.mxu0 %v617
        %1334 = vmatprep.subr.mxu0 0.0
        %1335 = vmatpush1.msra.mxu0 %v618
        %1336 = vmatprep.subr.mxu0 0.0
        %1337 = vmatpush1.msra.mxu0 %v619
        %1338 = vmatprep.subr.mxu0 0.0
        %1339 = vmatpush1.msra.mxu0 %v620
        %1340 = vmatprep.subr.mxu0 0.0
        %1341 = vmatpush1.msra.mxu0 %v621
        %1342 = vmatprep.subr.mxu0 0.0
        %1343 = vmatpush1.msra.mxu0 %v622
        %1344 = vmatprep.subr.mxu0 0.0
        %1345 = vmatpush1.msra.mxu0 %v623
        %1346 = vmatprep.subr.mxu0 0.0
        %1347 = vmatpush1.msra.mxu0 %v624
        %1348 = vmatprep.subr.mxu0 0.0
        %1349 = vmatpush1.msra.mxu0 %v625
        %1350 = vmatprep.subr.mxu0 0.0
        %1351 = vmatpush1.msra.mxu0 %v626
        %1352 = vmatprep.subr.mxu0 0.0
        %1353 = vmatpush1.msra.mxu0 %v627
        %1354 = vmatprep.subr.mxu0 0.0
        %1355 = vmatpush1.msra.mxu0 0.0
        %1356 = vmatprep.subr.mxu0 0.0
        %1357 = vmatpush1.msra.mxu0 0.0
        %1358 = vmatprep.subr.mxu0 0.0
        %1359 = vmatpush1.msra.mxu0 0.0
        %1360 = vmatprep.subr.mxu0 0.0
        %1361 = vmatpush1.msra.mxu0 0.0
        %1362 = vmatprep.subr.mxu0 0.0
        %1363 = vmatpush1.msra.mxu0 0.0
        %1364 = vmatprep.subr.mxu0 0.0
        %1365 = vmatpush1.msra.mxu0 0.0
        %1366 = vmatprep.subr.mxu0 0.0
        %1367 = vmatpush1.msra.mxu0 0.0
        %1368 = vmatprep.subr.mxu0 0.0
        %1369 = vmatpush1.msra.mxu0 0.0
        %1370 = vmatprep.subr.mxu0 0.0
        %1371 = vmatpush1.msra.mxu0 0.0
        %1372 = vmatprep.subr.mxu0 0.0
        %1373 = vmatpush1.msra.mxu0 0.0
        %1374 = vmatprep.subr.mxu0 0.0
        %1375 = vmatpush1.msra.mxu0 0.0
        %1376 = vmatprep.subr.mxu0 0.0
        %1377 = vmatpush1.msra.mxu0 0.0
        %1378 = vmatprep.subr.mxu0 0.0
        %1379 = vmatpush1.msra.mxu0 0.0
        %1380 = vmatprep.subr.mxu0 0.0
        %1381 = vmatpush1.msra.mxu0 0.0
        %1382 = vmatprep.subr.mxu0 0.0
        %1383 = vmatpush1.msra.mxu0 0.0
        %1384 = vmatprep.subr.mxu0 0.0
        %1385 = vmatpush1.msra.mxu0 0.0
        %1386 = vmatprep.subr.mxu0 0.0
        %1387 = vmatpush1.msra.mxu0 0.0
        %1388 = vmatprep.subr.mxu0 0.0
        %1389 = vmatpush1.msra.mxu0 0.0
        %1390 = vmatprep.subr.mxu0 0.0
        %1391 = vmatpush1.msra.mxu0 0.0
        %1392 = vmatprep.subr.mxu0 0.0
        %1393 = vmatpush1.msra.mxu0 0.0
        %1394 = vmatprep.mubr.f32.mxu0 0.0
        %1395 = vmatmul.mubr.f32.gmra.mrb[0].mxu0 %v291
        %v1396 = vpop.f32.mrb[0].mxu0
        %v1397 = vadd.f32 0.0, %v1396
        %v1398 = vpop.f32.mrb[0].mxu0
        %1399 = vmatprep.mubr.f32.mxu0 0.0
        %1400 = vmatmul.mubr.f32.gmra.mrb[0].mxu0 %v294
        %v1401 = vpop.f32.mrb[0].mxu0
        %v1402 = vadd.f32 0.0, %v1401
        %v1403 = vpop.f32.mrb[0].mxu0
        %1404 = vmatprep.mubr.f32.mxu0 0.0
        %1405 = vmatmul.mubr.f32.gmra.mrb[0].mxu0 %v297
        %v1406 = vpop.f32.mrb[0].mxu0
        %v1407 = vadd.f32 0.0, %v1406
        %v1408 = vpop.f32.mrb[0].mxu0
        %1409 = vmatprep.mubr.f32.mxu0 0.0
        %1410 = vmatmul.mubr.f32.gmra.mrb[0].mxu0 %v300
        %v1411 = vpop.f32.mrb[0].mxu0
        %v1412 = vadd.f32 0.0, %v1411
        %v1413 = vpop.f32.mrb[0].mxu0
        %1414 = vmatprep.mubr.f32.mxu0 0.0
        %1415 = vmatmul.mubr.f32.gmra.mrb[0].mxu0 %v303
        %v1416 = vpop.f32.mrb[0].mxu0
        %v1417 = vadd.f32 0.0, %v1416
        %v1418 = vpop.f32.mrb[0].mxu0
        %1419 = vmatprep.mubr.f32.mxu0 0.0
        %1420 = vmatmul.mubr.f32.gmra.mrb[0].mxu0 %v306
        %v1421 = vpop.f32.mrb[0].mxu0
        %v1422 = vadd.f32 0.0, %v1421
        %v1423 = vpop.f32.mrb[0].mxu0
        %1424 = vmatprep.mubr.f32.mxu0 0.0
        %1425 = vmatmul.mubr.f32.gmra.mrb[0].mxu0 %v309
        %v1426 = vpop.f32.mrb[0].mxu0
        %v1427 = vadd.f32 0.0, %v1426
        %v1428 = vpop.f32.mrb[0].mxu0
        %1429 = vmatprep.mubr.f32.mxu0 0.0
        %1430 = vmatmul.mubr.f32.gmra.mrb[0].mxu0 %v312
        %v1431 = vpop.f32.mrb[0].mxu0
        %v1432 = vadd.f32 0.0, %v1431
        %v1433 = vpop.f32.mrb[0].mxu0
        %1434 = vmatprep.mubr.f32.mxu0 0.0
        %1435 = vmatmul.mubr.f32.gmra.mrb[0].mxu0 %v315
        %v1436 = vpop.f32.mrb[0].mxu0
        %v1437 = vadd.f32 0.0, %v1436
        %v1438 = vpop.f32.mrb[0].mxu0
        %1439 = vmatprep.mubr.f32.mxu0 0.0
        %1440 = vmatmul.mubr.f32.gmra.mrb[0].mxu0 %v318
        %v1441 = vpop.f32.mrb[0].mxu0
        %v1442 = vadd.f32 0.0, %v1441
        %v1443 = vpop.f32.mrb[0].mxu0
        %1444 = vmatprep.mubr.f32.mxu0 0.0
        %1445 = vmatmul.mubr.f32.gmra.mrb[0].mxu0 %v321
        %v1446 = vpop.f32.mrb[0].mxu0
        %v1447 = vadd.f32 0.0, %v1446
        %v1448 = vpop.f32.mrb[0].mxu0
        %1449 = vmatprep.mubr.f32.mxu0 0.0
        %1450 = vmatmul.mubr.f32.gmra.mrb[0].mxu0 %v324
        %v1451 = vpop.f32.mrb[0].mxu0
        %v1452 = vadd.f32 0.0, %v1451
        %v1453 = vpop.f32.mrb[0].mxu0
        %1454 = vdwg.mxu0
        %1455 = vmatprep.subr.mxu0 0.0
        %1456 = vmatpush1.msra.mxu0 %v264
        %1457 = vmatprep.subr.mxu0 0.0
        %1458 = vmatpush1.msra.mxu0 %v265
        %1459 = vmatprep.subr.mxu0 0.0
        %1460 = vmatpush1.msra.mxu0 %v266
        %1461 = vmatprep.subr.mxu0 0.0
        %1462 = vmatpush1.msra.mxu0 %v267
        %1463 = vmatprep.subr.mxu0 0.0
        %1464 = vmatpush1.msra.mxu0 %v268
        %1465 = vmatprep.subr.mxu0 0.0
        %1466 = vmatpush1.msra.mxu0 %v269
        %1467 = vmatprep.subr.mxu0 0.0
        %1468 = vmatpush1.msra.mxu0 %v270
        %1469 = vmatprep.subr.mxu0 0.0
        %1470 = vmatpush1.msra.mxu0 %v271
        %1471 = vmatprep.subr.mxu0 0.0
        %1472 = vmatpush1.msra.mxu0 %v272
        %1473 = vmatprep.subr.mxu0 0.0
        %1474 = vmatpush1.msra.mxu0 %v273
        %1475 = vmatprep.subr.mxu0 0.0
        %1476 = vmatpush1.msra.mxu0 %v274
        %1477 = vmatprep.subr.mxu0 0.0
        %1478 = vmatpush1.msra.mxu0 %v275
        %1479 = vmatprep.subr.mxu0 0.0
        %1480 = vmatpush1.msra.mxu0 0.0
        %1481 = vmatprep.subr.mxu0 0.0
        %1482 = vmatpush1.msra.mxu0 0.0
        %1483 = vmatprep.subr.mxu0 0.0
        %1484 = vmatpush1.msra.mxu0 0.0
        %1485 = vmatprep.subr.mxu0 0.0
        %1486 = vmatpush1.msra.mxu0 0.0
        %1487 = vmatprep.subr.mxu0 0.0
        %1488 = vmatpush1.msra.mxu0 0.0
        %1489 = vmatprep.subr.mxu0 0.0
        %1490 = vmatpush1.msra.mxu0 0.0
        %1491 = vmatprep.subr.mxu0 0.0
        %1492 = vmatpush1.msra.mxu0 0.0
        %1493 = vmatprep.subr.mxu0 0.0
        %1494 = vmatpush1.msra.mxu0 0.0
        %1495 = vmatprep.subr.mxu0 0.0
        %1496 = vmatpush1.msra.mxu0 0.0
        %1497 = vmatprep.subr.mxu0 0.0
        %1498 = vmatpush1.msra.mxu0 0.0
        %1499 = vmatprep.subr.mxu0 0.0
        %1500 = vmatpush1.msra.mxu0 0.0
        %1501 = vmatprep.subr.mxu0 0.0
        %1502 = vmatpush1.msra.mxu0 0.0
        %1503 = vmatprep.subr.mxu0 0.0
        %1504 = vmatpush1.msra.mxu0 0.0
        %1505 = vmatprep.subr.mxu0 0.0
        %1506 = vmatpush1.msra.mxu0 0.0
        %1507 = vmatprep.subr.mxu0 0.0
        %1508 = vmatpush1.msra.mxu0 0.0
        %1509 = vmatprep.subr.mxu0 0.0
        %1510 = vmatpush1.msra.mxu0 0.0
        %1511 = vmatprep.subr.mxu0 0.0
        %1512 = vmatpush1.msra.mxu0 0.0
        %1513 = vmatprep.subr.mxu0 0.0
        %1514 = vmatpush1.msra.mxu0 0.0
        %1515 = vmatprep.subr.mxu0 0.0
        %1516 = vmatpush1.msra.mxu0 0.0
        %1517 = vmatprep.subr.mxu0 0.0
        %1518 = vmatpush1.msra.mxu0 0.0
        %1519 = vmatprep.mubr.f32.mxu0 0.0
        %1520 = vmatmul.mubr.f32.gmra.mrb[0].mxu0 %v452
        %v1521 = vpop.f32.mrb[0].mxu0
        %v1522 = vadd.f32 %v1397, %v1521
        %v1523 = vpop.f32.mrb[0].mxu0
        %1524 = vmatprep.mubr.f32.mxu0 0.0
        %1525 = vmatmul.mubr.f32.gmra.mrb[0].mxu0 %v455
        %v1526 = vpop.f32.mrb[0].mxu0
        %v1527 = vadd.f32 %v1402, %v1526
        %v1528 = vpop.f32.mrb[0].mxu0
        %1529 = vmatprep.mubr.f32.mxu0 0.0
        %1530 = vmatmul.mubr.f32.gmra.mrb[0].mxu0 %v458
        %v1531 = vpop.f32.mrb[0].mxu0
        %v1532 = vadd.f32 %v1407, %v1531
        %v1533 = vpop.f32.mrb[0].mxu0
        %1534 = vmatprep.mubr.f32.mxu0 0.0
        %1535 = vmatmul.mubr.f32.gmra.mrb[0].mxu0 %v461
        %v1536 = vpop.f32.mrb[0].mxu0
        %v1537 = vadd.f32 %v1412, %v1536
        %v1538 = vpop.f32.mrb[0].mxu0
        %1539 = vmatprep.mubr.f32.mxu0 0.0
        %1540 = vmatmul.mubr.f32.gmra.mrb[0].mxu0 %v464
        %v1541 = vpop.f32.mrb[0].mxu0
        %v1542 = vadd.f32 %v1417, %v1541
        %v1543 = vpop.f32.mrb[0].mxu0
        %1544 = vmatprep.mubr.f32.mxu0 0.0
        %1545 = vmatmul.mubr.f32.gmra.mrb[0].mxu0 %v467
        %v1546 = vpop.f32.mrb[0].mxu0
        %v1547 = vadd.f32 %v1422, %v1546
        %v1548 = vpop.f32.mrb[0].mxu0
        %1549 = vmatprep.mubr.f32.mxu0 0.0
        %1550 = vmatmul.mubr.f32.gmra.mrb[0].mxu0 %v470
        %v1551 = vpop.f32.mrb[0].mxu0
        %v1552 = vadd.f32 %v1427, %v1551
        %v1553 = vpop.f32.mrb[0].mxu0
        %1554 = vmatprep.mubr.f32.mxu0 0.0
        %1555 = vmatmul.mubr.f32.gmra.mrb[0].mxu0 %v473
        %v1556 = vpop.f32.mrb[0].mxu0
        %v1557 = vadd.f32 %v1432, %v1556
        %v1558 = vpop.f32.mrb[0].mxu0
        %1559 = vmatprep.mubr.f32.mxu0 0.0
        %1560 = vmatmul.mubr.f32.gmra.mrb[0].mxu0 %v476
        %v1561 = vpop.f32.mrb[0].mxu0
        %v1562 = vadd.f32 %v1437, %v1561
        %v1563 = vpop.f32.mrb[0].mxu0
        %1564 = vmatprep.mubr.f32.mxu0 0.0
        %1565 = vmatmul.mubr.f32.gmra.mrb[0].mxu0 %v479
        %v1566 = vpop.f32.mrb[0].mxu0
        %v1567 = vadd.f32 %v1442, %v1566
        %v1568 = vpop.f32.mrb[0].mxu0
        %1569 = vmatprep.mubr.f32.mxu0 0.0
        %1570 = vmatmul.mubr.f32.gmra.mrb[0].mxu0 %v482
        %v1571 = vpop.f32.mrb[0].mxu0
        %v1572 = vadd.f32 %v1447, %v1571
        %v1573 = vpop.f32.mrb[0].mxu0
        %1574 = vmatprep.mubr.f32.mxu0 0.0
        %1575 = vmatmul.mubr.f32.gmra.mrb[0].mxu0 %v485
        %v1576 = vpop.f32.mrb[0].mxu0
        %v1577 = vadd.f32 %v1452, %v1576
        %v1578 = vpop.f32.mrb[0].mxu0
        %1579 = vdwg.mxu0
        %s1580 = sadd.s32 %s220, 3
        %s1581 = smul.u32 %s1580, 384
        %s1582 = sadd.s32 %s232, %s1581
        %s1583 = scalar_lea.vmem %s210, %s1582
        %v1584 = vld [vmem:[%s1583] sm:$0xff]
        %v1585 = vld [vmem:[%s1583 + $0x8] sm:$0xff]
        %v1586 = vld [vmem:[%s1583 + $0x10] sm:$0xff]
        %v1587 = vld [vmem:[%s1583 + $0x18] sm:$0xff]
        %v1588 = vld [vmem:[%s1583 + $0x20] sm:$0xff]
        %v1589 = vld [vmem:[%s1583 + $0x28] sm:$0xff]
        %v1590 = vld [vmem:[%s1583 + $0x30] sm:$0xff]
        %v1591 = vld [vmem:[%s1583 + $0x38] sm:$0xff]
        %v1592 = vld [vmem:[%s1583 + $0x40] sm:$0xff]
        %v1593 = vld [vmem:[%s1583 + $0x48] sm:$0xff]
        %v1594 = vld [vmem:[%s1583 + $0x50] sm:$0xff]
        %v1595 = vld [vmem:[%s1583 + $0x58] sm:$0xff]
        %1596 = vmatprep.subr.mxu0 0.0
        %1597 = vmatpush1.msra.mxu0 %v1584
        %1598 = vmatprep.subr.mxu0 0.0
        %1599 = vmatpush1.msra.mxu0 %v1585
        %1600 = vmatprep.subr.mxu0 0.0
        %1601 = vmatpush1.msra.mxu0 %v1586
        %1602 = vmatprep.subr.mxu0 0.0
        %1603 = vmatpush1.msra.mxu0 %v1587
        %1604 = vmatprep.subr.mxu0 0.0
        %1605 = vmatpush1.msra.mxu0 %v1588
        %1606 = vmatprep.subr.mxu0 0.0
        %1607 = vmatpush1.msra.mxu0 %v1589
        %1608 = vmatprep.subr.mxu0 0.0
        %1609 = vmatpush1.msra.mxu0 %v1590
        %1610 = vmatprep.subr.mxu0 0.0
        %1611 = vmatpush1.msra.mxu0 %v1591
        %1612 = vmatprep.subr.mxu0 0.0
        %1613 = vmatpush1.msra.mxu0 %v1592
        %1614 = vmatprep.subr.mxu0 0.0
        %1615 = vmatpush1.msra.mxu0 %v1593
        %1616 = vmatprep.subr.mxu0 0.0
        %1617 = vmatpush1.msra.mxu0 %v1594
        %1618 = vmatprep.subr.mxu0 0.0
        %1619 = vmatpush1.msra.mxu0 %v1595
        %1620 = vmatprep.subr.mxu0 0.0
        %1621 = vmatpush1.msra.mxu0 0.0
        %1622 = vmatprep.subr.mxu0 0.0
        %1623 = vmatpush1.msra.mxu0 0.0
        %1624 = vmatprep.subr.mxu0 0.0
        %1625 = vmatpush1.msra.mxu0 0.0
        %1626 = vmatprep.subr.mxu0 0.0
        %1627 = vmatpush1.msra.mxu0 0.0
        %1628 = vmatprep.subr.mxu0 0.0
        %1629 = vmatpush1.msra.mxu0 0.0
        %1630 = vmatprep.subr.mxu0 0.0
        %1631 = vmatpush1.msra.mxu0 0.0
        %1632 = vmatprep.subr.mxu0 0.0
        %1633 = vmatpush1.msra.mxu0 0.0
        %1634 = vmatprep.subr.mxu0 0.0
        %1635 = vmatpush1.msra.mxu0 0.0
        %1636 = vmatprep.subr.mxu0 0.0
        %1637 = vmatpush1.msra.mxu0 0.0
        %1638 = vmatprep.subr.mxu0 0.0
        %1639 = vmatpush1.msra.mxu0 0.0
        %1640 = vmatprep.subr.mxu0 0.0
        %1641 = vmatpush1.msra.mxu0 0.0
        %1642 = vmatprep.subr.mxu0 0.0
        %1643 = vmatpush1.msra.mxu0 0.0
        %1644 = vmatprep.subr.mxu0 0.0
        %1645 = vmatpush1.msra.mxu0 0.0
        %1646 = vmatprep.subr.mxu0 0.0
        %1647 = vmatpush1.msra.mxu0 0.0
        %1648 = vmatprep.subr.mxu0 0.0
        %1649 = vmatpush1.msra.mxu0 0.0
        %1650 = vmatprep.subr.mxu0 0.0
        %1651 = vmatpush1.msra.mxu0 0.0
        %1652 = vmatprep.subr.mxu0 0.0
        %1653 = vmatpush1.msra.mxu0 0.0
        %1654 = vmatprep.subr.mxu0 0.0
        %1655 = vmatpush1.msra.mxu0 0.0
        %1656 = vmatprep.subr.mxu0 0.0
        %1657 = vmatpush1.msra.mxu0 0.0
        %1658 = vmatprep.subr.mxu0 0.0
        %1659 = vmatpush1.msra.mxu0 0.0
        %1660 = vmatprep.mubr.f32.mxu0 0.0
        %1661 = vmatmul.mubr.f32.gmra.mrb[0].mxu0 %v642
        %v1662 = vpop.f32.mrb[0].mxu0
        %v1663 = vadd.f32 0.0, %v1662
        %v1664 = vpop.f32.mrb[0].mxu0
        %1665 = vmatprep.mubr.f32.mxu0 0.0
        %1666 = vmatmul.mubr.f32.gmra.mrb[0].mxu0 %v645
        %v1667 = vpop.f32.mrb[0].mxu0
        %v1668 = vadd.f32 0.0, %v1667
        %v1669 = vpop.f32.mrb[0].mxu0
        %1670 = vmatprep.mubr.f32.mxu0 0.0
        %1671 = vmatmul.mubr.f32.gmra.mrb[0].mxu0 %v648
        %v1672 = vpop.f32.mrb[0].mxu0
        %v1673 = vadd.f32 0.0, %v1672
        %v1674 = vpop.f32.mrb[0].mxu0
        %1675 = vmatprep.mubr.f32.mxu0 0.0
        %1676 = vmatmul.mubr.f32.gmra.mrb[0].mxu0 %v651
        %v1677 = vpop.f32.mrb[0].mxu0
        %v1678 = vadd.f32 0.0, %v1677
        %v1679 = vpop.f32.mrb[0].mxu0
        %1680 = vmatprep.mubr.f32.mxu0 0.0
        %1681 = vmatmul.mubr.f32.gmra.mrb[0].mxu0 %v654
        %v1682 = vpop.f32.mrb[0].mxu0
        %v1683 = vadd.f32 0.0, %v1682
        %v1684 = vpop.f32.mrb[0].mxu0
        %1685 = vmatprep.mubr.f32.mxu0 0.0
        %1686 = vmatmul.mubr.f32.gmra.mrb[0].mxu0 %v657
        %v1687 = vpop.f32.mrb[0].mxu0
        %v1688 = vadd.f32 0.0, %v1687
        %v1689 = vpop.f32.mrb[0].mxu0
        %1690 = vmatprep.mubr.f32.mxu0 0.0
        %1691 = vmatmul.mubr.f32.gmra.mrb[0].mxu0 %v660
        %v1692 = vpop.f32.mrb[0].mxu0
        %v1693 = vadd.f32 0.0, %v1692
        %v1694 = vpop.f32.mrb[0].mxu0
        %1695 = vmatprep.mubr.f32.mxu0 0.0
        %1696 = vmatmul.mubr.f32.gmra.mrb[0].mxu0 %v663
        %v1697 = vpop.f32.mrb[0].mxu0
        %v1698 = vadd.f32 0.0, %v1697
        %v1699 = vpop.f32.mrb[0].mxu0
        %1700 = vmatprep.mubr.f32.mxu0 0.0
        %1701 = vmatmul.mubr.f32.gmra.mrb[0].mxu0 %v666
        %v1702 = vpop.f32.mrb[0].mxu0
        %v1703 = vadd.f32 0.0, %v1702
        %v1704 = vpop.f32.mrb[0].mxu0
        %1705 = vmatprep.mubr.f32.mxu0 0.0
        %1706 = vmatmul.mubr.f32.gmra.mrb[0].mxu0 %v669
        %v1707 = vpop.f32.mrb[0].mxu0
        %v1708 = vadd.f32 0.0, %v1707
        %v1709 = vpop.f32.mrb[0].mxu0
        %1710 = vmatprep.mubr.f32.mxu0 0.0
        %1711 = vmatmul.mubr.f32.gmra.mrb[0].mxu0 %v672
        %v1712 = vpop.f32.mrb[0].mxu0
        %v1713 = vadd.f32 0.0, %v1712
        %v1714 = vpop.f32.mrb[0].mxu0
        %1715 = vmatprep.mubr.f32.mxu0 0.0
        %1716 = vmatmul.mubr.f32.gmra.mrb[0].mxu0 %v675
        %v1717 = vpop.f32.mrb[0].mxu0
        %v1718 = vadd.f32 0.0, %v1717
        %v1719 = vpop.f32.mrb[0].mxu0
        %1720 = vdwg.mxu0
        %v1721 = vadd.f32 %v1522, %v1663
        %v1722 = vadd.f32 %v1527, %v1668
        %v1723 = vadd.f32 %v1532, %v1673
        %v1724 = vadd.f32 %v1537, %v1678
        %v1725 = vadd.f32 %v1542, %v1683
        %v1726 = vadd.f32 %v1547, %v1688
        %v1727 = vadd.f32 %v1552, %v1693
        %v1728 = vadd.f32 %v1557, %v1698
        %v1729 = vadd.f32 %v1562, %v1703
        %v1730 = vadd.f32 %v1567, %v1708
        %v1731 = vadd.f32 %v1572, %v1713
        %v1732 = vadd.f32 %v1577, %v1718
        %1737 = vrot.lane.b32.xlu0 %v1725, 127
        %v1738 = vpop.permute.xlu0 %1737
        %1739 = vrot.lane.b32.xlu0 %v1726, 127
        %v1740 = vpop.permute.xlu0 %1739
        %1741 = vrot.lane.b32.xlu0 %v1727, 127
        %v1742 = vpop.permute.xlu0 %1741
        %1743 = vrot.lane.b32.xlu0 %v1728, 127
        %v1744 = vpop.permute.xlu0 %1743
        %v1749 = vadd.f32 %v1721, %v1738
        %v1750 = vadd.f32 %v1722, %v1740
        %v1751 = vadd.f32 %v1723, %v1742
        %v1752 = vadd.f32 %v1724, %v1744
        %1757 = vrot.lane.b32.xlu0 %v1729, 126
        %v1758 = vpop.permute.xlu0 %1757
        %1759 = vrot.lane.b32.xlu0 %v1730, 126
        %v1760 = vpop.permute.xlu0 %1759
        %1761 = vrot.lane.b32.xlu0 %v1731, 126
        %v1762 = vpop.permute.xlu0 %1761
        %1763 = vrot.lane.b32.xlu0 %v1732, 126
        %v1764 = vpop.permute.xlu0 %1763
        %v1769 = vadd.f32 %v1749, %v1758
        %v1770 = vadd.f32 %v1750, %v1760
        %v1771 = vadd.f32 %v1751, %v1762
        %v1772 = vadd.f32 %v1752, %v1764
        %v1773 = vmax.f32 %v1326, %v1769
        %v1774 = vmax.f32 %v1327, %v1770
        %v1775 = vmax.f32 %v1328, %v1771
        %v1776 = vmax.f32 %v1329, %v1772
        %1777 = vmatprep.subr.mxu0 0.0
        %1778 = vmatpush1.msra.mxu0 %v1137
        %1779 = vmatprep.subr.mxu0 0.0
        %1780 = vmatpush1.msra.mxu0 %v1138
        %1781 = vmatprep.subr.mxu0 0.0
        %1782 = vmatpush1.msra.mxu0 %v1139
        %1783 = vmatprep.subr.mxu0 0.0
        %1784 = vmatpush1.msra.mxu0 %v1140
        %1785 = vmatprep.subr.mxu0 0.0
        %1786 = vmatpush1.msra.mxu0 %v1141
        %1787 = vmatprep.subr.mxu0 0.0
        %1788 = vmatpush1.msra.mxu0 %v1142
        %1789 = vmatprep.subr.mxu0 0.0
        %1790 = vmatpush1.msra.mxu0 %v1143
        %1791 = vmatprep.subr.mxu0 0.0
        %1792 = vmatpush1.msra.mxu0 %v1144
        %1793 = vmatprep.subr.mxu0 0.0
        %1794 = vmatpush1.msra.mxu0 %v1145
        %1795 = vmatprep.subr.mxu0 0.0
        %1796 = vmatpush1.msra.mxu0 %v1146
        %1797 = vmatprep.subr.mxu0 0.0
        %1798 = vmatpush1.msra.mxu0 %v1147
        %1799 = vmatprep.subr.mxu0 0.0
        %1800 = vmatpush1.msra.mxu0 %v1148
        %1801 = vmatprep.subr.mxu0 0.0
        %1802 = vmatpush1.msra.mxu0 0.0
        %1803 = vmatprep.subr.mxu0 0.0
        %1804 = vmatpush1.msra.mxu0 0.0
        %1805 = vmatprep.subr.mxu0 0.0
        %1806 = vmatpush1.msra.mxu0 0.0
        %1807 = vmatprep.subr.mxu0 0.0
        %1808 = vmatpush1.msra.mxu0 0.0
        %1809 = vmatprep.subr.mxu0 0.0
        %1810 = vmatpush1.msra.mxu0 0.0
        %1811 = vmatprep.subr.mxu0 0.0
        %1812 = vmatpush1.msra.mxu0 0.0
        %1813 = vmatprep.subr.mxu0 0.0
        %1814 = vmatpush1.msra.mxu0 0.0
        %1815 = vmatprep.subr.mxu0 0.0
        %1816 = vmatpush1.msra.mxu0 0.0
        %1817 = vmatprep.subr.mxu0 0.0
        %1818 = vmatpush1.msra.mxu0 0.0
        %1819 = vmatprep.subr.mxu0 0.0
        %1820 = vmatpush1.msra.mxu0 0.0
        %1821 = vmatprep.subr.mxu0 0.0
        %1822 = vmatpush1.msra.mxu0 0.0
        %1823 = vmatprep.subr.mxu0 0.0
        %1824 = vmatpush1.msra.mxu0 0.0
        %1825 = vmatprep.subr.mxu0 0.0
        %1826 = vmatpush1.msra.mxu0 0.0
        %1827 = vmatprep.subr.mxu0 0.0
        %1828 = vmatpush1.msra.mxu0 0.0
        %1829 = vmatprep.subr.mxu0 0.0
        %1830 = vmatpush1.msra.mxu0 0.0
        %1831 = vmatprep.subr.mxu0 0.0
        %1832 = vmatpush1.msra.mxu0 0.0
        %1833 = vmatprep.subr.mxu0 0.0
        %1834 = vmatpush1.msra.mxu0 0.0
        %1835 = vmatprep.subr.mxu0 0.0
        %1836 = vmatpush1.msra.mxu0 0.0
        %1837 = vmatprep.subr.mxu0 0.0
        %1838 = vmatpush1.msra.mxu0 0.0
        %1839 = vmatprep.subr.mxu0 0.0
        %1840 = vmatpush1.msra.mxu0 0.0
        %1841 = vmatprep.mubr.f32.mxu0 0.0
        %1842 = vmatmul.mubr.f32.gmra.mrb[0].mxu0 %v291
        %v1843 = vpop.f32.mrb[0].mxu0
        %v1844 = vadd.f32 0.0, %v1843
        %v1845 = vpop.f32.mrb[0].mxu0
        %1846 = vmatprep.mubr.f32.mxu0 0.0
        %1847 = vmatmul.mubr.f32.gmra.mrb[0].mxu0 %v294
        %v1848 = vpop.f32.mrb[0].mxu0
        %v1849 = vadd.f32 0.0, %v1848
        %v1850 = vpop.f32.mrb[0].mxu0
        %1851 = vmatprep.mubr.f32.mxu0 0.0
        %1852 = vmatmul.mubr.f32.gmra.mrb[0].mxu0 %v297
        %v1853 = vpop.f32.mrb[0].mxu0
        %v1854 = vadd.f32 0.0, %v1853
        %v1855 = vpop.f32.mrb[0].mxu0
        %1856 = vmatprep.mubr.f32.mxu0 0.0
        %1857 = vmatmul.mubr.f32.gmra.mrb[0].mxu0 %v300
        %v1858 = vpop.f32.mrb[0].mxu0
        %v1859 = vadd.f32 0.0, %v1858
        %v1860 = vpop.f32.mrb[0].mxu0
        %1861 = vmatprep.mubr.f32.mxu0 0.0
        %1862 = vmatmul.mubr.f32.gmra.mrb[0].mxu0 %v303
        %v1863 = vpop.f32.mrb[0].mxu0
        %v1864 = vadd.f32 0.0, %v1863
        %v1865 = vpop.f32.mrb[0].mxu0
        %1866 = vmatprep.mubr.f32.mxu0 0.0
        %1867 = vmatmul.mubr.f32.gmra.mrb[0].mxu0 %v306
        %v1868 = vpop.f32.mrb[0].mxu0
        %v1869 = vadd.f32 0.0, %v1868
        %v1870 = vpop.f32.mrb[0].mxu0
        %1871 = vmatprep.mubr.f32.mxu0 0.0
        %1872 = vmatmul.mubr.f32.gmra.mrb[0].mxu0 %v309
        %v1873 = vpop.f32.mrb[0].mxu0
        %v1874 = vadd.f32 0.0, %v1873
        %v1875 = vpop.f32.mrb[0].mxu0
        %1876 = vmatprep.mubr.f32.mxu0 0.0
        %1877 = vmatmul.mubr.f32.gmra.mrb[0].mxu0 %v312
        %v1878 = vpop.f32.mrb[0].mxu0
        %v1879 = vadd.f32 0.0, %v1878
        %v1880 = vpop.f32.mrb[0].mxu0
        %1881 = vmatprep.mubr.f32.mxu0 0.0
        %1882 = vmatmul.mubr.f32.gmra.mrb[0].mxu0 %v315
        %v1883 = vpop.f32.mrb[0].mxu0
        %v1884 = vadd.f32 0.0, %v1883
        %v1885 = vpop.f32.mrb[0].mxu0
        %1886 = vmatprep.mubr.f32.mxu0 0.0
        %1887 = vmatmul.mubr.f32.gmra.mrb[0].mxu0 %v318
        %v1888 = vpop.f32.mrb[0].mxu0
        %v1889 = vadd.f32 0.0, %v1888
        %v1890 = vpop.f32.mrb[0].mxu0
        %1891 = vmatprep.mubr.f32.mxu0 0.0
        %1892 = vmatmul.mubr.f32.gmra.mrb[0].mxu0 %v321
        %v1893 = vpop.f32.mrb[0].mxu0
        %v1894 = vadd.f32 0.0, %v1893
        %v1895 = vpop.f32.mrb[0].mxu0
        %1896 = vmatprep.mubr.f32.mxu0 0.0
        %1897 = vmatmul.mubr.f32.gmra.mrb[0].mxu0 %v324
        %v1898 = vpop.f32.mrb[0].mxu0
        %v1899 = vadd.f32 0.0, %v1898
        %v1900 = vpop.f32.mrb[0].mxu0
        %1901 = vdwg.mxu0
        %1902 = vmatprep.subr.mxu0 0.0
        %1903 = vmatpush1.msra.mxu0 %v873
        %1904 = vmatprep.subr.mxu0 0.0
        %1905 = vmatpush1.msra.mxu0 %v874
        %1906 = vmatprep.subr.mxu0 0.0
        %1907 = vmatpush1.msra.mxu0 %v875
        %1908 = vmatprep.subr.mxu0 0.0
        %1909 = vmatpush1.msra.mxu0 %v876
        %1910 = vmatprep.subr.mxu0 0.0
        %1911 = vmatpush1.msra.mxu0 %v877
        %1912 = vmatprep.subr.mxu0 0.0
        %1913 = vmatpush1.msra.mxu0 %v878
        %1914 = vmatprep.subr.mxu0 0.0
        %1915 = vmatpush1.msra.mxu0 %v879
        %1916 = vmatprep.subr.mxu0 0.0
        %1917 = vmatpush1.msra.mxu0 %v880
        %1918 = vmatprep.subr.mxu0 0.0
        %1919 = vmatpush1.msra.mxu0 %v881
        %1920 = vmatprep.subr.mxu0 0.0
        %1921 = vmatpush1.msra.mxu0 %v882
        %1922 = vmatprep.subr.mxu0 0.0
        %1923 = vmatpush1.msra.mxu0 %v883
        %1924 = vmatprep.subr.mxu0 0.0
        %1925 = vmatpush1.msra.mxu0 %v884
        %1926 = vmatprep.subr.mxu0 0.0
        %1927 = vmatpush1.msra.mxu0 0.0
        %1928 = vmatprep.subr.mxu0 0.0
        %1929 = vmatpush1.msra.mxu0 0.0
        %1930 = vmatprep.subr.mxu0 0.0
        %1931 = vmatpush1.msra.mxu0 0.0
        %1932 = vmatprep.subr.mxu0 0.0
        %1933 = vmatpush1.msra.mxu0 0.0
        %1934 = vmatprep.subr.mxu0 0.0
        %1935 = vmatpush1.msra.mxu0 0.0
        %1936 = vmatprep.subr.mxu0 0.0
        %1937 = vmatpush1.msra.mxu0 0.0
        %1938 = vmatprep.subr.mxu0 0.0
        %1939 = vmatpush1.msra.mxu0 0.0
        %1940 = vmatprep.subr.mxu0 0.0
        %1941 = vmatpush1.msra.mxu0 0.0
        %1942 = vmatprep.subr.mxu0 0.0
        %1943 = vmatpush1.msra.mxu0 0.0
        %1944 = vmatprep.subr.mxu0 0.0
        %1945 = vmatpush1.msra.mxu0 0.0
        %1946 = vmatprep.subr.mxu0 0.0
        %1947 = vmatpush1.msra.mxu0 0.0
        %1948 = vmatprep.subr.mxu0 0.0
        %1949 = vmatpush1.msra.mxu0 0.0
        %1950 = vmatprep.subr.mxu0 0.0
        %1951 = vmatpush1.msra.mxu0 0.0
        %1952 = vmatprep.subr.mxu0 0.0
        %1953 = vmatpush1.msra.mxu0 0.0
        %1954 = vmatprep.subr.mxu0 0.0
        %1955 = vmatpush1.msra.mxu0 0.0
        %1956 = vmatprep.subr.mxu0 0.0
        %1957 = vmatpush1.msra.mxu0 0.0
        %1958 = vmatprep.subr.mxu0 0.0
        %1959 = vmatpush1.msra.mxu0 0.0
        %1960 = vmatprep.subr.mxu0 0.0
        %1961 = vmatpush1.msra.mxu0 0.0
        %1962 = vmatprep.subr.mxu0 0.0
        %1963 = vmatpush1.msra.mxu0 0.0
        %1964 = vmatprep.subr.mxu0 0.0
        %1965 = vmatpush1.msra.mxu0 0.0
        %1966 = vmatprep.mubr.f32.mxu0 0.0
        %1967 = vmatmul.mubr.f32.gmra.mrb[0].mxu0 %v452
        %v1968 = vpop.f32.mrb[0].mxu0
        %v1969 = vadd.f32 %v1844, %v1968
        %v1970 = vpop.f32.mrb[0].mxu0
        %1971 = vmatprep.mubr.f32.mxu0 0.0
        %1972 = vmatmul.mubr.f32.gmra.mrb[0].mxu0 %v455
        %v1973 = vpop.f32.mrb[0].mxu0
        %v1974 = vadd.f32 %v1849, %v1973
        %v1975 = vpop.f32.mrb[0].mxu0
        %1976 = vmatprep.mubr.f32.mxu0 0.0
        %1977 = vmatmul.mubr.f32.gmra.mrb[0].mxu0 %v458
        %v1978 = vpop.f32.mrb[0].mxu0
        %v1979 = vadd.f32 %v1854, %v1978
        %v1980 = vpop.f32.mrb[0].mxu0
        %1981 = vmatprep.mubr.f32.mxu0 0.0
        %1982 = vmatmul.mubr.f32.gmra.mrb[0].mxu0 %v461
        %v1983 = vpop.f32.mrb[0].mxu0
        %v1984 = vadd.f32 %v1859, %v1983
        %v1985 = vpop.f32.mrb[0].mxu0
        %1986 = vmatprep.mubr.f32.mxu0 0.0
        %1987 = vmatmul.mubr.f32.gmra.mrb[0].mxu0 %v464
        %v1988 = vpop.f32.mrb[0].mxu0
        %v1989 = vadd.f32 %v1864, %v1988
        %v1990 = vpop.f32.mrb[0].mxu0
        %1991 = vmatprep.mubr.f32.mxu0 0.0
        %1992 = vmatmul.mubr.f32.gmra.mrb[0].mxu0 %v467
        %v1993 = vpop.f32.mrb[0].mxu0
        %v1994 = vadd.f32 %v1869, %v1993
        %v1995 = vpop.f32.mrb[0].mxu0
        %1996 = vmatprep.mubr.f32.mxu0 0.0
        %1997 = vmatmul.mubr.f32.gmra.mrb[0].mxu0 %v470
        %v1998 = vpop.f32.mrb[0].mxu0
        %v1999 = vadd.f32 %v1874, %v1998
        %v2000 = vpop.f32.mrb[0].mxu0
        %2001 = vmatprep.mubr.f32.mxu0 0.0
        %2002 = vmatmul.mubr.f32.gmra.mrb[0].mxu0 %v473
        %v2003 = vpop.f32.mrb[0].mxu0
        %v2004 = vadd.f32 %v1879, %v2003
        %v2005 = vpop.f32.mrb[0].mxu0
        %2006 = vmatprep.mubr.f32.mxu0 0.0
        %2007 = vmatmul.mubr.f32.gmra.mrb[0].mxu0 %v476
        %v2008 = vpop.f32.mrb[0].mxu0
        %v2009 = vadd.f32 %v1884, %v2008
        %v2010 = vpop.f32.mrb[0].mxu0
        %2011 = vmatprep.mubr.f32.mxu0 0.0
        %2012 = vmatmul.mubr.f32.gmra.mrb[0].mxu0 %v479
        %v2013 = vpop.f32.mrb[0].mxu0
        %v2014 = vadd.f32 %v1889, %v2013
        %v2015 = vpop.f32.mrb[0].mxu0
        %2016 = vmatprep.mubr.f32.mxu0 0.0
        %2017 = vmatmul.mubr.f32.gmra.mrb[0].mxu0 %v482
        %v2018 = vpop.f32.mrb[0].mxu0
        %v2019 = vadd.f32 %v1894, %v2018
        %v2020 = vpop.f32.mrb[0].mxu0
        %2021 = vmatprep.mubr.f32.mxu0 0.0
        %2022 = vmatmul.mubr.f32.gmra.mrb[0].mxu0 %v485
        %v2023 = vpop.f32.mrb[0].mxu0
        %v2024 = vadd.f32 %v1899, %v2023
        %v2025 = vpop.f32.mrb[0].mxu0
        %2026 = vdwg.mxu0
        %s2027 = sadd.s32 %s856, %s1581
        %s2028 = scalar_lea.vmem %s210, %s2027
        %v2029 = vld [vmem:[%s2028] sm:$0xff]
        %v2030 = vld [vmem:[%s2028 + $0x8] sm:$0xff]
        %v2031 = vld [vmem:[%s2028 + $0x10] sm:$0xff]
        %v2032 = vld [vmem:[%s2028 + $0x18] sm:$0xff]
        %v2033 = vld [vmem:[%s2028 + $0x20] sm:$0xff]
        %v2034 = vld [vmem:[%s2028 + $0x28] sm:$0xff]
        %v2035 = vld [vmem:[%s2028 + $0x30] sm:$0xff]
        %v2036 = vld [vmem:[%s2028 + $0x38] sm:$0xff]
        %v2037 = vld [vmem:[%s2028 + $0x40] sm:$0xff]
        %v2038 = vld [vmem:[%s2028 + $0x48] sm:$0xff]
        %v2039 = vld [vmem:[%s2028 + $0x50] sm:$0xff]
        %v2040 = vld [vmem:[%s2028 + $0x58] sm:$0xff]
        %2041 = vmatprep.subr.mxu0 0.0
        %2042 = vmatpush1.msra.mxu0 %v2029
        %2043 = vmatprep.subr.mxu0 0.0
        %2044 = vmatpush1.msra.mxu0 %v2030
        %2045 = vmatprep.subr.mxu0 0.0
        %2046 = vmatpush1.msra.mxu0 %v2031
        %2047 = vmatprep.subr.mxu0 0.0
        %2048 = vmatpush1.msra.mxu0 %v2032
        %2049 = vmatprep.subr.mxu0 0.0
        %2050 = vmatpush1.msra.mxu0 %v2033
        %2051 = vmatprep.subr.mxu0 0.0
        %2052 = vmatpush1.msra.mxu0 %v2034
        %2053 = vmatprep.subr.mxu0 0.0
        %2054 = vmatpush1.msra.mxu0 %v2035
        %2055 = vmatprep.subr.mxu0 0.0
        %2056 = vmatpush1.msra.mxu0 %v2036
        %2057 = vmatprep.subr.mxu0 0.0
        %2058 = vmatpush1.msra.mxu0 %v2037
        %2059 = vmatprep.subr.mxu0 0.0
        %2060 = vmatpush1.msra.mxu0 %v2038
        %2061 = vmatprep.subr.mxu0 0.0
        %2062 = vmatpush1.msra.mxu0 %v2039
        %2063 = vmatprep.subr.mxu0 0.0
        %2064 = vmatpush1.msra.mxu0 %v2040
        %2065 = vmatprep.subr.mxu0 0.0
        %2066 = vmatpush1.msra.mxu0 0.0
        %2067 = vmatprep.subr.mxu0 0.0
        %2068 = vmatpush1.msra.mxu0 0.0
        %2069 = vmatprep.subr.mxu0 0.0
        %2070 = vmatpush1.msra.mxu0 0.0
        %2071 = vmatprep.subr.mxu0 0.0
        %2072 = vmatpush1.msra.mxu0 0.0
        %2073 = vmatprep.subr.mxu0 0.0
        %2074 = vmatpush1.msra.mxu0 0.0
        %2075 = vmatprep.subr.mxu0 0.0
        %2076 = vmatpush1.msra.mxu0 0.0
        %2077 = vmatprep.subr.mxu0 0.0
        %2078 = vmatpush1.msra.mxu0 0.0
        %2079 = vmatprep.subr.mxu0 0.0
        %2080 = vmatpush1.msra.mxu0 0.0
        %2081 = vmatprep.subr.mxu0 0.0
        %2082 = vmatpush1.msra.mxu0 0.0
        %2083 = vmatprep.subr.mxu0 0.0
        %2084 = vmatpush1.msra.mxu0 0.0
        %2085 = vmatprep.subr.mxu0 0.0
        %2086 = vmatpush1.msra.mxu0 0.0
        %2087 = vmatprep.subr.mxu0 0.0
        %2088 = vmatpush1.msra.mxu0 0.0
        %2089 = vmatprep.subr.mxu0 0.0
        %2090 = vmatpush1.msra.mxu0 0.0
        %2091 = vmatprep.subr.mxu0 0.0
        %2092 = vmatpush1.msra.mxu0 0.0
        %2093 = vmatprep.subr.mxu0 0.0
        %2094 = vmatpush1.msra.mxu0 0.0
        %2095 = vmatprep.subr.mxu0 0.0
        %2096 = vmatpush1.msra.mxu0 0.0
        %2097 = vmatprep.subr.mxu0 0.0
        %2098 = vmatpush1.msra.mxu0 0.0
        %2099 = vmatprep.subr.mxu0 0.0
        %2100 = vmatpush1.msra.mxu0 0.0
        %2101 = vmatprep.subr.mxu0 0.0
        %2102 = vmatpush1.msra.mxu0 0.0
        %2103 = vmatprep.subr.mxu0 0.0
        %2104 = vmatpush1.msra.mxu0 0.0
        %2105 = vmatprep.mubr.f32.mxu0 0.0
        %2106 = vmatmul.mubr.f32.gmra.mrb[0].mxu0 %v642
        %v2107 = vpop.f32.mrb[0].mxu0
        %v2108 = vadd.f32 0.0, %v2107
        %v2109 = vpop.f32.mrb[0].mxu0
        %2110 = vmatprep.mubr.f32.mxu0 0.0
        %2111 = vmatmul.mubr.f32.gmra.mrb[0].mxu0 %v645
        %v2112 = vpop.f32.mrb[0].mxu0
        %v2113 = vadd.f32 0.0, %v2112
        %v2114 = vpop.f32.mrb[0].mxu0
        %2115 = vmatprep.mubr.f32.mxu0 0.0
        %2116 = vmatmul.mubr.f32.gmra.mrb[0].mxu0 %v648
        %v2117 = vpop.f32.mrb[0].mxu0
        %v2118 = vadd.f32 0.0, %v2117
        %v2119 = vpop.f32.mrb[0].mxu0
        %2120 = vmatprep.mubr.f32.mxu0 0.0
        %2121 = vmatmul.mubr.f32.gmra.mrb[0].mxu0 %v651
        %v2122 = vpop.f32.mrb[0].mxu0
        %v2123 = vadd.f32 0.0, %v2122
        %v2124 = vpop.f32.mrb[0].mxu0
        %2125 = vmatprep.mubr.f32.mxu0 0.0
        %2126 = vmatmul.mubr.f32.gmra.mrb[0].mxu0 %v654
        %v2127 = vpop.f32.mrb[0].mxu0
        %v2128 = vadd.f32 0.0, %v2127
        %v2129 = vpop.f32.mrb[0].mxu0
        %2130 = vmatprep.mubr.f32.mxu0 0.0
        %2131 = vmatmul.mubr.f32.gmra.mrb[0].mxu0 %v657
        %v2132 = vpop.f32.mrb[0].mxu0
        %v2133 = vadd.f32 0.0, %v2132
        %v2134 = vpop.f32.mrb[0].mxu0
        %2135 = vmatprep.mubr.f32.mxu0 0.0
        %2136 = vmatmul.mubr.f32.gmra.mrb[0].mxu0 %v660
        %v2137 = vpop.f32.mrb[0].mxu0
        %v2138 = vadd.f32 0.0, %v2137
        %v2139 = vpop.f32.mrb[0].mxu0
        %2140 = vmatprep.mubr.f32.mxu0 0.0
        %2141 = vmatmul.mubr.f32.gmra.mrb[0].mxu0 %v663
        %v2142 = vpop.f32.mrb[0].mxu0
        %v2143 = vadd.f32 0.0, %v2142
        %v2144 = vpop.f32.mrb[0].mxu0
        %2145 = vmatprep.mubr.f32.mxu0 0.0
        %2146 = vmatmul.mubr.f32.gmra.mrb[0].mxu0 %v666
        %v2147 = vpop.f32.mrb[0].mxu0
        %v2148 = vadd.f32 0.0, %v2147
        %v2149 = vpop.f32.mrb[0].mxu0
        %2150 = vmatprep.mubr.f32.mxu0 0.0
        %2151 = vmatmul.mubr.f32.gmra.mrb[0].mxu0 %v669
        %v2152 = vpop.f32.mrb[0].mxu0
        %v2153 = vadd.f32 0.0, %v2152
        %v2154 = vpop.f32.mrb[0].mxu0
        %2155 = vmatprep.mubr.f32.mxu0 0.0
        %2156 = vmatmul.mubr.f32.gmra.mrb[0].mxu0 %v672
        %v2157 = vpop.f32.mrb[0].mxu0
        %v2158 = vadd.f32 0.0, %v2157
        %v2159 = vpop.f32.mrb[0].mxu0
        %2160 = vmatprep.mubr.f32.mxu0 0.0
        %2161 = vmatmul.mubr.f32.gmra.mrb[0].mxu0 %v675
        %v2162 = vpop.f32.mrb[0].mxu0
        %v2163 = vadd.f32 0.0, %v2162
        %v2164 = vpop.f32.mrb[0].mxu0
        %2165 = vdwg.mxu0
        %v2166 = vadd.f32 %v1969, %v2108
        %v2167 = vadd.f32 %v1974, %v2113
        %v2168 = vadd.f32 %v1979, %v2118
        %v2169 = vadd.f32 %v1984, %v2123
        %v2170 = vadd.f32 %v1989, %v2128
        %v2171 = vadd.f32 %v1994, %v2133
        %v2172 = vadd.f32 %v1999, %v2138
        %v2173 = vadd.f32 %v2004, %v2143
        %v2174 = vadd.f32 %v2009, %v2148
        %v2175 = vadd.f32 %v2014, %v2153
        %v2176 = vadd.f32 %v2019, %v2158
        %v2177 = vadd.f32 %v2024, %v2163
        %2182 = vrot.lane.b32.xlu0 %v2170, 127
        %v2183 = vpop.permute.xlu0 %2182
        %2184 = vrot.lane.b32.xlu0 %v2171, 127
        %v2185 = vpop.permute.xlu0 %2184
        %2186 = vrot.lane.b32.xlu0 %v2172, 127
        %v2187 = vpop.permute.xlu0 %2186
        %2188 = vrot.lane.b32.xlu0 %v2173, 127
        %v2189 = vpop.permute.xlu0 %2188
        %v2194 = vadd.f32 %v2166, %v2183
        %v2195 = vadd.f32 %v2167, %v2185
        %v2196 = vadd.f32 %v2168, %v2187
        %v2197 = vadd.f32 %v2169, %v2189
        %2202 = vrot.lane.b32.xlu0 %v2174, 126
        %v2203 = vpop.permute.xlu0 %2202
        %2204 = vrot.lane.b32.xlu0 %v2175, 126
        %v2205 = vpop.permute.xlu0 %2204
        %2206 = vrot.lane.b32.xlu0 %v2176, 126
        %v2207 = vpop.permute.xlu0 %2206
        %2208 = vrot.lane.b32.xlu0 %v2177, 126
        %v2209 = vpop.permute.xlu0 %2208
        %v2214 = vadd.f32 %v2194, %v2203
        %v2215 = vadd.f32 %v2195, %v2205
        %v2216 = vadd.f32 %v2196, %v2207
        %v2217 = vadd.f32 %v2197, %v2209
        %v2218 = vmax.f32 %v1773, %v2214
        %v2219 = vmax.f32 %v1774, %v2215
        %v2220 = vmax.f32 %v1775, %v2216
        %v2221 = vmax.f32 %v1776, %v2217
        %2223 = vset.pattern.permute.xlu0 0
        %2224 = vperm.xlu0 %2223, %v221
        %v2225 = vpop.permute.xlu0 %2224
        %2228 = vset.pattern.permute.xlu0 0
        %2229 = vperm.xlu0 %2228, %v222
        %v2230 = vpop.permute.xlu0 %2229
        %2233 = vset.pattern.permute.xlu0 0
        %2234 = vperm.xlu0 %2233, %v223
        %v2235 = vpop.permute.xlu0 %2234
        %2238 = vset.pattern.permute.xlu0 0
        %2239 = vperm.xlu0 %2238, %v224
        %v2240 = vpop.permute.xlu0 %2239
        %v2242 = vadd.f32 %v2218, %v2225
        %v2243 = vadd.f32 %v2219, %v2230
        %v2244 = vadd.f32 %v2220, %v2235
        %v2245 = vadd.f32 %v2221, %v2240
        %v2246 = vmax.f32 %v2242, 0.0
        %v2247 = vmax.f32 %v2243, 0.0
        %v2248 = vmax.f32 %v2244, 0.0
        %v2249 = vmax.f32 %v2245, 0.0
        %2254 = vrot.lane.b32.xlu0 %v2246, 127
        %v2255 = vpop.permute.xlu0 %2254
        %2256 = vrot.lane.b32.xlu0 %v2247, 127
        %v2257 = vpop.permute.xlu0 %2256
        %2258 = vrot.lane.b32.xlu0 %v2248, 127
        %v2259 = vpop.permute.xlu0 %2258
        %2260 = vrot.lane.b32.xlu0 %v2249, 127
        %v2261 = vpop.permute.xlu0 %2260
        %v2266 = vmax.f32 %v2246, %v2255
        %v2267 = vmax.f32 %v2247, %v2257
        %v2268 = vmax.f32 %v2248, %v2259
        %v2269 = vmax.f32 %v2249, %v2261
        %vm2270 = vcmask 56320
        %v2272 = vsel %vm2270, %v2266, 0
        %v2275 = vsel %vm2270, %v2267, 0
        %v2278 = vsel %vm2270, %v2268, 0
        %v2281 = vsel %vm2270, %v2269, 0
        %vm2283 = vcmask 1046528
        %v2285 = vsel %vm2283, %v225, 0
        %2287 = vmatprep.subr.mxu0 0.0
        %2288 = vmatpush1.msra.mxu0 %v2285
        %2289 = vmatprep.subr.mxu0 0.0
        %2290 = vmatpush1.msra.mxu0 0.0
        %2291 = vmatprep.subr.mxu0 0.0
        %2292 = vmatpush1.msra.mxu0 0.0
        %2293 = vmatprep.subr.mxu0 0.0
        %2294 = vmatpush1.msra.mxu0 0.0
        %2295 = vmatprep.subr.mxu0 0.0
        %2296 = vmatpush1.msra.mxu0 0.0
        %2297 = vmatprep.subr.mxu0 0.0
        %2298 = vmatpush1.msra.mxu0 0.0
        %2299 = vmatprep.subr.mxu0 0.0
        %2300 = vmatpush1.msra.mxu0 0.0
        %2301 = vmatprep.subr.mxu0 0.0
        %2302 = vmatpush1.msra.mxu0 0.0
        %2303 = vmatprep.subr.mxu0 0.0
        %2304 = vmatpush1.msra.mxu0 0.0
        %2305 = vmatprep.subr.mxu0 0.0
        %2306 = vmatpush1.msra.mxu0 0.0
        %2307 = vmatprep.subr.mxu0 0.0
        %2308 = vmatpush1.msra.mxu0 0.0
        %2309 = vmatprep.subr.mxu0 0.0
        %2310 = vmatpush1.msra.mxu0 0.0
        %2311 = vmatprep.subr.mxu0 0.0
        %2312 = vmatpush1.msra.mxu0 0.0
        %2313 = vmatprep.subr.mxu0 0.0
        %2314 = vmatpush1.msra.mxu0 0.0
        %2315 = vmatprep.subr.mxu0 0.0
        %2316 = vmatpush1.msra.mxu0 0.0
        %2317 = vmatprep.subr.mxu0 0.0
        %2318 = vmatpush1.msra.mxu0 0.0
        %2319 = vmatprep.subr.mxu0 0.0
        %2320 = vmatpush1.msra.mxu0 0.0
        %2321 = vmatprep.subr.mxu0 0.0
        %2322 = vmatpush1.msra.mxu0 0.0
        %2323 = vmatprep.subr.mxu0 0.0
        %2324 = vmatpush1.msra.mxu0 0.0
        %2325 = vmatprep.subr.mxu0 0.0
        %2326 = vmatpush1.msra.mxu0 0.0
        %2327 = vmatprep.subr.mxu0 0.0
        %2328 = vmatpush1.msra.mxu0 0.0
        %2329 = vmatprep.subr.mxu0 0.0
        %2330 = vmatpush1.msra.mxu0 0.0
        %2331 = vmatprep.subr.mxu0 0.0
        %2332 = vmatpush1.msra.mxu0 0.0
        %2333 = vmatprep.subr.mxu0 0.0
        %2334 = vmatpush1.msra.mxu0 0.0
        %2335 = vmatprep.subr.mxu0 0.0
        %2336 = vmatpush1.msra.mxu0 0.0
        %2337 = vmatprep.subr.mxu0 0.0
        %2338 = vmatpush1.msra.mxu0 0.0
        %2339 = vmatprep.subr.mxu0 0.0
        %2340 = vmatpush1.msra.mxu0 0.0
        %2341 = vmatprep.subr.mxu0 0.0
        %2342 = vmatpush1.msra.mxu0 0.0
        %2343 = vmatprep.subr.mxu0 0.0
        %2344 = vmatpush1.msra.mxu0 0.0
        %2345 = vmatprep.subr.mxu0 0.0
        %2346 = vmatpush1.msra.mxu0 0.0
        %2347 = vmatprep.subr.mxu0 0.0
        %2348 = vmatpush1.msra.mxu0 0.0
        %2349 = vmatprep.subr.mxu0 0.0
        %2350 = vmatpush1.msra.mxu0 0.0
        %2351 = vmatprep.mubr.f32.mxu0 0.0
        %2352 = vmatmul.mubr.f32.gmra.mrb[0].mxu0 %v2272
        %v2353 = vpop.f32.mrb[0].mxu0
        %v2354 = vadd.f32 0.0, %v2353
        %v2355 = vpop.f32.mrb[0].mxu0
        %2356 = vmatprep.mubr.f32.mxu0 0.0
        %2357 = vmatmul.mubr.f32.gmra.mrb[0].mxu0 %v2275
        %v2358 = vpop.f32.mrb[0].mxu0
        %v2359 = vadd.f32 0.0, %v2358
        %v2360 = vpop.f32.mrb[0].mxu0
        %2361 = vmatprep.mubr.f32.mxu0 0.0
        %2362 = vmatmul.mubr.f32.gmra.mrb[0].mxu0 %v2278
        %v2363 = vpop.f32.mrb[0].mxu0
        %v2364 = vadd.f32 0.0, %v2363
        %v2365 = vpop.f32.mrb[0].mxu0
        %2366 = vmatprep.mubr.f32.mxu0 0.0
        %2367 = vmatmul.mubr.f32.gmra.mrb[0].mxu0 %v2281
        %v2368 = vpop.f32.mrb[0].mxu0
        %v2369 = vadd.f32 0.0, %v2368
        %v2370 = vpop.f32.mrb[0].mxu0
        %2371 = vdwg.mxu0
        %s2372 = smul.u32 %s227, 32
        %s2373 = scalar_lea.vmem %s219, %s2372
        %vm2374 = vcmask 31744
        %2375 = vst.msk [vmem:[%s2373] sm:$0xff] %vm2374, %v2354
        %2376 = vst.msk [vmem:[%s2373 + $0x8] sm:$0xff] %vm2374, %v2359
        %2377 = vst.msk [vmem:[%s2373 + $0x10] sm:$0xff] %vm2374, %v2364
        %2378 = vst.msk [vmem:[%s2373 + $0x18] sm:$0xff] %vm2374, %v2369
      $region41: #{local_brief_net_forward.7} parent=35 // loop_footer
        %s231 = sadd.s32 1, %s227
      $region42: #{local_brief_net_forward.7} parent=35 // loop_footer_branch
        %226 = sbr.rel target = $region38
      $region43: #{local_brief_net_forward.7} parent=35 // loop_exit
        _
      %p2379 = scmp.lt.s32.totalorder %s19, 1
      %s2380 = scalar_select %p2379, %s19, 1
      %p2381 = scmp.lt.s32.totalorder %s20, 3
      %s2382 = scalar_select %p2381, %s20, 3
      %s2383 = smul.addr %s2382, 20
      %s2384 = smul.addr %s2380, 80
      %s2385 = sadd.s32 %s2383, %s2384
      %s2386 = smul.addr %s2385, 8
      %s2387 = scalar_lea.vmem %s4, %s2386
      // Predicated region
      $region44: #{local_brief_net_forward.7} parent=35 // pred_check
        %p2388 = pneg %p136
      $region45: #{local_brief_net_forward.7} parent=35 // pred_check_branch
        %2390 = sbr.rel (%p2388) target = $region47
      $region46: #{local_brief_net_forward.7} parent=35 // pred_region
        _
      $region47: #{local_brief_net_forward.7} parent=35 // pred_fallthru
        _
    $region36: #{local_brief_net_forward.7} parent=5 // pred_fallthru
      _
    %p2391 = scmp.le.s32.totalorder 2, %s10
    // Predicated region
    $region48: #{local_brief_net_forward.7} parent=5 // pred_check
      %p2392 = pneg %p2391
    $region49: #{local_brief_net_forward.7} parent=5 // pred_check_branch
      %2394 = sbr.rel (%p2392) target = $region51
    $region50: #{local_brief_net_forward.7} parent=5 // pred_region
      %s2395 = ssub.s32 %s10, 2
      // Predicated region
      $region52: #{local_brief_net_forward.7} parent=50 // pred_check
        %p2396 = pneg %p142
      $region53: #{local_brief_net_forward.7} parent=50 // pred_check_branch
        %2398 = sbr.rel (%p2396) target = $region55
      $region54: #{local_brief_net_forward.7} parent=50 // pred_region
        %p2399 = scmp.lt.s32.totalorder %s21, 1
        %s2400 = scalar_select %p2399, %s21, 1
        %p2401 = scmp.lt.s32.totalorder %s22, 3
        %s2402 = scalar_select %p2401, %s22, 3
        %s2403 = smul.addr %s2402, 20
        %s2404 = smul.addr %s2400, 80
        %s2405 = sadd.s32 %s2403, %s2404
        %s2406 = smul.addr %s2405, 8
        %s2407 = scalar_lea.vmem %s4, %s2406
      $region55: #{local_brief_net_forward.7} parent=50 // pred_fallthru
        _
    $region51: #{local_brief_net_forward.7} parent=5 // pred_fallthru
      _
  $region6: #{local_brief_net_forward.7} parent=0 // loop_footer
    %s14 = sadd.s32 1, %s10
  $region7: #{local_brief_net_forward.7} parent=0 // loop_footer_branch
    %9 = sbr.rel target = $region3
  $region8: #{local_brief_net_forward.7} parent=0 // loop_exit
    _

</llo_original>
